<compile_context>
chip_gen: v7x
topology: tpu7x:2x2x1
jax: 0.10.0
libtpu: 0.0.40
codegen_flags: <defaults>
</compile_context>

<pallas_src>
import numpy as np
import jax
import jax.numpy as jnp
from jax.experimental import pallas as pl
from jax.experimental.pallas import tpu as pltpu


_BINS = (1, 2, 3, 6)
_B2P = 40  # per-branch padded pooled-cell count (max 6*6 = 36 -> 40, multiple of 8)


# ----------------------------------------------------------------------------------
# Static matrices: adaptive average pooling and align_corners bilinear upsampling are
# linear maps over the flattened spatial grid, so each branch becomes pure matmuls.
# The upsample matrix maps straight into the pad=1 (halo) layout so the branch kernel's
# output never needs a separate HBM padding pass.
# ----------------------------------------------------------------------------------
def _pool_matrix(H, W, b):
    """(_B2P, H*W) matrix implementing nn.AdaptiveAvgPool2d(b); rows >= b*b are zero."""
    P = np.zeros((_B2P, H * W), np.float32)
    for i in range(b):
        r0, r1 = (i * H) // b, -((-(i + 1) * H) // b)  # floor / ceil bounds
        for j in range(b):
            c0, c1 = (j * W) // b, -((-(j + 1) * W) // b)
            w = 1.0 / ((r1 - r0) * (c1 - c0))
            for y in range(r0, r1):
                for x in range(c0, c1):
                    P[i * b + j, y * W + x] = w
    return P


def _upsample_matrix_padded(H, W, b):
    """((H+2)*(W+2), _B2P) bilinear (align_corners=True) upsample into the pad=1 layout.

    Border-pixel rows are zero; columns >= b*b are zero (they cancel the ReLU(bias) rows
    produced by the zero-padded pooling rows — keep the two paddings consistent)."""
    Hp, Wp = H + 2, W + 2
    M = np.zeros((Hp * Wp, _B2P), np.float32)
    for y in range(H):
        sy = y * (b - 1) / (H - 1) if H > 1 else 0.0
        y0 = int(np.floor(sy)); y1 = min(y0 + 1, b - 1); wy = sy - y0
        for x in range(W):
            sx = x * (b - 1) / (W - 1) if W > 1 else 0.0
            x0 = int(np.floor(sx)); x1 = min(x0 + 1, b - 1); wx = sx - x0
            r = (y + 1) * Wp + (x + 1)
            M[r, y0 * b + x0] += (1 - wy) * (1 - wx)
            M[r, y0 * b + x1] += (1 - wy) * wx
            M[r, y1 * b + x0] += wy * (1 - wx)
            M[r, y1 * b + x1] += wy * wx
    return M


# ----------------------------------------------------------------------------------
# Kernel 1: all four pyramid branches fused.  Reads x once, one stacked pooling matmul,
# then per-branch 1x1 conv (BN folded) + ReLU + upsample-into-padded-layout; output is
# the bf16 branch-feature map already in (H+2, W+2) halo form (flattened).
# ----------------------------------------------------------------------------------
def branches_call(x_flat, P_all, w_br, b_br, M_all, Hp, Wp):
    N, HW, C = x_flat.shape
    Co = w_br.shape[2]
    assert 4 * Co == C
    B2T = P_all.shape[0]          # 4 * _B2P
    HWp = Hp * Wp

    def kernel(x_ref, p_ref, w_ref, b_ref, m_ref, o_ref):
        x = x_ref[0].astype(jnp.float32)                                        # (HW, C)
        pooled = jnp.dot(p_ref[...], x, preferred_element_type=jnp.float32)     # (160, C)
        ups = []
        for b in range(4):
            pb = pooled[b * _B2P:(b + 1) * _B2P]                                 # (40, C)
            feat = jnp.maximum(
                jnp.dot(pb, w_ref[b], preferred_element_type=jnp.float32) + b_ref[b],
                0.0)                                                             # (40, Co)
            ups.append(jnp.dot(m_ref[b], feat,
                               preferred_element_type=jnp.float32))              # (HWp, Co)
        out = jnp.concatenate(ups, axis=-1)                                      # (HWp, C)
        o_ref[0] = out.astype(o_ref.dtype)

    return pl.pallas_call(
        kernel,
        out_shape=jax.ShapeDtypeStruct((N, HWp, C), jnp.bfloat16),
        grid=(N,),
        in_specs=[
            pl.BlockSpec((1, HW, C), lambda n: (n, 0, 0)),
            pl.BlockSpec((B2T, HW), lambda n: (0, 0)),
            pl.BlockSpec((4, C, Co), lambda n: (0, 0, 0)),
            pl.BlockSpec((4, 1, Co), lambda n: (0, 0, 0)),
            pl.BlockSpec((4, HWp, _B2P), lambda n: (0, 0, 0)),
        ],
        out_specs=pl.BlockSpec((1, HWp, C), lambda n: (n, 0, 0)),
        compiler_params=pltpu.CompilerParams(dimension_semantics=("parallel",)),
    )(x_flat, P_all, w_br, b_br, M_all)


# ----------------------------------------------------------------------------------
# Kernel 2: head block.  3x3 conv (pad=1, BN folded) as 9 shifted matmuls, reduction
# tiled over channels with an f32 VMEM accumulator; the concat is never materialized
# (x-half and feats-half of the 3x3 weight are applied separately).  Finalize applies
# ReLU, (dropout = identity) and the 1x1 conv with a lane-dense (128-padded) output.
# ----------------------------------------------------------------------------------
def head_call(x_pad, f_pad, w3x, w3f, b3, w1p, b1p, H, W, c_tile):
    N, Hp, Wp, C = x_pad.shape
    assert Hp == H + 2 and Wp == W + 2 and C % c_tile == 0
    Cm = w3x.shape[2]
    NCP = w1p.shape[1]
    HW = H * W
    KT = C // c_tile

    def kernel(x_ref, f_ref, w3x_ref, w3f_ref, b3_ref, w1_ref, b1_ref, o_ref, acc_ref):
        k = pl.program_id(1)

        @pl.when(k == 0)
        def _init():
            acc_ref[...] = jnp.zeros_like(acc_ref)

        # Upcast to f32 before slicing so the halo slices are plain (unpacked) relayouts,
        # then cast each tap back to bf16 (exact) to keep the MXU on the bf16 path.
        xp = x_ref[0].astype(jnp.float32)                                        # (Hp,Wp,ct)
        fp = f_ref[0].astype(jnp.float32)
        acc = acc_ref[...]
        for ky in range(3):
            for kx in range(3):
                t = ky * 3 + kx
                xs = xp[ky:ky + H, kx:kx + W, :].reshape(HW, c_tile).astype(jnp.bfloat16)
                fs = fp[ky:ky + H, kx:kx + W, :].reshape(HW, c_tile).astype(jnp.bfloat16)
                acc = acc + jnp.dot(xs, w3x_ref[t], preferred_element_type=jnp.float32)
                acc = acc + jnp.dot(fs, w3f_ref[t], preferred_element_type=jnp.float32)
        acc_ref[...] = acc

        @pl.when(k == KT - 1)
        def _finalize():
            y = jnp.maximum(acc + b3_ref[...], 0.0)                              # (HW, Cm)
            out = jnp.dot(y, w1_ref[...].astype(jnp.float32),
                          preferred_element_type=jnp.float32) + b1_ref[...]      # (HW, NCP)
            o_ref[0] = out

    return pl.pallas_call(
        kernel,
        out_shape=jax.ShapeDtypeStruct((N, HW, NCP), jnp.float32),
        grid=(N, KT),
        in_specs=[
            pl.BlockSpec((1, Hp, Wp, c_tile), lambda n, k: (n, 0, 0, k)),
            pl.BlockSpec((1, Hp, Wp, c_tile), lambda n, k: (n, 0, 0, k)),
            pl.BlockSpec((9, c_tile, Cm), lambda n, k: (0, k, 0)),
            pl.BlockSpec((9, c_tile, Cm), lambda n, k: (0, k, 0)),
            pl.BlockSpec((1, Cm), lambda n, k: (0, 0)),
            pl.BlockSpec((Cm, NCP), lambda n, k: (0, 0)),
            pl.BlockSpec((1, NCP), lambda n, k: (0, 0)),
        ],
        out_specs=pl.BlockSpec((1, HW, NCP), lambda n, k: (n, 0, 0)),
        scratch_shapes=[pltpu.VMEM((HW, Cm), jnp.float32)],
        compiler_params=pltpu.CompilerParams(
            dimension_semantics=("parallel", "arbitrary")),
    )(x_pad, f_pad, w3x, w3f, b3, w1p, b1p)


# ----------------------------------------------------------------------------------
# Forward pass (glue: transpose / trivial reshape / the x halo pad stay in plain JAX)
# ----------------------------------------------------------------------------------
def psp_head_forward(x_nchw, params):
    N, C, H, W = x_nchw.shape
    Hp, Wp = H + 2, W + 2
    x_nhwc = jnp.transpose(x_nchw, (0, 2, 3, 1)).astype(jnp.bfloat16)
    x_flat = x_nhwc.reshape(N, H * W, C)

    P_all = jnp.asarray(np.concatenate([_pool_matrix(H, W, b) for b in _BINS], axis=0))
    M_all = jnp.asarray(np.stack([_upsample_matrix_padded(H, W, b) for b in _BINS], axis=0))

    # Fused pyramid branches -> bf16 branch-feature map already in halo (pad=1) layout.
    f_flat = branches_call(x_flat, P_all, params["w_br"], params["b_br"], M_all, Hp, Wp)
    f_pad = f_flat.reshape(N, Hp, Wp, C)          # free (contiguous) reshape

    # TODO(synk): the pad=1 halo for the passthrough x channels is still a jnp.pad in HBM
    #             (bf16); folding it into the head kernel (in-kernel halo / row tiling,
    #             which would also feed v7x's second TensorCore at batch=1) is left undone.
    x_pad = jnp.pad(x_nhwc, ((0, 0), (1, 1), (1, 1), (0, 0)))

    c_tile = 128 if C % 128 == 0 else C
    out = head_call(x_pad, f_pad, params["w3x"], params["w3f"], params["b3"],
                    params["w1p"], params["b1p"], H, W, c_tile)

    nclass = params["nclass"]
    out = out[:, :, :nclass].reshape(N, H, W, nclass)
    return jnp.transpose(out, (0, 3, 1, 2)).astype(jnp.float32)


# ----------------------------------------------------------------------------------
# Pure-JAX reference (f32 math, mirroring the bf16 storage points of the kernel path)
# ----------------------------------------------------------------------------------
def _reference_forward(x_nchw, params):
    N, C, H, W = x_nchw.shape
    Hp, Wp = H + 2, W + 2
    x_nhwc = jnp.transpose(x_nchw, (0, 2, 3, 1))
    xq = x_nhwc.astype(jnp.bfloat16).astype(jnp.float32)
    x_flat = xq.reshape(N, H * W, C)

    feats = []
    for bi, b in enumerate(_BINS):
        P = jnp.asarray(_pool_matrix(H, W, b))
        M = jnp.asarray(_upsample_matrix_padded(H, W, b))
        pooled = jnp.einsum("ph,nhc->npc", P, x_flat)
        f = jax.nn.relu(jnp.einsum("npc,co->npo", pooled, params["w_br"][bi])
                        + params["b_br"][bi])
        feats.append(jnp.einsum("hp,npo->nho", M, f))
    f_pad = jnp.concatenate(feats, axis=-1)
    f_pad = f_pad.astype(jnp.bfloat16).astype(jnp.float32)     # bf16 storage of branch feats
    f_pad = f_pad.reshape(N, Hp, Wp, C)

    x_pad = jnp.pad(xq, ((0, 0), (1, 1), (1, 1), (0, 0)))
    w3x = params["w3x"].astype(jnp.float32)
    w3f = params["w3f"].astype(jnp.float32)
    Cm = w3x.shape[2]
    acc = jnp.zeros((N, H, W, Cm), jnp.float32)
    for ky in range(3):
        for kx in range(3):
            t = ky * 3 + kx
            acc = acc + jnp.einsum("nhwc,cm->nhwm", x_pad[:, ky:ky + H, kx:kx + W, :], w3x[t])
            acc = acc + jnp.einsum("nhwc,cm->nhwm", f_pad[:, ky:ky + H, kx:kx + W, :], w3f[t])
    y = jax.nn.relu(acc + params["b3"][0])
    out = jnp.einsum("nhwm,mo->nhwo", y, params["w1p"].astype(jnp.float32)) + params["b1p"][0]
    out = out[..., :params["nclass"]]
    return jnp.transpose(out, (0, 3, 1, 2))


# ----------------------------------------------------------------------------------
# Deterministic synthetic parameters (BatchNorm folded into the conv weights/biases).
# Large weights stored in bf16; biases and the small branch weights stay f32.
# ----------------------------------------------------------------------------------
def init_params(key, in_channels, mid_channels, nclass, eps=1e-5):
    C = in_channels
    Co = C // 4
    keys = jax.random.split(key, 8)

    def bn_fold(kk, co):
        kg, kb, km, kv = jax.random.split(kk, 4)
        gamma = 1.0 + 0.1 * jax.random.normal(kg, (co,), jnp.float32)
        beta = 0.1 * jax.random.normal(kb, (co,), jnp.float32)
        mean = 0.1 * jax.random.normal(km, (co,), jnp.float32)
        var = 1.0 + 0.1 * jax.random.uniform(kv, (co,), jnp.float32)
        scale = gamma / jnp.sqrt(var + eps)
        return scale, beta - mean * scale

    w_br, b_br = [], []
    for i in range(4):
        kw, kbn = jax.random.split(keys[i])
        w = jax.random.normal(kw, (C, Co), jnp.float32) / np.sqrt(C)
        scale, bias = bn_fold(kbn, Co)
        w_br.append(w * scale[None, :])
        b_br.append(bias[None, :])
    w_br = jnp.stack(w_br)                 # (4, C, Co)  f32
    b_br = jnp.stack(b_br)                 # (4, 1, Co)  f32

    kw3, kbn3 = jax.random.split(keys[4])
    w3 = jax.random.normal(kw3, (3, 3, 2 * C, mid_channels),
                           jnp.float32) / np.sqrt(9 * 2 * C)
    scale3, bias3 = bn_fold(kbn3, mid_channels)
    w3 = (w3 * scale3[None, None, None, :]).reshape(9, 2 * C, mid_channels)
    w3x = w3[:, :C, :].astype(jnp.bfloat16)      # x half of the concat
    w3f = w3[:, C:, :].astype(jnp.bfloat16)      # pyramid-feature half

    w1 = jax.random.normal(keys[5], (mid_channels, nclass), jnp.float32) / np.sqrt(mid_channels)
    b1 = 0.1 * jax.random.normal(keys[6], (nclass,), jnp.float32)
    NCP = max(128, ((nclass + 127) // 128) * 128)          # lane-dense output padding
    w1p = jnp.zeros((mid_channels, NCP), jnp.float32).at[:, :nclass].set(w1).astype(jnp.bfloat16)
    b1p = jnp.zeros((1, NCP), jnp.float32).at[0, :nclass].set(b1)

    return {"w_br": w_br, "b_br": b_br, "w3x": w3x, "w3f": w3f,
            "b3": bias3[None, :], "w1p": w1p, "b1p": b1p, "nclass": nclass}


if __name__ == "__main__":
    # Small stand-in sizes: C=256 plays the role of 2048, C_mid=64 plays 512.
    # C=256 also exercises the channel-reduction tiling of the head kernel (2 tiles of 128).
    N, C, H, W = 2, 256, 16, 16
    C_mid, nclass = 64, 8

    key = jax.random.PRNGKey(0)
    kx, kp = jax.random.split(key)
    x = jax.random.normal(kx, (N, C, H, W), jnp.float32)
    params = init_params(kp, C, C_mid, nclass)

    out = jax.block_until_ready(psp_head_forward(x, params))
    ref = jax.block_until_ready(_reference_forward(x, params))

    assert out.shape == (N, nclass, H, W), out.shape
    assert bool(jnp.all(jnp.isfinite(out)))
    err = float(jnp.max(jnp.abs(out - ref)))
    assert bool(jnp.allclose(out, ref, rtol=1e-2, atol=1e-2)), err
    print("KERNEL_OK")
</pallas_src>

<mosaic_0001>
module attributes {stable_mosaic.version = 11 : i64} {
  func.func @kernel(%arg0: i32, %arg1: memref<1x256x256xbf16, #tpu.memory_space<vmem>>, %arg2: memref<160x256xf32, #tpu.memory_space<vmem>>, %arg3: memref<4x256x64xf32, #tpu.memory_space<vmem>>, %arg4: memref<4x1x64xf32, #tpu.memory_space<vmem>>, %arg5: memref<4x324x40xf32, #tpu.memory_space<vmem>>, %arg6: memref<1x324x256xbf16, #tpu.memory_space<vmem>>) attributes {dimension_semantics = [#tpu.dimension_semantics<parallel>], iteration_bounds = array<i64: 2>, scalar_prefetch = 0 : i64, scratch_operands = 0 : i64, tpu.core_type = #tpu.core_type<tc>, window_params = [{transform_indices = @transform_0, window_bounds = array<i64: 1, 256, 256>}, {pipeline_mode = #tpu.pipeline_mode<synchronous>, transform_indices = @transform_1, window_bounds = array<i64: 160, 256>}, {pipeline_mode = #tpu.pipeline_mode<synchronous>, transform_indices = @transform_2, window_bounds = array<i64: 4, 256, 64>}, {pipeline_mode = #tpu.pipeline_mode<synchronous>, transform_indices = @transform_3, window_bounds = array<i64: 4, 1, 64>}, {pipeline_mode = #tpu.pipeline_mode<synchronous>, transform_indices = @transform_4, window_bounds = array<i64: 4, 324, 40>}, {transform_indices = @transform_5, window_bounds = array<i64: 1, 324, 256>}]} {
    %c0 = arith.constant 0 : index
    %c0_0 = arith.constant 0 : index
    %c0_1 = arith.constant 0 : index
    %0 = vector.load %arg1[%c0, %c0_0, %c0_1] : memref<1x256x256xbf16, #tpu.memory_space<vmem>>, vector<1x256x256xbf16>
    %1 = vector.shape_cast %0 : vector<1x256x256xbf16> to vector<256x256xbf16>
    %2 = arith.extf %1 : vector<256x256xbf16> to vector<256x256xf32>
    %c0_2 = arith.constant 0 : index
    %c0_3 = arith.constant 0 : index
    %3 = vector.load %arg2[%c0_2, %c0_3] : memref<160x256xf32, #tpu.memory_space<vmem>>, vector<160x256xf32>
    %cst = arith.constant dense<0.000000e+00> : vector<160x256xf32>
    %4 = tpu.matmul %3, %2, %cst {dimension_numbers = #tpu.dot_dimension_numbers<[1], [0], [0], [1], [0, 0, 1, 1], [], []>} : vector<160x256xf32>, vector<256x256xf32>, vector<160x256xf32> -> vector<160x256xf32>
    %5 = vector.extract_strided_slice %4 {offsets = [0, 0], sizes = [40, 256], strides = [1, 1]} : vector<160x256xf32> to vector<40x256xf32>
    %c0_4 = arith.constant 0 : index
    %c0_5 = arith.constant 0 : index
    %c0_6 = arith.constant 0 : index
    %6 = vector.load %arg3[%c0_4, %c0_5, %c0_6] : memref<4x256x64xf32, #tpu.memory_space<vmem>>, vector<1x256x64xf32>
    %7 = vector.shape_cast %6 : vector<1x256x64xf32> to vector<256x64xf32>
    %cst_7 = arith.constant dense<0.000000e+00> : vector<40x64xf32>
    %8 = tpu.matmul %5, %7, %cst_7 {dimension_numbers = #tpu.dot_dimension_numbers<[1], [0], [0], [1], [0, 0, 1, 1], [], []>} : vector<40x256xf32>, vector<256x64xf32>, vector<40x64xf32> -> vector<40x64xf32>
    %c0_8 = arith.constant 0 : index
    %c0_9 = arith.constant 0 : index
    %c0_10 = arith.constant 0 : index
    %9 = vector.load %arg4[%c0_8, %c0_9, %c0_10] : memref<4x1x64xf32, #tpu.memory_space<vmem>>, vector<1x1x64xf32>
    %10 = vector.shape_cast %9 : vector<1x1x64xf32> to vector<1x64xf32>
    %11 = vector.broadcast %10 : vector<1x64xf32> to vector<40x64xf32>
    %12 = arith.addf %8, %11 : vector<40x64xf32>
    %cst_11 = arith.constant 0.000000e+00 : f32
    %13 = vector.broadcast %cst_11 : f32 to vector<40x64xf32>
    %14 = arith.maximumf %12, %13 : vector<40x64xf32>
    %c0_12 = arith.constant 0 : index
    %c0_13 = arith.constant 0 : index
    %c0_14 = arith.constant 0 : index
    %15 = vector.load %arg5[%c0_12, %c0_13, %c0_14] : memref<4x324x40xf32, #tpu.memory_space<vmem>>, vector<1x324x40xf32>
    %16 = vector.shape_cast %15 : vector<1x324x40xf32> to vector<324x40xf32>
    %cst_15 = arith.constant dense<0.000000e+00> : vector<324x64xf32>
    %17 = tpu.matmul %16, %14, %cst_15 {dimension_numbers = #tpu.dot_dimension_numbers<[1], [0], [0], [1], [0, 0, 1, 1], [], []>} : vector<324x40xf32>, vector<40x64xf32>, vector<324x64xf32> -> vector<324x64xf32>
    %18 = vector.extract_strided_slice %4 {offsets = [40, 0], sizes = [40, 256], strides = [1, 1]} : vector<160x256xf32> to vector<40x256xf32>
    %c1 = arith.constant 1 : index
    %c0_16 = arith.constant 0 : index
    %c0_17 = arith.constant 0 : index
    %19 = vector.load %arg3[%c1, %c0_16, %c0_17] : memref<4x256x64xf32, #tpu.memory_space<vmem>>, vector<1x256x64xf32>
    %20 = vector.shape_cast %19 : vector<1x256x64xf32> to vector<256x64xf32>
    %cst_18 = arith.constant dense<0.000000e+00> : vector<40x64xf32>
    %21 = tpu.matmul %18, %20, %cst_18 {dimension_numbers = #tpu.dot_dimension_numbers<[1], [0], [0], [1], [0, 0, 1, 1], [], []>} : vector<40x256xf32>, vector<256x64xf32>, vector<40x64xf32> -> vector<40x64xf32>
    %c1_19 = arith.constant 1 : index
    %c0_20 = arith.constant 0 : index
    %c0_21 = arith.constant 0 : index
    %22 = vector.load %arg4[%c1_19, %c0_20, %c0_21] : memref<4x1x64xf32, #tpu.memory_space<vmem>>, vector<1x1x64xf32>
    %23 = vector.shape_cast %22 : vector<1x1x64xf32> to vector<1x64xf32>
    %24 = vector.broadcast %23 : vector<1x64xf32> to vector<40x64xf32>
    %25 = arith.addf %21, %24 : vector<40x64xf32>
    %cst_22 = arith.constant 0.000000e+00 : f32
    %26 = vector.broadcast %cst_22 : f32 to vector<40x64xf32>
    %27 = arith.maximumf %25, %26 : vector<40x64xf32>
    %c1_23 = arith.constant 1 : index
    %c0_24 = arith.constant 0 : index
    %c0_25 = arith.constant 0 : index
    %28 = vector.load %arg5[%c1_23, %c0_24, %c0_25] : memref<4x324x40xf32, #tpu.memory_space<vmem>>, vector<1x324x40xf32>
    %29 = vector.shape_cast %28 : vector<1x324x40xf32> to vector<324x40xf32>
    %cst_26 = arith.constant dense<0.000000e+00> : vector<324x64xf32>
    %30 = tpu.matmul %29, %27, %cst_26 {dimension_numbers = #tpu.dot_dimension_numbers<[1], [0], [0], [1], [0, 0, 1, 1], [], []>} : vector<324x40xf32>, vector<40x64xf32>, vector<324x64xf32> -> vector<324x64xf32>
    %31 = vector.extract_strided_slice %4 {offsets = [80, 0], sizes = [40, 256], strides = [1, 1]} : vector<160x256xf32> to vector<40x256xf32>
    %c2 = arith.constant 2 : index
    %c0_27 = arith.constant 0 : index
    %c0_28 = arith.constant 0 : index
    %32 = vector.load %arg3[%c2, %c0_27, %c0_28] : memref<4x256x64xf32, #tpu.memory_space<vmem>>, vector<1x256x64xf32>
    %33 = vector.shape_cast %32 : vector<1x256x64xf32> to vector<256x64xf32>
    %cst_29 = arith.constant dense<0.000000e+00> : vector<40x64xf32>
    %34 = tpu.matmul %31, %33, %cst_29 {dimension_numbers = #tpu.dot_dimension_numbers<[1], [0], [0], [1], [0, 0, 1, 1], [], []>} : vector<40x256xf32>, vector<256x64xf32>, vector<40x64xf32> -> vector<40x64xf32>
    %c2_30 = arith.constant 2 : index
    %c0_31 = arith.constant 0 : index
    %c0_32 = arith.constant 0 : index
    %35 = vector.load %arg4[%c2_30, %c0_31, %c0_32] : memref<4x1x64xf32, #tpu.memory_space<vmem>>, vector<1x1x64xf32>
    %36 = vector.shape_cast %35 : vector<1x1x64xf32> to vector<1x64xf32>
    %37 = vector.broadcast %36 : vector<1x64xf32> to vector<40x64xf32>
    %38 = arith.addf %34, %37 : vector<40x64xf32>
    %cst_33 = arith.constant 0.000000e+00 : f32
    %39 = vector.broadcast %cst_33 : f32 to vector<40x64xf32>
    %40 = arith.maximumf %38, %39 : vector<40x64xf32>
    %c2_34 = arith.constant 2 : index
    %c0_35 = arith.constant 0 : index
    %c0_36 = arith.constant 0 : index
    %41 = vector.load %arg5[%c2_34, %c0_35, %c0_36] : memref<4x324x40xf32, #tpu.memory_space<vmem>>, vector<1x324x40xf32>
    %42 = vector.shape_cast %41 : vector<1x324x40xf32> to vector<324x40xf32>
    %cst_37 = arith.constant dense<0.000000e+00> : vector<324x64xf32>
    %43 = tpu.matmul %42, %40, %cst_37 {dimension_numbers = #tpu.dot_dimension_numbers<[1], [0], [0], [1], [0, 0, 1, 1], [], []>} : vector<324x40xf32>, vector<40x64xf32>, vector<324x64xf32> -> vector<324x64xf32>
    %44 = vector.extract_strided_slice %4 {offsets = [120, 0], sizes = [40, 256], strides = [1, 1]} : vector<160x256xf32> to vector<40x256xf32>
    %c3 = arith.constant 3 : index
    %c0_38 = arith.constant 0 : index
    %c0_39 = arith.constant 0 : index
    %45 = vector.load %arg3[%c3, %c0_38, %c0_39] : memref<4x256x64xf32, #tpu.memory_space<vmem>>, vector<1x256x64xf32>
    %46 = vector.shape_cast %45 : vector<1x256x64xf32> to vector<256x64xf32>
    %cst_40 = arith.constant dense<0.000000e+00> : vector<40x64xf32>
    %47 = tpu.matmul %44, %46, %cst_40 {dimension_numbers = #tpu.dot_dimension_numbers<[1], [0], [0], [1], [0, 0, 1, 1], [], []>} : vector<40x256xf32>, vector<256x64xf32>, vector<40x64xf32> -> vector<40x64xf32>
    %c3_41 = arith.constant 3 : index
    %c0_42 = arith.constant 0 : index
    %c0_43 = arith.constant 0 : index
    %48 = vector.load %arg4[%c3_41, %c0_42, %c0_43] : memref<4x1x64xf32, #tpu.memory_space<vmem>>, vector<1x1x64xf32>
    %49 = vector.shape_cast %48 : vector<1x1x64xf32> to vector<1x64xf32>
    %50 = vector.broadcast %49 : vector<1x64xf32> to vector<40x64xf32>
    %51 = arith.addf %47, %50 : vector<40x64xf32>
    %cst_44 = arith.constant 0.000000e+00 : f32
    %52 = vector.broadcast %cst_44 : f32 to vector<40x64xf32>
    %53 = arith.maximumf %51, %52 : vector<40x64xf32>
    %c3_45 = arith.constant 3 : index
    %c0_46 = arith.constant 0 : index
    %c0_47 = arith.constant 0 : index
    %54 = vector.load %arg5[%c3_45, %c0_46, %c0_47] : memref<4x324x40xf32, #tpu.memory_space<vmem>>, vector<1x324x40xf32>
    %55 = vector.shape_cast %54 : vector<1x324x40xf32> to vector<324x40xf32>
    %cst_48 = arith.constant dense<0.000000e+00> : vector<324x64xf32>
    %56 = tpu.matmul %55, %53, %cst_48 {dimension_numbers = #tpu.dot_dimension_numbers<[1], [0], [0], [1], [0, 0, 1, 1], [], []>} : vector<324x40xf32>, vector<40x64xf32>, vector<324x64xf32> -> vector<324x64xf32>
    %57 = tpu.concatenate %17, %30, %43, %56 in 1 : vector<324x64xf32>, vector<324x64xf32>, vector<324x64xf32>, vector<324x64xf32> -> vector<324x256xf32>
    %58 = arith.truncf %57 : vector<324x256xf32> to vector<324x256xbf16>
    %c0_49 = arith.constant 0 : index
    %c0_50 = arith.constant 0 : index
    %c0_51 = arith.constant 0 : index
    %59 = vector.load %arg6[%c0_49, %c0_50, %c0_51] : memref<1x324x256xbf16, #tpu.memory_space<vmem>>, vector<1x324x256xbf16>
    %60 = vector.shape_cast %59 : vector<1x324x256xbf16> to vector<324x256xbf16>
    %61 = vector.shape_cast %58 : vector<324x256xbf16> to vector<1x324x256xbf16>
    tpu.vector_store %arg6[%c0_49, %c0_50, %c0_51], %61 {strides = array<i32>} : memref<1x324x256xbf16, #tpu.memory_space<vmem>>, vector<1x324x256xbf16>,
    return
  }
  func.func @transform_0(%arg0: i32) -> (i32, i32, i32) {
    %c0_i32 = arith.constant 0 : i32
    %c0_i32_0 = arith.constant 0 : i32
    %c0_i32_1 = arith.constant 0 : i32
    return %arg0, %c0_i32, %c0_i32_0 : i32, i32, i32
  }
  func.func @transform_1(%arg0: i32) -> (i32, i32) {
    %c0_i32 = arith.constant 0 : i32
    %c0_i32_0 = arith.constant 0 : i32
    %c0_i32_1 = arith.constant 0 : i32
    return %c0_i32, %c0_i32_0 : i32, i32
  }
  func.func @transform_2(%arg0: i32) -> (i32, i32, i32) {
    %c0_i32 = arith.constant 0 : i32
    %c0_i32_0 = arith.constant 0 : i32
    %c0_i32_1 = arith.constant 0 : i32
    %c0_i32_2 = arith.constant 0 : i32
    return %c0_i32, %c0_i32_0, %c0_i32_1 : i32, i32, i32
  }
  func.func @transform_3(%arg0: i32) -> (i32, i32, i32) {
    %c0_i32 = arith.constant 0 : i32
    %c0_i32_0 = arith.constant 0 : i32
    %c0_i32_1 = arith.constant 0 : i32
    %c0_i32_2 = arith.constant 0 : i32
    return %c0_i32, %c0_i32_0, %c0_i32_1 : i32, i32, i32
  }
  func.func @transform_4(%arg0: i32) -> (i32, i32, i32) {
    %c0_i32 = arith.constant 0 : i32
    %c0_i32_0 = arith.constant 0 : i32
    %c0_i32_1 = arith.constant 0 : i32
    %c0_i32_2 = arith.constant 0 : i32
    return %c0_i32, %c0_i32_0, %c0_i32_1 : i32, i32, i32
  }
  func.func @transform_5(%arg0: i32) -> (i32, i32, i32) {
    %c0_i32 = arith.constant 0 : i32
    %c0_i32_0 = arith.constant 0 : i32
    %c0_i32_1 = arith.constant 0 : i32
    return %arg0, %c0_i32, %c0_i32_0 : i32, i32, i32
  }
}

</mosaic_0001>

<llo_original>
// kernel: tpu_custom_call.1
$region0: #{tpu_custom_call.1}
  #allocation0 [shape = 'u32[]', space=smem, size = 0x4, offset = 0x4, fixed_abs, tag = 'smem constant byte address 0x4 - core index']
  #allocation1 [shape = 'u32[144,128]{1,0:T(1,128)}', space=vmem, size = 0x12000, scoped, tag = 'internal scratch']
  %s0 = inlined_call_operand.vmem [shape: bf16[2,256,256], index: 0, kind: input, shape index: {}]
  %s1 = inlined_call_operand.vmem [shape: f32[160,256], index: 1, kind: input, shape index: {}]
  %s2 = inlined_call_operand.vmem [shape: f32[4,256,64], index: 2, kind: input, shape index: {}]
  %s3 = inlined_call_operand.vmem [shape: f32[4,1,64], index: 3, kind: input, shape index: {}]
  %s4 = inlined_call_operand.vmem [shape: f32[4,324,40], index: 4, kind: input, shape index: {}]
  %s5 = inlined_call_operand.vmem [shape: bf16[2,324,256], index: 5, kind: output, shape index: {}]
  %s6 = sld [smem:[#allocation0]]
  $region53: #{tpu_custom_call.1} parent=0
    _
  %s8 = ssub.s32 1, %s6
  %s9 = scalar_select 0, %s8, %s6
  loop: start=0, step=1, limit=4
  $region2: #{tpu_custom_call.1} parent=0 // loop_pre_header
    _
  $region3: #{tpu_custom_call.1} parent=0 // loop_header
    %s11 = sphi 0, %s15
    %p12 = scmp.ge.s32.totalorder %s11, 4
    %s21 = sphi 0, %s23
    %s24 = sphi 0, %s21
    %s25 = sphi 0, %s24
    %s41 = sphi 0, %s25
    %s45 = sphi 0, %s45
    %s47 = sphi 0, %s45
    %s48 = sphi 0, %s47
    %s62 = sphi 0, %s48
    %s66 = sphi 0, %s66
    %s68 = sphi 0, %s66
    %s69 = sphi 0, %s68
    %s83 = sphi 0, %s69
    %s87 = sphi 0, %s87
    %s89 = sphi 0, %s87
    %s90 = sphi 0, %s89
    %s104 = sphi 0, %s90
    %s108 = sphi 0, %s108
    %s110 = sphi 0, %s108
    %s111 = sphi 0, %s110
    %s125 = sphi 0, %s111
    %s131 = sphi 0, %s133
    %s134 = sphi 0, %s131
    %s135 = sphi 0, %s134
    %s151 = sphi 0, %s135
  $region4: #{tpu_custom_call.1} parent=0 // loop_header_branch
    %14 = sbr.rel (%p12) target = $region8
  $region5: #{tpu_custom_call.1} parent=0 // loop_body
    %s16 = ssub.s32 %s11, 1
    %s17 = ssub.s32 %s11, 2
    %s18 = sadd.s32 %s11, 1
    %s19 = ssub.s32 %s11, %s18
    %p20 = scmp.eq.s32.totalorder %s19, 0
    %s22 = sadd.s32 %s21, 1
    %s23 = scalar_select %p20, %s21, %s22
    %p26 = pneg %p20
    %p27 = scmp.eq.s32.totalorder %s11, 1
    %p28 = por %p26, %p27
    %p29 = scmp.ne.s32.totalorder %s21, %s24
    %p30 = scmp.eq.s32.totalorder %s11, 0
    %p31 = por %p29, %p30
    %p32 = scmp.ne.s32.totalorder %s21, %s24
    %p33 = scmp.eq.s32.totalorder %s16, 1
    %p34 = por %p32, %p33
    %p35 = scmp.ne.s32.totalorder %s24, %s25
    %p36 = scmp.eq.s32.totalorder %s16, 0
    %p37 = por %p35, %p36
    %p38 = scmp.ne.s32.totalorder %s24, %s25
    %p39 = scmp.eq.s32.totalorder %s17, 1
    %p40 = por %p38, %p39
    %p42 = scmp.ne.s32.totalorder %s25, %s41
    %p43 = scmp.eq.s32.totalorder %s17, 0
    %p44 = por %p42, %p43
    %s46 = sadd.s32 %s45, 1
    %p49 = scmp.eq.s32.totalorder %s11, 1
    %p50 = scmp.ne.s32.totalorder %s45, %s47
    %p51 = scmp.eq.s32.totalorder %s11, 0
    %p52 = por %p50, %p51
    %p53 = scmp.ne.s32.totalorder %s45, %s47
    %p54 = scmp.eq.s32.totalorder %s16, 1
    %p55 = por %p53, %p54
    %p56 = scmp.ne.s32.totalorder %s47, %s48
    %p57 = scmp.eq.s32.totalorder %s16, 0
    %p58 = por %p56, %p57
    %p59 = scmp.ne.s32.totalorder %s47, %s48
    %p60 = scmp.eq.s32.totalorder %s17, 1
    %p61 = por %p59, %p60
    %p63 = scmp.ne.s32.totalorder %s48, %s62
    %p64 = scmp.eq.s32.totalorder %s17, 0
    %p65 = por %p63, %p64
    %s67 = sadd.s32 %s66, 1
    %p70 = scmp.eq.s32.totalorder %s11, 1
    %p71 = scmp.ne.s32.totalorder %s66, %s68
    %p72 = scmp.eq.s32.totalorder %s11, 0
    %p73 = por %p71, %p72
    %p74 = scmp.ne.s32.totalorder %s66, %s68
    %p75 = scmp.eq.s32.totalorder %s16, 1
    %p76 = por %p74, %p75
    %p77 = scmp.ne.s32.totalorder %s68, %s69
    %p78 = scmp.eq.s32.totalorder %s16, 0
    %p79 = por %p77, %p78
    %p80 = scmp.ne.s32.totalorder %s68, %s69
    %p81 = scmp.eq.s32.totalorder %s17, 1
    %p82 = por %p80, %p81
    %p84 = scmp.ne.s32.totalorder %s69, %s83
    %p85 = scmp.eq.s32.totalorder %s17, 0
    %p86 = por %p84, %p85
    %s88 = sadd.s32 %s87, 1
    %p91 = scmp.eq.s32.totalorder %s11, 1
    %p92 = scmp.ne.s32.totalorder %s87, %s89
    %p93 = scmp.eq.s32.totalorder %s11, 0
    %p94 = por %p92, %p93
    %p95 = scmp.ne.s32.totalorder %s87, %s89
    %p96 = scmp.eq.s32.totalorder %s16, 1
    %p97 = por %p95, %p96
    %p98 = scmp.ne.s32.totalorder %s89, %s90
    %p99 = scmp.eq.s32.totalorder %s16, 0
    %p100 = por %p98, %p99
    %p101 = scmp.ne.s32.totalorder %s89, %s90
    %p102 = scmp.eq.s32.totalorder %s17, 1
    %p103 = por %p101, %p102
    %p105 = scmp.ne.s32.totalorder %s90, %s104
    %p106 = scmp.eq.s32.totalorder %s17, 0
    %p107 = por %p105, %p106
    %s109 = sadd.s32 %s108, 1
    %p112 = scmp.eq.s32.totalorder %s11, 1
    %p113 = scmp.ne.s32.totalorder %s108, %s110
    %p114 = scmp.eq.s32.totalorder %s11, 0
    %p115 = por %p113, %p114
    %p116 = scmp.ne.s32.totalorder %s108, %s110
    %p117 = scmp.eq.s32.totalorder %s16, 1
    %p118 = por %p116, %p117
    %p119 = scmp.ne.s32.totalorder %s110, %s111
    %p120 = scmp.eq.s32.totalorder %s16, 0
    %p121 = por %p119, %p120
    %p122 = scmp.ne.s32.totalorder %s110, %s111
    %p123 = scmp.eq.s32.totalorder %s17, 1
    %p124 = por %p122, %p123
    %p126 = scmp.ne.s32.totalorder %s111, %s125
    %p127 = scmp.eq.s32.totalorder %s17, 0
    %p128 = por %p126, %p127
    %s129 = ssub.s32 %s11, %s18
    %p130 = scmp.eq.s32.totalorder %s129, 0
    %s132 = sadd.s32 %s131, 1
    %s133 = scalar_select %p130, %s131, %s132
    %p136 = pneg %p130
    %p137 = scmp.eq.s32.totalorder %s11, 1
    %p138 = por %p136, %p137
    %p139 = scmp.ne.s32.totalorder %s131, %s134
    %p140 = scmp.eq.s32.totalorder %s11, 0
    %p141 = por %p139, %p140
    %p142 = scmp.ne.s32.totalorder %s131, %s134
    %p143 = scmp.eq.s32.totalorder %s16, 1
    %p144 = por %p142, %p143
    %p145 = scmp.ne.s32.totalorder %s134, %s135
    %p146 = scmp.eq.s32.totalorder %s16, 0
    %p147 = por %p145, %p146
    %p148 = scmp.ne.s32.totalorder %s134, %s135
    %p149 = scmp.eq.s32.totalorder %s17, 1
    %p150 = por %p148, %p149
    %p152 = scmp.ne.s32.totalorder %s135, %s151
    %p153 = scmp.eq.s32.totalorder %s17, 0
    %p154 = por %p152, %p153
    %p155 = scmp.le.s32.totalorder 1, %s11
    %p156 = scmp.lt.s32.totalorder %s11, 3
    %p157 = pnand %p155, %p156
    %p158 = pneg %p157
    // Predicated region
    $region9: #{tpu_custom_call.1} parent=5 // pred_check
      _
    $region10: #{tpu_custom_call.1} parent=5 // pred_check_branch
      %160 = sbr.rel (%p157) target = $region12
    $region11: #{tpu_custom_call.1} parent=5 // pred_region
      %s161 = ssub.s32 %s11, 1
      // Predicated region
      $region13: #{tpu_custom_call.1} parent=11 // pred_check
        %p162 = pneg %p58
      $region14: #{tpu_custom_call.1} parent=11 // pred_check_branch
        %164 = sbr.rel (%p162) target = $region16
      $region15: #{tpu_custom_call.1} parent=11 // pred_region
        _
      $region16: #{tpu_custom_call.1} parent=11 // pred_fallthru
        _
      // Predicated region
      $region17: #{tpu_custom_call.1} parent=11 // pred_check
        %p165 = pneg %p79
      $region18: #{tpu_custom_call.1} parent=11 // pred_check_branch
        %167 = sbr.rel (%p165) target = $region20
      $region19: #{tpu_custom_call.1} parent=11 // pred_region
        _
      $region20: #{tpu_custom_call.1} parent=11 // pred_fallthru
        _
      // Predicated region
      $region21: #{tpu_custom_call.1} parent=11 // pred_check
        %p168 = pneg %p100
      $region22: #{tpu_custom_call.1} parent=11 // pred_check_branch
        %170 = sbr.rel (%p168) target = $region24
      $region23: #{tpu_custom_call.1} parent=11 // pred_region
        _
      $region24: #{tpu_custom_call.1} parent=11 // pred_fallthru
        _
      // Predicated region
      $region25: #{tpu_custom_call.1} parent=11 // pred_check
        %p171 = pneg %p121
      $region26: #{tpu_custom_call.1} parent=11 // pred_check_branch
        %173 = sbr.rel (%p171) target = $region28
      $region27: #{tpu_custom_call.1} parent=11 // pred_region
        _
      $region28: #{tpu_custom_call.1} parent=11 // pred_fallthru
        _
    $region12: #{tpu_custom_call.1} parent=5 // pred_fallthru
      _
    %p174 = scmp.lt.s32.totalorder %s11, 2
    // Predicated region
    $region29: #{tpu_custom_call.1} parent=5 // pred_check
      %p175 = pneg %p174
    $region30: #{tpu_custom_call.1} parent=5 // pred_check_branch
      %177 = sbr.rel (%p175) target = $region32
    $region31: #{tpu_custom_call.1} parent=5 // pred_region
      // Predicated region
      $region33: #{tpu_custom_call.1} parent=31 // pred_check
        %p178 = pneg %p31
      $region34: #{tpu_custom_call.1} parent=31 // pred_check_branch
        %180 = sbr.rel (%p178) target = $region36
      $region35: #{tpu_custom_call.1} parent=31 // pred_region
        %p181 = scmp.lt.s32.totalorder %s11, 1
        %s182 = scalar_select %p181, %s11, 1
        %s183 = smul.addr %s182, 64
        %s184 = smul.addr %s183, 4
        %s185 = scalar_lea.vmem %s0, %s184
      $region36: #{tpu_custom_call.1} parent=31 // pred_fallthru
        _
    $region32: #{tpu_custom_call.1} parent=5 // pred_fallthru
      _
    %p186 = scmp.le.s32.totalorder 1, %s11
    %p187 = scmp.lt.s32.totalorder %s11, 3
    %p188 = pnand %p186, %p187
    %p189 = pneg %p188
    // Predicated region
    $region37: #{tpu_custom_call.1} parent=5 // pred_check
      _
    $region38: #{tpu_custom_call.1} parent=5 // pred_check_branch
      %191 = sbr.rel (%p188) target = $region40
    $region39: #{tpu_custom_call.1} parent=5 // pred_region
      %s192 = ssub.s32 %s11, 1
      %p193 = scmp.lt.s32.totalorder %s16, 1
      %s194 = scalar_select %p193, %s16, 1
      %s195 = smul.addr %s194, 64
      %s196 = smul.addr %s195, 4
      %s197 = scalar_lea.vmem %s0, %s196
      %p198 = pneg %p37
      %p199 = pneg %p34
      %p200 = pneg %p58
      %p201 = pneg %p55
      %p202 = pneg %p79
      %p203 = pneg %p76
      %p204 = pneg %p100
      %p205 = pneg %p97
      %p206 = pneg %p121
      %p207 = pneg %p118
      %p208 = pneg %p147
      %p209 = pneg %p144
      %p210 = scmp.lt.s32.totalorder %s16, 1
      %s211 = scalar_select %p210, %s16, 1
      %s212 = smul.addr %s211, 82
      %s213 = smul.addr %s212, 4
      %s214 = scalar_lea.vmem %s5, %s213
      %p215 = scmp.lt.s32.totalorder %s16, 1
      %s216 = scalar_select %p215, %s16, 1
      %s217 = smul.addr %s216, 64
      %s218 = smul.addr %s217, 4
      %s219 = scalar_lea.vmem %s0, %s218
      %p220 = scmp.lt.s32.totalorder %s16, 1
      %s221 = scalar_select %p220, %s16, 1
      %s222 = smul.addr %s221, 82
      %s223 = smul.addr %s222, 4
      %s224 = scalar_lea.vmem %s5, %s223
      %v225 = vld [vmem:[%s219] sm:$0xff]
      %v226 = vld [vmem:[%s219 + $0x8] sm:$0xff]
      %v227 = vld [vmem:[%s219 + $0x10] sm:$0xff]
      %v228 = vld [vmem:[%s219 + $0x18] sm:$0xff]
      %v229 = vld [vmem:[%s219 + $0x20] sm:$0xff]
      %v230 = vld [vmem:[%s219 + $0x28] sm:$0xff]
      %v231 = vld [vmem:[%s219 + $0x30] sm:$0xff]
      %v232 = vld [vmem:[%s219 + $0x38] sm:$0xff]
      %v233 = vld [vmem:[%s219 + $0x40] sm:$0xff]
      %v234 = vld [vmem:[%s219 + $0x48] sm:$0xff]
      %v235 = vld [vmem:[%s219 + $0x50] sm:$0xff]
      %v236 = vld [vmem:[%s219 + $0x58] sm:$0xff]
      %v237 = vld [vmem:[%s219 + $0x60] sm:$0xff]
      %v238 = vld [vmem:[%s219 + $0x68] sm:$0xff]
      %v239 = vld [vmem:[%s219 + $0x70] sm:$0xff]
      %v240 = vld [vmem:[%s219 + $0x78] sm:$0xff]
      %v241 = vld [vmem:[%s219 + $0x80] sm:$0xff]
      %v242 = vld [vmem:[%s219 + $0x88] sm:$0xff]
      %v243 = vld [vmem:[%s219 + $0x90] sm:$0xff]
      %v244 = vld [vmem:[%s219 + $0x98] sm:$0xff]
      %v245 = vld [vmem:[%s219 + $0xa0] sm:$0xff]
      %v246 = vld [vmem:[%s219 + $0xa8] sm:$0xff]
      %v247 = vld [vmem:[%s219 + $0xb0] sm:$0xff]
      %v248 = vld [vmem:[%s219 + $0xb8] sm:$0xff]
      %v249 = vld [vmem:[%s219 + $0xc0] sm:$0xff]
      %v250 = vld [vmem:[%s219 + $0xc8] sm:$0xff]
      %v251 = vld [vmem:[%s219 + $0xd0] sm:$0xff]
      %v252 = vld [vmem:[%s219 + $0xd8] sm:$0xff]
      %v253 = vld [vmem:[%s219 + $0xe0] sm:$0xff]
      %v254 = vld [vmem:[%s219 + $0xe8] sm:$0xff]
      %v255 = vld [vmem:[%s219 + $0xf0] sm:$0xff]
      %v256 = vld [vmem:[%s219 + $0xf8] sm:$0xff]
      %v257 = vunpack.c.l.bf16 %v225
      %v258 = vunpack.c.h.bf16 %v225
      %v259 = vunpack.c.l.bf16 %v226
      %v260 = vunpack.c.h.bf16 %v226
      %v261 = vunpack.c.l.bf16 %v227
      %v262 = vunpack.c.h.bf16 %v227
      %v263 = vunpack.c.l.bf16 %v228
      %v264 = vunpack.c.h.bf16 %v228
      %v265 = vunpack.c.l.bf16 %v229
      %v266 = vunpack.c.h.bf16 %v229
      %v267 = vunpack.c.l.bf16 %v230
      %v268 = vunpack.c.h.bf16 %v230
      %v269 = vunpack.c.l.bf16 %v231
      %v270 = vunpack.c.h.bf16 %v231
      %v271 = vunpack.c.l.bf16 %v232
      %v272 = vunpack.c.h.bf16 %v232
      %v273 = vunpack.c.l.bf16 %v233
      %v274 = vunpack.c.h.bf16 %v233
      %v275 = vunpack.c.l.bf16 %v234
      %v276 = vunpack.c.h.bf16 %v234
      %v277 = vunpack.c.l.bf16 %v235
      %v278 = vunpack.c.h.bf16 %v235
      %v279 = vunpack.c.l.bf16 %v236
      %v280 = vunpack.c.h.bf16 %v236
      %v281 = vunpack.c.l.bf16 %v237
      %v282 = vunpack.c.h.bf16 %v237
      %v283 = vunpack.c.l.bf16 %v238
      %v284 = vunpack.c.h.bf16 %v238
      %v285 = vunpack.c.l.bf16 %v239
      %v286 = vunpack.c.h.bf16 %v239
      %v287 = vunpack.c.l.bf16 %v240
      %v288 = vunpack.c.h.bf16 %v240
      %v289 = vunpack.c.l.bf16 %v241
      %v290 = vunpack.c.h.bf16 %v241
      %v291 = vunpack.c.l.bf16 %v242
      %v292 = vunpack.c.h.bf16 %v242
      %v293 = vunpack.c.l.bf16 %v243
      %v294 = vunpack.c.h.bf16 %v243
      %v295 = vunpack.c.l.bf16 %v244
      %v296 = vunpack.c.h.bf16 %v244
      %v297 = vunpack.c.l.bf16 %v245
      %v298 = vunpack.c.h.bf16 %v245
      %v299 = vunpack.c.l.bf16 %v246
      %v300 = vunpack.c.h.bf16 %v246
      %v301 = vunpack.c.l.bf16 %v247
      %v302 = vunpack.c.h.bf16 %v247
      %v303 = vunpack.c.l.bf16 %v248
      %v304 = vunpack.c.h.bf16 %v248
      %v305 = vunpack.c.l.bf16 %v249
      %v306 = vunpack.c.h.bf16 %v249
      %v307 = vunpack.c.l.bf16 %v250
      %v308 = vunpack.c.h.bf16 %v250
      %v309 = vunpack.c.l.bf16 %v251
      %v310 = vunpack.c.h.bf16 %v251
      %v311 = vunpack.c.l.bf16 %v252
      %v312 = vunpack.c.h.bf16 %v252
      %v313 = vunpack.c.l.bf16 %v253
      %v314 = vunpack.c.h.bf16 %v253
      %v315 = vunpack.c.l.bf16 %v254
      %v316 = vunpack.c.h.bf16 %v254
      %v317 = vunpack.c.l.bf16 %v255
      %v318 = vunpack.c.h.bf16 %v255
      %v319 = vunpack.c.l.bf16 %v256
      %v320 = vunpack.c.h.bf16 %v256
      %v321 = vld [vmem:[%s1] sm:$0xff]
      %v322 = vld [vmem:[%s1 + $0x8] sm:$0xff]
      %v323 = vld [vmem:[%s1 + $0x10] sm:$0xff]
      %v324 = vld [vmem:[%s1 + $0x18] sm:$0xff]
      %v325 = vld [vmem:[%s1 + $0x20] sm:$0xff]
      %v326 = vld [vmem:[%s1 + $0x28] sm:$0xff]
      %v327 = vld [vmem:[%s1 + $0x30] sm:$0xff]
      %v328 = vld [vmem:[%s1 + $0x38] sm:$0xff]
      %v329 = vld [vmem:[%s1 + $0x40] sm:$0xff]
      %v330 = vld [vmem:[%s1 + $0x48] sm:$0xff]
      %v331 = vld [vmem:[%s1 + $0x50] sm:$0xff]
      %v332 = vld [vmem:[%s1 + $0x58] sm:$0xff]
      %v333 = vld [vmem:[%s1 + $0x60] sm:$0xff]
      %v334 = vld [vmem:[%s1 + $0x68] sm:$0xff]
      %v335 = vld [vmem:[%s1 + $0x70] sm:$0xff]
      %v336 = vld [vmem:[%s1 + $0x78] sm:$0xff]
      %v337 = vld [vmem:[%s1 + $0x80] sm:$0xff]
      %v338 = vld [vmem:[%s1 + $0x88] sm:$0xff]
      %v339 = vld [vmem:[%s1 + $0x90] sm:$0xff]
      %v340 = vld [vmem:[%s1 + $0x98] sm:$0xff]
      %v341 = vld [vmem:[%s1 + $0xa0] sm:$0xff]
      %v342 = vld [vmem:[%s1 + $0xa8] sm:$0xff]
      %v343 = vld [vmem:[%s1 + $0xb0] sm:$0xff]
      %v344 = vld [vmem:[%s1 + $0xb8] sm:$0xff]
      %v345 = vld [vmem:[%s1 + $0xc0] sm:$0xff]
      %v346 = vld [vmem:[%s1 + $0xc8] sm:$0xff]
      %v347 = vld [vmem:[%s1 + $0xd0] sm:$0xff]
      %v348 = vld [vmem:[%s1 + $0xd8] sm:$0xff]
      %v349 = vld [vmem:[%s1 + $0xe0] sm:$0xff]
      %v350 = vld [vmem:[%s1 + $0xe8] sm:$0xff]
      %v351 = vld [vmem:[%s1 + $0xf0] sm:$0xff]
      %v352 = vld [vmem:[%s1 + $0xf8] sm:$0xff]
      %v353 = vld [vmem:[%s1 + $0x100] sm:$0xff]
      %v354 = vld [vmem:[%s1 + $0x108] sm:$0xff]
      %v355 = vld [vmem:[%s1 + $0x110] sm:$0xff]
      %v356 = vld [vmem:[%s1 + $0x118] sm:$0xff]
      %v357 = vld [vmem:[%s1 + $0x120] sm:$0xff]
      %v358 = vld [vmem:[%s1 + $0x128] sm:$0xff]
      %v359 = vld [vmem:[%s1 + $0x130] sm:$0xff]
      %v360 = vld [vmem:[%s1 + $0x138] sm:$0xff]
      %361 = vmatprep.subr.mxu0 %v258
      %362 = vmatpush1.msra.mxu0 %v257
      %363 = vmatprep.subr.mxu0 %v260
      %364 = vmatpush1.msra.mxu0 %v259
      %365 = vmatprep.subr.mxu0 %v262
      %366 = vmatpush1.msra.mxu0 %v261
      %367 = vmatprep.subr.mxu0 %v264
      %368 = vmatpush1.msra.mxu0 %v263
      %369 = vmatprep.subr.mxu0 %v266
      %370 = vmatpush1.msra.mxu0 %v265
      %371 = vmatprep.subr.mxu0 %v268
      %372 = vmatpush1.msra.mxu0 %v267
      %373 = vmatprep.subr.mxu0 %v270
      %374 = vmatpush1.msra.mxu0 %v269
      %375 = vmatprep.subr.mxu0 %v272
      %376 = vmatpush1.msra.mxu0 %v271
      %377 = vmatprep.subr.mxu0 %v274
      %378 = vmatpush1.msra.mxu0 %v273
      %379 = vmatprep.subr.mxu0 %v276
      %380 = vmatpush1.msra.mxu0 %v275
      %381 = vmatprep.subr.mxu0 %v278
      %382 = vmatpush1.msra.mxu0 %v277
      %383 = vmatprep.subr.mxu0 %v280
      %384 = vmatpush1.msra.mxu0 %v279
      %385 = vmatprep.subr.mxu0 %v282
      %386 = vmatpush1.msra.mxu0 %v281
      %387 = vmatprep.subr.mxu0 %v284
      %388 = vmatpush1.msra.mxu0 %v283
      %389 = vmatprep.subr.mxu0 %v286
      %390 = vmatpush1.msra.mxu0 %v285
      %391 = vmatprep.subr.mxu0 %v288
      %392 = vmatpush1.msra.mxu0 %v287
      %393 = vmatprep.subr.mxu0 %v290
      %394 = vmatpush1.msra.mxu0 %v289
      %395 = vmatprep.subr.mxu0 %v292
      %396 = vmatpush1.msra.mxu0 %v291
      %397 = vmatprep.subr.mxu0 %v294
      %398 = vmatpush1.msra.mxu0 %v293
      %399 = vmatprep.subr.mxu0 %v296
      %400 = vmatpush1.msra.mxu0 %v295
      %401 = vmatprep.subr.mxu0 %v298
      %402 = vmatpush1.msra.mxu0 %v297
      %403 = vmatprep.subr.mxu0 %v300
      %404 = vmatpush1.msra.mxu0 %v299
      %405 = vmatprep.subr.mxu0 %v302
      %406 = vmatpush1.msra.mxu0 %v301
      %407 = vmatprep.subr.mxu0 %v304
      %408 = vmatpush1.msra.mxu0 %v303
      %409 = vmatprep.subr.mxu0 %v306
      %410 = vmatpush1.msra.mxu0 %v305
      %411 = vmatprep.subr.mxu0 %v308
      %412 = vmatpush1.msra.mxu0 %v307
      %413 = vmatprep.subr.mxu0 %v310
      %414 = vmatpush1.msra.mxu0 %v309
      %415 = vmatprep.subr.mxu0 %v312
      %416 = vmatpush1.msra.mxu0 %v311
      %417 = vmatprep.subr.mxu0 %v314
      %418 = vmatpush1.msra.mxu0 %v313
      %419 = vmatprep.subr.mxu0 %v316
      %420 = vmatpush1.msra.mxu0 %v315
      %421 = vmatprep.subr.mxu0 %v318
      %422 = vmatpush1.msra.mxu0 %v317
      %423 = vmatprep.subr.mxu0 %v320
      %424 = vmatpush1.msra.mxu0 %v319
      %425 = vmatprep.mubr.f32.mxu0 %v322
      %426 = vmatmul.mubr.f32.gmra.mrb[0].mxu0 %v321
      %v427 = vpop.f32.mrb[0].mxu0
      %v428 = vadd.f32 0.0, %v427
      %v429 = vpop.f32.mrb[0].mxu0
      %v430 = vadd.f32 0.0, %v429
      %431 = vmatprep.mubr.f32.mxu0 %v324
      %432 = vmatmul.mubr.f32.gmra.mrb[0].mxu0 %v323
      %v433 = vpop.f32.mrb[0].mxu0
      %v434 = vadd.f32 0.0, %v433
      %v435 = vpop.f32.mrb[0].mxu0
      %v436 = vadd.f32 0.0, %v435
      %437 = vmatprep.mubr.f32.mxu0 %v326
      %438 = vmatmul.mubr.f32.gmra.mrb[0].mxu0 %v325
      %v439 = vpop.f32.mrb[0].mxu0
      %v440 = vadd.f32 0.0, %v439
      %v441 = vpop.f32.mrb[0].mxu0
      %v442 = vadd.f32 0.0, %v441
      %443 = vmatprep.mubr.f32.mxu0 %v328
      %444 = vmatmul.mubr.f32.gmra.mrb[0].mxu0 %v327
      %v445 = vpop.f32.mrb[0].mxu0
      %v446 = vadd.f32 0.0, %v445
      %v447 = vpop.f32.mrb[0].mxu0
      %v448 = vadd.f32 0.0, %v447
      %449 = vmatprep.mubr.f32.mxu0 %v330
      %450 = vmatmul.mubr.f32.gmra.mrb[0].mxu0 %v329
      %v451 = vpop.f32.mrb[0].mxu0
      %v452 = vadd.f32 0.0, %v451
      %v453 = vpop.f32.mrb[0].mxu0
      %v454 = vadd.f32 0.0, %v453
      %455 = vmatprep.mubr.f32.mxu0 %v332
      %456 = vmatmul.mubr.f32.gmra.mrb[0].mxu0 %v331
      %v457 = vpop.f32.mrb[0].mxu0
      %v458 = vadd.f32 0.0, %v457
      %v459 = vpop.f32.mrb[0].mxu0
      %v460 = vadd.f32 0.0, %v459
      %461 = vmatprep.mubr.f32.mxu0 %v334
      %462 = vmatmul.mubr.f32.gmra.mrb[0].mxu0 %v333
      %v463 = vpop.f32.mrb[0].mxu0
      %v464 = vadd.f32 0.0, %v463
      %v465 = vpop.f32.mrb[0].mxu0
      %v466 = vadd.f32 0.0, %v465
      %467 = vmatprep.mubr.f32.mxu0 %v336
      %468 = vmatmul.mubr.f32.gmra.mrb[0].mxu0 %v335
      %v469 = vpop.f32.mrb[0].mxu0
      %v470 = vadd.f32 0.0, %v469
      %v471 = vpop.f32.mrb[0].mxu0
      %v472 = vadd.f32 0.0, %v471
      %473 = vmatprep.mubr.f32.mxu0 %v338
      %474 = vmatmul.mubr.f32.gmra.mrb[0].mxu0 %v337
      %v475 = vpop.f32.mrb[0].mxu0
      %v476 = vadd.f32 0.0, %v475
      %v477 = vpop.f32.mrb[0].mxu0
      %v478 = vadd.f32 0.0, %v477
      %479 = vmatprep.mubr.f32.mxu0 %v340
      %480 = vmatmul.mubr.f32.gmra.mrb[0].mxu0 %v339
      %v481 = vpop.f32.mrb[0].mxu0
      %v482 = vadd.f32 0.0, %v481
      %v483 = vpop.f32.mrb[0].mxu0
      %v484 = vadd.f32 0.0, %v483
      %485 = vmatprep.mubr.f32.mxu0 %v342
      %486 = vmatmul.mubr.f32.gmra.mrb[0].mxu0 %v341
      %v487 = vpop.f32.mrb[0].mxu0
      %v488 = vadd.f32 0.0, %v487
      %v489 = vpop.f32.mrb[0].mxu0
      %v490 = vadd.f32 0.0, %v489
      %491 = vmatprep.mubr.f32.mxu0 %v344
      %492 = vmatmul.mubr.f32.gmra.mrb[0].mxu0 %v343
      %v493 = vpop.f32.mrb[0].mxu0
      %v494 = vadd.f32 0.0, %v493
      %v495 = vpop.f32.mrb[0].mxu0
      %v496 = vadd.f32 0.0, %v495
      %497 = vmatprep.mubr.f32.mxu0 %v346
      %498 = vmatmul.mubr.f32.gmra.mrb[0].mxu0 %v345
      %v499 = vpop.f32.mrb[0].mxu0
      %v500 = vadd.f32 0.0, %v499
      %v501 = vpop.f32.mrb[0].mxu0
      %v502 = vadd.f32 0.0, %v501
      %503 = vmatprep.mubr.f32.mxu0 %v348
      %504 = vmatmul.mubr.f32.gmra.mrb[0].mxu0 %v347
      %v505 = vpop.f32.mrb[0].mxu0
      %v506 = vadd.f32 0.0, %v505
      %v507 = vpop.f32.mrb[0].mxu0
      %v508 = vadd.f32 0.0, %v507
      %509 = vmatprep.mubr.f32.mxu0 %v350
      %510 = vmatmul.mubr.f32.gmra.mrb[0].mxu0 %v349
      %v511 = vpop.f32.mrb[0].mxu0
      %v512 = vadd.f32 0.0, %v511
      %v513 = vpop.f32.mrb[0].mxu0
      %v514 = vadd.f32 0.0, %v513
      %515 = vmatprep.mubr.f32.mxu0 %v352
      %516 = vmatmul.mubr.f32.gmra.mrb[0].mxu0 %v351
      %v517 = vpop.f32.mrb[0].mxu0
      %v518 = vadd.f32 0.0, %v517
      %v519 = vpop.f32.mrb[0].mxu0
      %v520 = vadd.f32 0.0, %v519
      %521 = vmatprep.mubr.f32.mxu0 %v354
      %522 = vmatmul.mubr.f32.gmra.mrb[0].mxu0 %v353
      %v523 = vpop.f32.mrb[0].mxu0
      %v524 = vadd.f32 0.0, %v523
      %v525 = vpop.f32.mrb[0].mxu0
      %v526 = vadd.f32 0.0, %v525
      %527 = vmatprep.mubr.f32.mxu0 %v356
      %528 = vmatmul.mubr.f32.gmra.mrb[0].mxu0 %v355
      %v529 = vpop.f32.mrb[0].mxu0
      %v530 = vadd.f32 0.0, %v529
      %v531 = vpop.f32.mrb[0].mxu0
      %v532 = vadd.f32 0.0, %v531
      %533 = vmatprep.mubr.f32.mxu0 %v358
      %534 = vmatmul.mubr.f32.gmra.mrb[0].mxu0 %v357
      %v535 = vpop.f32.mrb[0].mxu0
      %v536 = vadd.f32 0.0, %v535
      %v537 = vpop.f32.mrb[0].mxu0
      %v538 = vadd.f32 0.0, %v537
      %539 = vmatprep.mubr.f32.mxu0 %v360
      %540 = vmatmul.mubr.f32.gmra.mrb[0].mxu0 %v359
      %v541 = vpop.f32.mrb[0].mxu0
      %v542 = vadd.f32 0.0, %v541
      %v543 = vpop.f32.mrb[0].mxu0
      %v544 = vadd.f32 0.0, %v543
      %545 = vdwg.mxu0
      %v546 = vld [vmem:[%s2] sm:$0xff]
      %v547 = vld [vmem:[%s2 + $0x8] sm:$0xff]
      %v548 = vld [vmem:[%s2 + $0x10] sm:$0xff]
      %v549 = vld [vmem:[%s2 + $0x18] sm:$0xff]
      %v550 = vld [vmem:[%s2 + $0x20] sm:$0xff]
      %v551 = vld [vmem:[%s2 + $0x28] sm:$0xff]
      %v552 = vld [vmem:[%s2 + $0x30] sm:$0xff]
      %v553 = vld [vmem:[%s2 + $0x38] sm:$0xff]
      %v554 = vld [vmem:[%s2 + $0x40] sm:$0xff]
      %v555 = vld [vmem:[%s2 + $0x48] sm:$0xff]
      %v556 = vld [vmem:[%s2 + $0x50] sm:$0xff]
      %v557 = vld [vmem:[%s2 + $0x58] sm:$0xff]
      %v558 = vld [vmem:[%s2 + $0x60] sm:$0xff]
      %v559 = vld [vmem:[%s2 + $0x68] sm:$0xff]
      %v560 = vld [vmem:[%s2 + $0x70] sm:$0xff]
      %v561 = vld [vmem:[%s2 + $0x78] sm:$0xff]
      %v562 = vld [vmem:[%s2 + $0x80] sm:$0xff]
      %v563 = vld [vmem:[%s2 + $0x88] sm:$0xff]
      %v564 = vld [vmem:[%s2 + $0x90] sm:$0xff]
      %v565 = vld [vmem:[%s2 + $0x98] sm:$0xff]
      %v566 = vld [vmem:[%s2 + $0xa0] sm:$0xff]
      %v567 = vld [vmem:[%s2 + $0xa8] sm:$0xff]
      %v568 = vld [vmem:[%s2 + $0xb0] sm:$0xff]
      %v569 = vld [vmem:[%s2 + $0xb8] sm:$0xff]
      %v570 = vld [vmem:[%s2 + $0xc0] sm:$0xff]
      %v571 = vld [vmem:[%s2 + $0xc8] sm:$0xff]
      %v572 = vld [vmem:[%s2 + $0xd0] sm:$0xff]
      %v573 = vld [vmem:[%s2 + $0xd8] sm:$0xff]
      %v574 = vld [vmem:[%s2 + $0xe0] sm:$0xff]
      %v575 = vld [vmem:[%s2 + $0xe8] sm:$0xff]
      %v576 = vld [vmem:[%s2 + $0xf0] sm:$0xff]
      %v577 = vld [vmem:[%s2 + $0xf8] sm:$0xff]
      %v578 = vld [vmem:[%s3] sm:$0x1]
      %v580 = vlaneseq
      %v581 = vshrl.u32 %v580, 7
      %v582 = vsub.s32 0, %v581
      %v583 = vrot.slane %v578, %v582
      %585 = vmatprep.subr.mxu0 0.0
      %586 = vmatpush1.msra.mxu0 %v546
      %587 = vmatprep.subr.mxu0 0.0
      %588 = vmatpush1.msra.mxu0 %v547
      %589 = vmatprep.subr.mxu0 0.0
      %590 = vmatpush1.msra.mxu0 %v548
      %591 = vmatprep.subr.mxu0 0.0
      %592 = vmatpush1.msra.mxu0 %v549
      %593 = vmatprep.subr.mxu0 0.0
      %594 = vmatpush1.msra.mxu0 %v550
      %595 = vmatprep.subr.mxu0 0.0
      %596 = vmatpush1.msra.mxu0 %v551
      %597 = vmatprep.subr.mxu0 0.0
      %598 = vmatpush1.msra.mxu0 %v552
      %599 = vmatprep.subr.mxu0 0.0
      %600 = vmatpush1.msra.mxu0 %v553
      %601 = vmatprep.subr.mxu0 0.0
      %602 = vmatpush1.msra.mxu0 %v554
      %603 = vmatprep.subr.mxu0 0.0
      %604 = vmatpush1.msra.mxu0 %v555
      %605 = vmatprep.subr.mxu0 0.0
      %606 = vmatpush1.msra.mxu0 %v556
      %607 = vmatprep.subr.mxu0 0.0
      %608 = vmatpush1.msra.mxu0 %v557
      %609 = vmatprep.subr.mxu0 0.0
      %610 = vmatpush1.msra.mxu0 %v558
      %611 = vmatprep.subr.mxu0 0.0
      %612 = vmatpush1.msra.mxu0 %v559
      %613 = vmatprep.subr.mxu0 0.0
      %614 = vmatpush1.msra.mxu0 %v560
      %615 = vmatprep.subr.mxu0 0.0
      %616 = vmatpush1.msra.mxu0 %v561
      %617 = vmatprep.subr.mxu0 0.0
      %618 = vmatpush1.msra.mxu0 %v562
      %619 = vmatprep.subr.mxu0 0.0
      %620 = vmatpush1.msra.mxu0 %v563
      %621 = vmatprep.subr.mxu0 0.0
      %622 = vmatpush1.msra.mxu0 %v564
      %623 = vmatprep.subr.mxu0 0.0
      %624 = vmatpush1.msra.mxu0 %v565
      %625 = vmatprep.subr.mxu0 0.0
      %626 = vmatpush1.msra.mxu0 %v566
      %627 = vmatprep.subr.mxu0 0.0
      %628 = vmatpush1.msra.mxu0 %v567
      %629 = vmatprep.subr.mxu0 0.0
      %630 = vmatpush1.msra.mxu0 %v568
      %631 = vmatprep.subr.mxu0 0.0
      %632 = vmatpush1.msra.mxu0 %v569
      %633 = vmatprep.subr.mxu0 0.0
      %634 = vmatpush1.msra.mxu0 %v570
      %635 = vmatprep.subr.mxu0 0.0
      %636 = vmatpush1.msra.mxu0 %v571
      %637 = vmatprep.subr.mxu0 0.0
      %638 = vmatpush1.msra.mxu0 %v572
      %639 = vmatprep.subr.mxu0 0.0
      %640 = vmatpush1.msra.mxu0 %v573
      %641 = vmatprep.subr.mxu0 0.0
      %642 = vmatpush1.msra.mxu0 %v574
      %643 = vmatprep.subr.mxu0 0.0
      %644 = vmatpush1.msra.mxu0 %v575
      %645 = vmatprep.subr.mxu0 0.0
      %646 = vmatpush1.msra.mxu0 %v576
      %647 = vmatprep.subr.mxu0 0.0
      %648 = vmatpush1.msra.mxu0 %v577
      %649 = vmatprep.mubr.f32.mxu0 %v430
      %650 = vmatmul.mubr.f32.gmra.mrb[0].mxu0 %v428
      %v651 = vpop.f32.mrb[0].mxu0
      %v652 = vadd.f32 %v583, %v651
      %v653 = vpop.f32.mrb[0].mxu0
      %654 = vmatprep.mubr.f32.mxu0 %v436
      %655 = vmatmul.mubr.f32.gmra.mrb[0].mxu0 %v434
      %v656 = vpop.f32.mrb[0].mxu0
      %v657 = vadd.f32 %v583, %v656
      %v658 = vpop.f32.mrb[0].mxu0
      %659 = vmatprep.mubr.f32.mxu0 %v442
      %660 = vmatmul.mubr.f32.gmra.mrb[0].mxu0 %v440
      %v661 = vpop.f32.mrb[0].mxu0
      %v662 = vadd.f32 %v583, %v661
      %v663 = vpop.f32.mrb[0].mxu0
      %664 = vmatprep.mubr.f32.mxu0 %v448
      %665 = vmatmul.mubr.f32.gmra.mrb[0].mxu0 %v446
      %v666 = vpop.f32.mrb[0].mxu0
      %v667 = vadd.f32 %v583, %v666
      %v668 = vpop.f32.mrb[0].mxu0
      %669 = vmatprep.mubr.f32.mxu0 %v454
      %670 = vmatmul.mubr.f32.gmra.mrb[0].mxu0 %v452
      %v671 = vpop.f32.mrb[0].mxu0
      %v672 = vadd.f32 %v583, %v671
      %v673 = vpop.f32.mrb[0].mxu0
      %674 = vdwg.mxu0
      %v675 = vmax.f32 %v652, 0.0
      %v676 = vmax.f32 %v657, 0.0
      %v677 = vmax.f32 %v662, 0.0
      %v678 = vmax.f32 %v667, 0.0
      %v679 = vmax.f32 %v672, 0.0
      %v680 = vld [vmem:[%s4] sm:$0xff]
      %v681 = vld [vmem:[%s4 + $0x8] sm:$0xff]
      %v682 = vld [vmem:[%s4 + $0x10] sm:$0xff]
      %v683 = vld [vmem:[%s4 + $0x18] sm:$0xff]
      %v684 = vld [vmem:[%s4 + $0x20] sm:$0xff]
      %v685 = vld [vmem:[%s4 + $0x28] sm:$0xff]
      %v686 = vld [vmem:[%s4 + $0x30] sm:$0xff]
      %v687 = vld [vmem:[%s4 + $0x38] sm:$0xff]
      %v688 = vld [vmem:[%s4 + $0x40] sm:$0xff]
      %v689 = vld [vmem:[%s4 + $0x48] sm:$0xff]
      %v690 = vld [vmem:[%s4 + $0x50] sm:$0xff]
      %v691 = vld [vmem:[%s4 + $0x58] sm:$0xff]
      %v692 = vld [vmem:[%s4 + $0x60] sm:$0xff]
      %v693 = vld [vmem:[%s4 + $0x68] sm:$0xff]
      %v694 = vld [vmem:[%s4 + $0x70] sm:$0xff]
      %v695 = vld [vmem:[%s4 + $0x78] sm:$0xff]
      %v696 = vld [vmem:[%s4 + $0x80] sm:$0xff]
      %v697 = vld [vmem:[%s4 + $0x88] sm:$0xff]
      %v698 = vld [vmem:[%s4 + $0x90] sm:$0xff]
      %v699 = vld [vmem:[%s4 + $0x98] sm:$0xff]
      %v700 = vld [vmem:[%s4 + $0xa0] sm:$0xff]
      %v701 = vld [vmem:[%s4 + $0xa8] sm:$0xff]
      %v702 = vld [vmem:[%s4 + $0xb0] sm:$0xff]
      %v703 = vld [vmem:[%s4 + $0xb8] sm:$0xff]
      %v704 = vld [vmem:[%s4 + $0xc0] sm:$0xff]
      %v705 = vld [vmem:[%s4 + $0xc8] sm:$0xff]
      %v706 = vld [vmem:[%s4 + $0xd0] sm:$0xff]
      %v707 = vld [vmem:[%s4 + $0xd8] sm:$0xff]
      %v708 = vld [vmem:[%s4 + $0xe0] sm:$0xff]
      %v709 = vld [vmem:[%s4 + $0xe8] sm:$0xff]
      %v710 = vld [vmem:[%s4 + $0xf0] sm:$0xff]
      %v711 = vld [vmem:[%s4 + $0xf8] sm:$0xff]
      %v712 = vld [vmem:[%s4 + $0x100] sm:$0xff]
      %v713 = vld [vmem:[%s4 + $0x108] sm:$0xff]
      %v714 = vld [vmem:[%s4 + $0x110] sm:$0xff]
      %v715 = vld [vmem:[%s4 + $0x118] sm:$0xff]
      %v716 = vld [vmem:[%s4 + $0x120] sm:$0xff]
      %v717 = vld [vmem:[%s4 + $0x128] sm:$0xff]
      %v718 = vld [vmem:[%s4 + $0x130] sm:$0xff]
      %v719 = vld [vmem:[%s4 + $0x138] sm:$0xff]
      %v720 = vld [vmem:[%s4 + $0x140] sm:$0xf]
      %vm721 = vcmask 326656
      %v723 = vsel %vm721, %v680, 0
      %v726 = vsel %vm721, %v681, 0
      %v729 = vsel %vm721, %v682, 0
      %v732 = vsel %vm721, %v683, 0
      %v735 = vsel %vm721, %v684, 0
      %v738 = vsel %vm721, %v685, 0
      %v741 = vsel %vm721, %v686, 0
      %v744 = vsel %vm721, %v687, 0
      %v747 = vsel %vm721, %v688, 0
      %v750 = vsel %vm721, %v689, 0
      %v753 = vsel %vm721, %v690, 0
      %v756 = vsel %vm721, %v691, 0
      %v759 = vsel %vm721, %v692, 0
      %v762 = vsel %vm721, %v693, 0
      %v765 = vsel %vm721, %v694, 0
      %v768 = vsel %vm721, %v695, 0
      %v771 = vsel %vm721, %v696, 0
      %v774 = vsel %vm721, %v697, 0
      %v777 = vsel %vm721, %v698, 0
      %v780 = vsel %vm721, %v699, 0
      %v783 = vsel %vm721, %v700, 0
      %v786 = vsel %vm721, %v701, 0
      %v789 = vsel %vm721, %v702, 0
      %v792 = vsel %vm721, %v703, 0
      %v795 = vsel %vm721, %v704, 0
      %v798 = vsel %vm721, %v705, 0
      %v801 = vsel %vm721, %v706, 0
      %v804 = vsel %vm721, %v707, 0
      %v807 = vsel %vm721, %v708, 0
      %v810 = vsel %vm721, %v709, 0
      %v813 = vsel %vm721, %v710, 0
      %v816 = vsel %vm721, %v711, 0
      %v819 = vsel %vm721, %v712, 0
      %v822 = vsel %vm721, %v713, 0
      %v825 = vsel %vm721, %v714, 0
      %v828 = vsel %vm721, %v715, 0
      %v831 = vsel %vm721, %v716, 0
      %v834 = vsel %vm721, %v717, 0
      %v837 = vsel %vm721, %v718, 0
      %v840 = vsel %vm721, %v719, 0
      %v843 = vsel %vm721, %v720, 0
      %845 = vmatprep.subr.mxu0 0.0
      %846 = vmatpush1.msra.mxu0 %v675
      %847 = vmatprep.subr.mxu0 0.0
      %848 = vmatpush1.msra.mxu0 %v676
      %849 = vmatprep.subr.mxu0 0.0
      %850 = vmatpush1.msra.mxu0 %v677
      %851 = vmatprep.subr.mxu0 0.0
      %852 = vmatpush1.msra.mxu0 %v678
      %853 = vmatprep.subr.mxu0 0.0
      %854 = vmatpush1.msra.mxu0 %v679
      %855 = vmatprep.subr.mxu0 0.0
      %856 = vmatpush1.msra.mxu0 0.0
      %857 = vmatprep.subr.mxu0 0.0
      %858 = vmatpush1.msra.mxu0 0.0
      %859 = vmatprep.subr.mxu0 0.0
      %860 = vmatpush1.msra.mxu0 0.0
      %861 = vmatprep.subr.mxu0 0.0
      %862 = vmatpush1.msra.mxu0 0.0
      %863 = vmatprep.subr.mxu0 0.0
      %864 = vmatpush1.msra.mxu0 0.0
      %865 = vmatprep.subr.mxu0 0.0
      %866 = vmatpush1.msra.mxu0 0.0
      %867 = vmatprep.subr.mxu0 0.0
      %868 = vmatpush1.msra.mxu0 0.0
      %869 = vmatprep.subr.mxu0 0.0
      %870 = vmatpush1.msra.mxu0 0.0
      %871 = vmatprep.subr.mxu0 0.0
      %872 = vmatpush1.msra.mxu0 0.0
      %873 = vmatprep.subr.mxu0 0.0
      %874 = vmatpush1.msra.mxu0 0.0
      %875 = vmatprep.subr.mxu0 0.0
      %876 = vmatpush1.msra.mxu0 0.0
      %877 = vmatprep.subr.mxu0 0.0
      %878 = vmatpush1.msra.mxu0 0.0
      %879 = vmatprep.subr.mxu0 0.0
      %880 = vmatpush1.msra.mxu0 0.0
      %881 = vmatprep.subr.mxu0 0.0
      %882 = vmatpush1.msra.mxu0 0.0
      %883 = vmatprep.subr.mxu0 0.0
      %884 = vmatpush1.msra.mxu0 0.0
      %885 = vmatprep.subr.mxu0 0.0
      %886 = vmatpush1.msra.mxu0 0.0
      %887 = vmatprep.subr.mxu0 0.0
      %888 = vmatpush1.msra.mxu0 0.0
      %889 = vmatprep.subr.mxu0 0.0
      %890 = vmatpush1.msra.mxu0 0.0
      %891 = vmatprep.subr.mxu0 0.0
      %892 = vmatpush1.msra.mxu0 0.0
      %893 = vmatprep.subr.mxu0 0.0
      %894 = vmatpush1.msra.mxu0 0.0
      %895 = vmatprep.subr.mxu0 0.0
      %896 = vmatpush1.msra.mxu0 0.0
      %897 = vmatprep.subr.mxu0 0.0
      %898 = vmatpush1.msra.mxu0 0.0
      %899 = vmatprep.subr.mxu0 0.0
      %900 = vmatpush1.msra.mxu0 0.0
      %901 = vmatprep.subr.mxu0 0.0
      %902 = vmatpush1.msra.mxu0 0.0
      %903 = vmatprep.subr.mxu0 0.0
      %904 = vmatpush1.msra.mxu0 0.0
      %905 = vmatprep.subr.mxu0 0.0
      %906 = vmatpush1.msra.mxu0 0.0
      %907 = vmatprep.subr.mxu0 0.0
      %908 = vmatpush1.msra.mxu0 0.0
      %909 = vmatprep.mubr.f32.mxu0 0.0
      %910 = vmatmul.mubr.f32.gmra.mrb[0].mxu0 %v723
      %v911 = vpop.f32.mrb[0].mxu0
      %v912 = vadd.f32 0.0, %v911
      %v913 = vpop.f32.mrb[0].mxu0
      %914 = vmatprep.mubr.f32.mxu0 0.0
      %915 = vmatmul.mubr.f32.gmra.mrb[0].mxu0 %v726
      %v916 = vpop.f32.mrb[0].mxu0
      %v917 = vadd.f32 0.0, %v916
      %v918 = vpop.f32.mrb[0].mxu0
      %919 = vmatprep.mubr.f32.mxu0 0.0
      %920 = vmatmul.mubr.f32.gmra.mrb[0].mxu0 %v729
      %v921 = vpop.f32.mrb[0].mxu0
      %v922 = vadd.f32 0.0, %v921
      %v923 = vpop.f32.mrb[0].mxu0
      %924 = vmatprep.mubr.f32.mxu0 0.0
      %925 = vmatmul.mubr.f32.gmra.mrb[0].mxu0 %v732
      %v926 = vpop.f32.mrb[0].mxu0
      %v927 = vadd.f32 0.0, %v926
      %v928 = vpop.f32.mrb[0].mxu0
      %929 = vmatprep.mubr.f32.mxu0 0.0
      %930 = vmatmul.mubr.f32.gmra.mrb[0].mxu0 %v735
      %v931 = vpop.f32.mrb[0].mxu0
      %v932 = vadd.f32 0.0, %v931
      %v933 = vpop.f32.mrb[0].mxu0
      %934 = vmatprep.mubr.f32.mxu0 0.0
      %935 = vmatmul.mubr.f32.gmra.mrb[0].mxu0 %v738
      %v936 = vpop.f32.mrb[0].mxu0
      %v937 = vadd.f32 0.0, %v936
      %v938 = vpop.f32.mrb[0].mxu0
      %939 = vmatprep.mubr.f32.mxu0 0.0
      %940 = vmatmul.mubr.f32.gmra.mrb[0].mxu0 %v741
      %v941 = vpop.f32.mrb[0].mxu0
      %v942 = vadd.f32 0.0, %v941
      %v943 = vpop.f32.mrb[0].mxu0
      %944 = vmatprep.mubr.f32.mxu0 0.0
      %945 = vmatmul.mubr.f32.gmra.mrb[0].mxu0 %v744
      %v946 = vpop.f32.mrb[0].mxu0
      %v947 = vadd.f32 0.0, %v946
      %v948 = vpop.f32.mrb[0].mxu0
      %949 = vmatprep.mubr.f32.mxu0 0.0
      %950 = vmatmul.mubr.f32.gmra.mrb[0].mxu0 %v747
      %v951 = vpop.f32.mrb[0].mxu0
      %v952 = vadd.f32 0.0, %v951
      %v953 = vpop.f32.mrb[0].mxu0
      %954 = vmatprep.mubr.f32.mxu0 0.0
      %955 = vmatmul.mubr.f32.gmra.mrb[0].mxu0 %v750
      %v956 = vpop.f32.mrb[0].mxu0
      %v957 = vadd.f32 0.0, %v956
      %v958 = vpop.f32.mrb[0].mxu0
      %959 = vmatprep.mubr.f32.mxu0 0.0
      %960 = vmatmul.mubr.f32.gmra.mrb[0].mxu0 %v753
      %v961 = vpop.f32.mrb[0].mxu0
      %v962 = vadd.f32 0.0, %v961
      %v963 = vpop.f32.mrb[0].mxu0
      %964 = vmatprep.mubr.f32.mxu0 0.0
      %965 = vmatmul.mubr.f32.gmra.mrb[0].mxu0 %v756
      %v966 = vpop.f32.mrb[0].mxu0
      %v967 = vadd.f32 0.0, %v966
      %v968 = vpop.f32.mrb[0].mxu0
      %969 = vmatprep.mubr.f32.mxu0 0.0
      %970 = vmatmul.mubr.f32.gmra.mrb[0].mxu0 %v759
      %v971 = vpop.f32.mrb[0].mxu0
      %v972 = vadd.f32 0.0, %v971
      %v973 = vpop.f32.mrb[0].mxu0
      %974 = vmatprep.mubr.f32.mxu0 0.0
      %975 = vmatmul.mubr.f32.gmra.mrb[0].mxu0 %v762
      %v976 = vpop.f32.mrb[0].mxu0
      %v977 = vadd.f32 0.0, %v976
      %v978 = vpop.f32.mrb[0].mxu0
      %979 = vmatprep.mubr.f32.mxu0 0.0
      %980 = vmatmul.mubr.f32.gmra.mrb[0].mxu0 %v765
      %v981 = vpop.f32.mrb[0].mxu0
      %v982 = vadd.f32 0.0, %v981
      %v983 = vpop.f32.mrb[0].mxu0
      %984 = vmatprep.mubr.f32.mxu0 0.0
      %985 = vmatmul.mubr.f32.gmra.mrb[0].mxu0 %v768
      %v986 = vpop.f32.mrb[0].mxu0
      %v987 = vadd.f32 0.0, %v986
      %v988 = vpop.f32.mrb[0].mxu0
      %989 = vmatprep.mubr.f32.mxu0 0.0
      %990 = vmatmul.mubr.f32.gmra.mrb[0].mxu0 %v771
      %v991 = vpop.f32.mrb[0].mxu0
      %v992 = vadd.f32 0.0, %v991
      %v993 = vpop.f32.mrb[0].mxu0
      %994 = vmatprep.mubr.f32.mxu0 0.0
      %995 = vmatmul.mubr.f32.gmra.mrb[0].mxu0 %v774
      %v996 = vpop.f32.mrb[0].mxu0
      %v997 = vadd.f32 0.0, %v996
      %v998 = vpop.f32.mrb[0].mxu0
      %999 = vmatprep.mubr.f32.mxu0 0.0
      %1000 = vmatmul.mubr.f32.gmra.mrb[0].mxu0 %v777
      %v1001 = vpop.f32.mrb[0].mxu0
      %v1002 = vadd.f32 0.0, %v1001
      %v1003 = vpop.f32.mrb[0].mxu0
      %1004 = vmatprep.mubr.f32.mxu0 0.0
      %1005 = vmatmul.mubr.f32.gmra.mrb[0].mxu0 %v780
      %v1006 = vpop.f32.mrb[0].mxu0
      %v1007 = vadd.f32 0.0, %v1006
      %v1008 = vpop.f32.mrb[0].mxu0
      %1009 = vmatprep.mubr.f32.mxu0 0.0
      %1010 = vmatmul.mubr.f32.gmra.mrb[0].mxu0 %v783
      %v1011 = vpop.f32.mrb[0].mxu0
      %v1012 = vadd.f32 0.0, %v1011
      %v1013 = vpop.f32.mrb[0].mxu0
      %1014 = vmatprep.mubr.f32.mxu0 0.0
      %1015 = vmatmul.mubr.f32.gmra.mrb[0].mxu0 %v786
      %v1016 = vpop.f32.mrb[0].mxu0
      %v1017 = vadd.f32 0.0, %v1016
      %v1018 = vpop.f32.mrb[0].mxu0
      %1019 = vmatprep.mubr.f32.mxu0 0.0
      %1020 = vmatmul.mubr.f32.gmra.mrb[0].mxu0 %v789
      %v1021 = vpop.f32.mrb[0].mxu0
      %v1022 = vadd.f32 0.0, %v1021
      %v1023 = vpop.f32.mrb[0].mxu0
      %1024 = vmatprep.mubr.f32.mxu0 0.0
      %1025 = vmatmul.mubr.f32.gmra.mrb[0].mxu0 %v792
      %v1026 = vpop.f32.mrb[0].mxu0
      %v1027 = vadd.f32 0.0, %v1026
      %v1028 = vpop.f32.mrb[0].mxu0
      %1029 = vmatprep.mubr.f32.mxu0 0.0
      %1030 = vmatmul.mubr.f32.gmra.mrb[0].mxu0 %v795
      %v1031 = vpop.f32.mrb[0].mxu0
      %v1032 = vadd.f32 0.0, %v1031
      %v1033 = vpop.f32.mrb[0].mxu0
      %1034 = vmatprep.mubr.f32.mxu0 0.0
      %1035 = vmatmul.mubr.f32.gmra.mrb[0].mxu0 %v798
      %v1036 = vpop.f32.mrb[0].mxu0
      %v1037 = vadd.f32 0.0, %v1036
      %v1038 = vpop.f32.mrb[0].mxu0
      %1039 = vmatprep.mubr.f32.mxu0 0.0
      %1040 = vmatmul.mubr.f32.gmra.mrb[0].mxu0 %v801
      %v1041 = vpop.f32.mrb[0].mxu0
      %v1042 = vadd.f32 0.0, %v1041
      %v1043 = vpop.f32.mrb[0].mxu0
      %1044 = vmatprep.mubr.f32.mxu0 0.0
      %1045 = vmatmul.mubr.f32.gmra.mrb[0].mxu0 %v804
      %v1046 = vpop.f32.mrb[0].mxu0
      %v1047 = vadd.f32 0.0, %v1046
      %v1048 = vpop.f32.mrb[0].mxu0
      %1049 = vmatprep.mubr.f32.mxu0 0.0
      %1050 = vmatmul.mubr.f32.gmra.mrb[0].mxu0 %v807
      %v1051 = vpop.f32.mrb[0].mxu0
      %v1052 = vadd.f32 0.0, %v1051
      %v1053 = vpop.f32.mrb[0].mxu0
      %1054 = vmatprep.mubr.f32.mxu0 0.0
      %1055 = vmatmul.mubr.f32.gmra.mrb[0].mxu0 %v810
      %v1056 = vpop.f32.mrb[0].mxu0
      %v1057 = vadd.f32 0.0, %v1056
      %v1058 = vpop.f32.mrb[0].mxu0
      %1059 = vmatprep.mubr.f32.mxu0 0.0
      %1060 = vmatmul.mubr.f32.gmra.mrb[0].mxu0 %v813
      %v1061 = vpop.f32.mrb[0].mxu0
      %v1062 = vadd.f32 0.0, %v1061
      %v1063 = vpop.f32.mrb[0].mxu0
      %1064 = vmatprep.mubr.f32.mxu0 0.0
      %1065 = vmatmul.mubr.f32.gmra.mrb[0].mxu0 %v816
      %v1066 = vpop.f32.mrb[0].mxu0
      %v1067 = vadd.f32 0.0, %v1066
      %v1068 = vpop.f32.mrb[0].mxu0
      %1069 = vmatprep.mubr.f32.mxu0 0.0
      %1070 = vmatmul.mubr.f32.gmra.mrb[0].mxu0 %v819
      %v1071 = vpop.f32.mrb[0].mxu0
      %v1072 = vadd.f32 0.0, %v1071
      %v1073 = vpop.f32.mrb[0].mxu0
      %1074 = vmatprep.mubr.f32.mxu0 0.0
      %1075 = vmatmul.mubr.f32.gmra.mrb[0].mxu0 %v822
      %v1076 = vpop.f32.mrb[0].mxu0
      %v1077 = vadd.f32 0.0, %v1076
      %v1078 = vpop.f32.mrb[0].mxu0
      %1079 = vmatprep.mubr.f32.mxu0 0.0
      %1080 = vmatmul.mubr.f32.gmra.mrb[0].mxu0 %v825
      %v1081 = vpop.f32.mrb[0].mxu0
      %v1082 = vadd.f32 0.0, %v1081
      %v1083 = vpop.f32.mrb[0].mxu0
      %1084 = vmatprep.mubr.f32.mxu0 0.0
      %1085 = vmatmul.mubr.f32.gmra.mrb[0].mxu0 %v828
      %v1086 = vpop.f32.mrb[0].mxu0
      %v1087 = vadd.f32 0.0, %v1086
      %v1088 = vpop.f32.mrb[0].mxu0
      %1089 = vmatprep.mubr.f32.mxu0 0.0
      %1090 = vmatmul.mubr.f32.gmra.mrb[0].mxu0 %v831
      %v1091 = vpop.f32.mrb[0].mxu0
      %v1092 = vadd.f32 0.0, %v1091
      %v1093 = vpop.f32.mrb[0].mxu0
      %1094 = vmatprep.mubr.f32.mxu0 0.0
      %1095 = vmatmul.mubr.f32.gmra.mrb[0].mxu0 %v834
      %v1096 = vpop.f32.mrb[0].mxu0
      %v1097 = vadd.f32 0.0, %v1096
      %v1098 = vpop.f32.mrb[0].mxu0
      %1099 = vmatprep.mubr.f32.mxu0 0.0
      %1100 = vmatmul.mubr.f32.gmra.mrb[0].mxu0 %v837
      %v1101 = vpop.f32.mrb[0].mxu0
      %v1102 = vadd.f32 0.0, %v1101
      %v1103 = vpop.f32.mrb[0].mxu0
      %1104 = vmatprep.mubr.f32.mxu0 0.0
      %1105 = vmatmul.mubr.f32.gmra.mrb[0].mxu0 %v840
      %v1106 = vpop.f32.mrb[0].mxu0
      %v1107 = vadd.f32 0.0, %v1106
      %v1108 = vpop.f32.mrb[0].mxu0
      %1109 = vmatprep.mubr.f32.mxu0 0.0
      %1110 = vmatmul.mubr.f32.gmra.mrb[0].mxu0 %v843
      %v1111 = vpop.f32.mrb[0].mxu0
      %v1112 = vadd.f32 0.0, %v1111
      %v1113 = vpop.f32.mrb[0].mxu0
      %1114 = vdwg.mxu0
      %s1115 = scalar_lea.vmem %s2, 256
      %v1116 = vld [vmem:[%s1115] sm:$0xff]
      %v1117 = vld [vmem:[%s1115 + $0x8] sm:$0xff]
      %v1118 = vld [vmem:[%s1115 + $0x10] sm:$0xff]
      %v1119 = vld [vmem:[%s1115 + $0x18] sm:$0xff]
      %v1120 = vld [vmem:[%s1115 + $0x20] sm:$0xff]
      %v1121 = vld [vmem:[%s1115 + $0x28] sm:$0xff]
      %v1122 = vld [vmem:[%s1115 + $0x30] sm:$0xff]
      %v1123 = vld [vmem:[%s1115 + $0x38] sm:$0xff]
      %v1124 = vld [vmem:[%s1115 + $0x40] sm:$0xff]
      %v1125 = vld [vmem:[%s1115 + $0x48] sm:$0xff]
      %v1126 = vld [vmem:[%s1115 + $0x50] sm:$0xff]
      %v1127 = vld [vmem:[%s1115 + $0x58] sm:$0xff]
      %v1128 = vld [vmem:[%s1115 + $0x60] sm:$0xff]
      %v1129 = vld [vmem:[%s1115 + $0x68] sm:$0xff]
      %v1130 = vld [vmem:[%s1115 + $0x70] sm:$0xff]
      %v1131 = vld [vmem:[%s1115 + $0x78] sm:$0xff]
      %v1132 = vld [vmem:[%s1115 + $0x80] sm:$0xff]
      %v1133 = vld [vmem:[%s1115 + $0x88] sm:$0xff]
      %v1134 = vld [vmem:[%s1115 + $0x90] sm:$0xff]
      %v1135 = vld [vmem:[%s1115 + $0x98] sm:$0xff]
      %v1136 = vld [vmem:[%s1115 + $0xa0] sm:$0xff]
      %v1137 = vld [vmem:[%s1115 + $0xa8] sm:$0xff]
      %v1138 = vld [vmem:[%s1115 + $0xb0] sm:$0xff]
      %v1139 = vld [vmem:[%s1115 + $0xb8] sm:$0xff]
      %v1140 = vld [vmem:[%s1115 + $0xc0] sm:$0xff]
      %v1141 = vld [vmem:[%s1115 + $0xc8] sm:$0xff]
      %v1142 = vld [vmem:[%s1115 + $0xd0] sm:$0xff]
      %v1143 = vld [vmem:[%s1115 + $0xd8] sm:$0xff]
      %v1144 = vld [vmem:[%s1115 + $0xe0] sm:$0xff]
      %v1145 = vld [vmem:[%s1115 + $0xe8] sm:$0xff]
      %v1146 = vld [vmem:[%s1115 + $0xf0] sm:$0xff]
      %v1147 = vld [vmem:[%s1115 + $0xf8] sm:$0xff]
      %s1148 = scalar_lea.vmem %s3, 1
      %v1149 = vld [vmem:[%s1148] sm:$0x1]
      %v1151 = vlaneseq
      %v1152 = vshrl.u32 %v1151, 7
      %v1153 = vsub.s32 0, %v1152
      %v1154 = vrot.slane %v1149, %v1153
      %1156 = vmatprep.subr.mxu0 0.0
      %1157 = vmatpush1.msra.mxu0 %v1116
      %1158 = vmatprep.subr.mxu0 0.0
      %1159 = vmatpush1.msra.mxu0 %v1117
      %1160 = vmatprep.subr.mxu0 0.0
      %1161 = vmatpush1.msra.mxu0 %v1118
      %1162 = vmatprep.subr.mxu0 0.0
      %1163 = vmatpush1.msra.mxu0 %v1119
      %1164 = vmatprep.subr.mxu0 0.0
      %1165 = vmatpush1.msra.mxu0 %v1120
      %1166 = vmatprep.subr.mxu0 0.0
      %1167 = vmatpush1.msra.mxu0 %v1121
      %1168 = vmatprep.subr.mxu0 0.0
      %1169 = vmatpush1.msra.mxu0 %v1122
      %1170 = vmatprep.subr.mxu0 0.0
      %1171 = vmatpush1.msra.mxu0 %v1123
      %1172 = vmatprep.subr.mxu0 0.0
      %1173 = vmatpush1.msra.mxu0 %v1124
      %1174 = vmatprep.subr.mxu0 0.0
      %1175 = vmatpush1.msra.mxu0 %v1125
      %1176 = vmatprep.subr.mxu0 0.0
      %1177 = vmatpush1.msra.mxu0 %v1126
      %1178 = vmatprep.subr.mxu0 0.0
      %1179 = vmatpush1.msra.mxu0 %v1127
      %1180 = vmatprep.subr.mxu0 0.0
      %1181 = vmatpush1.msra.mxu0 %v1128
      %1182 = vmatprep.subr.mxu0 0.0
      %1183 = vmatpush1.msra.mxu0 %v1129
      %1184 = vmatprep.subr.mxu0 0.0
      %1185 = vmatpush1.msra.mxu0 %v1130
      %1186 = vmatprep.subr.mxu0 0.0
      %1187 = vmatpush1.msra.mxu0 %v1131
      %1188 = vmatprep.subr.mxu0 0.0
      %1189 = vmatpush1.msra.mxu0 %v1132
      %1190 = vmatprep.subr.mxu0 0.0
      %1191 = vmatpush1.msra.mxu0 %v1133
      %1192 = vmatprep.subr.mxu0 0.0
      %1193 = vmatpush1.msra.mxu0 %v1134
      %1194 = vmatprep.subr.mxu0 0.0
      %1195 = vmatpush1.msra.mxu0 %v1135
      %1196 = vmatprep.subr.mxu0 0.0
      %1197 = vmatpush1.msra.mxu0 %v1136
      %1198 = vmatprep.subr.mxu0 0.0
      %1199 = vmatpush1.msra.mxu0 %v1137
      %1200 = vmatprep.subr.mxu0 0.0
      %1201 = vmatpush1.msra.mxu0 %v1138
      %1202 = vmatprep.subr.mxu0 0.0
      %1203 = vmatpush1.msra.mxu0 %v1139
      %1204 = vmatprep.subr.mxu0 0.0
      %1205 = vmatpush1.msra.mxu0 %v1140
      %1206 = vmatprep.subr.mxu0 0.0
      %1207 = vmatpush1.msra.mxu0 %v1141
      %1208 = vmatprep.subr.mxu0 0.0
      %1209 = vmatpush1.msra.mxu0 %v1142
      %1210 = vmatprep.subr.mxu0 0.0
      %1211 = vmatpush1.msra.mxu0 %v1143
      %1212 = vmatprep.subr.mxu0 0.0
      %1213 = vmatpush1.msra.mxu0 %v1144
      %1214 = vmatprep.subr.mxu0 0.0
      %1215 = vmatpush1.msra.mxu0 %v1145
      %1216 = vmatprep.subr.mxu0 0.0
      %1217 = vmatpush1.msra.mxu0 %v1146
      %1218 = vmatprep.subr.mxu0 0.0
      %1219 = vmatpush1.msra.mxu0 %v1147
      %1220 = vmatprep.mubr.f32.mxu0 %v460
      %1221 = vmatmul.mubr.f32.gmra.mrb[0].mxu0 %v458
      %v1222 = vpop.f32.mrb[0].mxu0
      %v1223 = vadd.f32 %v1154, %v1222
      %v1224 = vpop.f32.mrb[0].mxu0
      %1225 = vmatprep.mubr.f32.mxu0 %v466
      %1226 = vmatmul.mubr.f32.gmra.mrb[0].mxu0 %v464
      %v1227 = vpop.f32.mrb[0].mxu0
      %v1228 = vadd.f32 %v1154, %v1227
      %v1229 = vpop.f32.mrb[0].mxu0
      %1230 = vmatprep.mubr.f32.mxu0 %v472
      %1231 = vmatmul.mubr.f32.gmra.mrb[0].mxu0 %v470
      %v1232 = vpop.f32.mrb[0].mxu0
      %v1233 = vadd.f32 %v1154, %v1232
      %v1234 = vpop.f32.mrb[0].mxu0
      %1235 = vmatprep.mubr.f32.mxu0 %v478
      %1236 = vmatmul.mubr.f32.gmra.mrb[0].mxu0 %v476
      %v1237 = vpop.f32.mrb[0].mxu0
      %v1238 = vadd.f32 %v1154, %v1237
      %v1239 = vpop.f32.mrb[0].mxu0
      %1240 = vmatprep.mubr.f32.mxu0 %v484
      %1241 = vmatmul.mubr.f32.gmra.mrb[0].mxu0 %v482
      %v1242 = vpop.f32.mrb[0].mxu0
      %v1243 = vadd.f32 %v1154, %v1242
      %v1244 = vpop.f32.mrb[0].mxu0
      %1245 = vdwg.mxu0
      %v1246 = vmax.f32 %v1223, 0.0
      %v1247 = vmax.f32 %v1228, 0.0
      %v1248 = vmax.f32 %v1233, 0.0
      %v1249 = vmax.f32 %v1238, 0.0
      %v1250 = vmax.f32 %v1243, 0.0
      %s1251 = scalar_lea.vmem %s4, 328
      %v1252 = vld [vmem:[%s1251] sm:$0xff]
      %v1253 = vld [vmem:[%s1251 + $0x8] sm:$0xff]
      %v1254 = vld [vmem:[%s1251 + $0x10] sm:$0xff]
      %v1255 = vld [vmem:[%s1251 + $0x18] sm:$0xff]
      %v1256 = vld [vmem:[%s1251 + $0x20] sm:$0xff]
      %v1257 = vld [vmem:[%s1251 + $0x28] sm:$0xff]
      %v1258 = vld [vmem:[%s1251 + $0x30] sm:$0xff]
      %v1259 = vld [vmem:[%s1251 + $0x38] sm:$0xff]
      %v1260 = vld [vmem:[%s1251 + $0x40] sm:$0xff]
      %v1261 = vld [vmem:[%s1251 + $0x48] sm:$0xff]
      %v1262 = vld [vmem:[%s1251 + $0x50] sm:$0xff]
      %v1263 = vld [vmem:[%s1251 + $0x58] sm:$0xff]
      %v1264 = vld [vmem:[%s1251 + $0x60] sm:$0xff]
      %v1265 = vld [vmem:[%s1251 + $0x68] sm:$0xff]
      %v1266 = vld [vmem:[%s1251 + $0x70] sm:$0xff]
      %v1267 = vld [vmem:[%s1251 + $0x78] sm:$0xff]
      %v1268 = vld [vmem:[%s1251 + $0x80] sm:$0xff]
      %v1269 = vld [vmem:[%s1251 + $0x88] sm:$0xff]
      %v1270 = vld [vmem:[%s1251 + $0x90] sm:$0xff]
      %v1271 = vld [vmem:[%s1251 + $0x98] sm:$0xff]
      %v1272 = vld [vmem:[%s1251 + $0xa0] sm:$0xff]
      %v1273 = vld [vmem:[%s1251 + $0xa8] sm:$0xff]
      %v1274 = vld [vmem:[%s1251 + $0xb0] sm:$0xff]
      %v1275 = vld [vmem:[%s1251 + $0xb8] sm:$0xff]
      %v1276 = vld [vmem:[%s1251 + $0xc0] sm:$0xff]
      %v1277 = vld [vmem:[%s1251 + $0xc8] sm:$0xff]
      %v1278 = vld [vmem:[%s1251 + $0xd0] sm:$0xff]
      %v1279 = vld [vmem:[%s1251 + $0xd8] sm:$0xff]
      %v1280 = vld [vmem:[%s1251 + $0xe0] sm:$0xff]
      %v1281 = vld [vmem:[%s1251 + $0xe8] sm:$0xff]
      %v1282 = vld [vmem:[%s1251 + $0xf0] sm:$0xff]
      %v1283 = vld [vmem:[%s1251 + $0xf8] sm:$0xff]
      %v1284 = vld [vmem:[%s1251 + $0x100] sm:$0xff]
      %v1285 = vld [vmem:[%s1251 + $0x108] sm:$0xff]
      %v1286 = vld [vmem:[%s1251 + $0x110] sm:$0xff]
      %v1287 = vld [vmem:[%s1251 + $0x118] sm:$0xff]
      %v1288 = vld [vmem:[%s1251 + $0x120] sm:$0xff]
      %v1289 = vld [vmem:[%s1251 + $0x128] sm:$0xff]
      %v1290 = vld [vmem:[%s1251 + $0x130] sm:$0xff]
      %v1291 = vld [vmem:[%s1251 + $0x138] sm:$0xff]
      %v1292 = vld [vmem:[%s1251 + $0x140] sm:$0xf]
      %v1294 = vsel %vm721, %v1252, 0
      %v1297 = vsel %vm721, %v1253, 0
      %v1300 = vsel %vm721, %v1254, 0
      %v1303 = vsel %vm721, %v1255, 0
      %v1306 = vsel %vm721, %v1256, 0
      %v1309 = vsel %vm721, %v1257, 0
      %v1312 = vsel %vm721, %v1258, 0
      %v1315 = vsel %vm721, %v1259, 0
      %v1318 = vsel %vm721, %v1260, 0
      %v1321 = vsel %vm721, %v1261, 0
      %v1324 = vsel %vm721, %v1262, 0
      %v1327 = vsel %vm721, %v1263, 0
      %v1330 = vsel %vm721, %v1264, 0
      %v1333 = vsel %vm721, %v1265, 0
      %v1336 = vsel %vm721, %v1266, 0
      %v1339 = vsel %vm721, %v1267, 0
      %v1342 = vsel %vm721, %v1268, 0
      %v1345 = vsel %vm721, %v1269, 0
      %v1348 = vsel %vm721, %v1270, 0
      %v1351 = vsel %vm721, %v1271, 0
      %v1354 = vsel %vm721, %v1272, 0
      %v1357 = vsel %vm721, %v1273, 0
      %v1360 = vsel %vm721, %v1274, 0
      %v1363 = vsel %vm721, %v1275, 0
      %v1366 = vsel %vm721, %v1276, 0
      %v1369 = vsel %vm721, %v1277, 0
      %v1372 = vsel %vm721, %v1278, 0
      %v1375 = vsel %vm721, %v1279, 0
      %v1378 = vsel %vm721, %v1280, 0
      %v1381 = vsel %vm721, %v1281, 0
      %v1384 = vsel %vm721, %v1282, 0
      %v1387 = vsel %vm721, %v1283, 0
      %v1390 = vsel %vm721, %v1284, 0
      %v1393 = vsel %vm721, %v1285, 0
      %v1396 = vsel %vm721, %v1286, 0
      %v1399 = vsel %vm721, %v1287, 0
      %v1402 = vsel %vm721, %v1288, 0
      %v1405 = vsel %vm721, %v1289, 0
      %v1408 = vsel %vm721, %v1290, 0
      %v1411 = vsel %vm721, %v1291, 0
      %v1414 = vsel %vm721, %v1292, 0
      %1416 = vmatprep.subr.mxu0 0.0
      %1417 = vmatpush1.msra.mxu0 %v1246
      %1418 = vmatprep.subr.mxu0 0.0
      %1419 = vmatpush1.msra.mxu0 %v1247
      %1420 = vmatprep.subr.mxu0 0.0
      %1421 = vmatpush1.msra.mxu0 %v1248
      %1422 = vmatprep.subr.mxu0 0.0
      %1423 = vmatpush1.msra.mxu0 %v1249
      %1424 = vmatprep.subr.mxu0 0.0
      %1425 = vmatpush1.msra.mxu0 %v1250
      %1426 = vmatprep.subr.mxu0 0.0
      %1427 = vmatpush1.msra.mxu0 0.0
      %1428 = vmatprep.subr.mxu0 0.0
      %1429 = vmatpush1.msra.mxu0 0.0
      %1430 = vmatprep.subr.mxu0 0.0
      %1431 = vmatpush1.msra.mxu0 0.0
      %1432 = vmatprep.subr.mxu0 0.0
      %1433 = vmatpush1.msra.mxu0 0.0
      %1434 = vmatprep.subr.mxu0 0.0
      %1435 = vmatpush1.msra.mxu0 0.0
      %1436 = vmatprep.subr.mxu0 0.0
      %1437 = vmatpush1.msra.mxu0 0.0
      %1438 = vmatprep.subr.mxu0 0.0
      %1439 = vmatpush1.msra.mxu0 0.0
      %1440 = vmatprep.subr.mxu0 0.0
      %1441 = vmatpush1.msra.mxu0 0.0
      %1442 = vmatprep.subr.mxu0 0.0
      %1443 = vmatpush1.msra.mxu0 0.0
      %1444 = vmatprep.subr.mxu0 0.0
      %1445 = vmatpush1.msra.mxu0 0.0
      %1446 = vmatprep.subr.mxu0 0.0
      %1447 = vmatpush1.msra.mxu0 0.0
      %1448 = vmatprep.subr.mxu0 0.0
      %1449 = vmatpush1.msra.mxu0 0.0
      %1450 = vmatprep.subr.mxu0 0.0
      %1451 = vmatpush1.msra.mxu0 0.0
      %1452 = vmatprep.subr.mxu0 0.0
      %1453 = vmatpush1.msra.mxu0 0.0
      %1454 = vmatprep.subr.mxu0 0.0
      %1455 = vmatpush1.msra.mxu0 0.0
      %1456 = vmatprep.subr.mxu0 0.0
      %1457 = vmatpush1.msra.mxu0 0.0
      %1458 = vmatprep.subr.mxu0 0.0
      %1459 = vmatpush1.msra.mxu0 0.0
      %1460 = vmatprep.subr.mxu0 0.0
      %1461 = vmatpush1.msra.mxu0 0.0
      %1462 = vmatprep.subr.mxu0 0.0
      %1463 = vmatpush1.msra.mxu0 0.0
      %1464 = vmatprep.subr.mxu0 0.0
      %1465 = vmatpush1.msra.mxu0 0.0
      %1466 = vmatprep.subr.mxu0 0.0
      %1467 = vmatpush1.msra.mxu0 0.0
      %1468 = vmatprep.subr.mxu0 0.0
      %1469 = vmatpush1.msra.mxu0 0.0
      %1470 = vmatprep.subr.mxu0 0.0
      %1471 = vmatpush1.msra.mxu0 0.0
      %1472 = vmatprep.subr.mxu0 0.0
      %1473 = vmatpush1.msra.mxu0 0.0
      %1474 = vmatprep.subr.mxu0 0.0
      %1475 = vmatpush1.msra.mxu0 0.0
      %1476 = vmatprep.subr.mxu0 0.0
      %1477 = vmatpush1.msra.mxu0 0.0
      %1478 = vmatprep.subr.mxu0 0.0
      %1479 = vmatpush1.msra.mxu0 0.0
      %1480 = vmatprep.mubr.f32.mxu0 0.0
      %1481 = vmatmul.mubr.f32.gmra.mrb[0].mxu0 %v1294
      %v1482 = vpop.f32.mrb[0].mxu0
      %v1483 = vadd.f32 0.0, %v1482
      %v1484 = vpop.f32.mrb[0].mxu0
      %1485 = vmatprep.mubr.f32.mxu0 0.0
      %1486 = vmatmul.mubr.f32.gmra.mrb[0].mxu0 %v1297
      %v1487 = vpop.f32.mrb[0].mxu0
      %v1488 = vadd.f32 0.0, %v1487
      %v1489 = vpop.f32.mrb[0].mxu0
      %1490 = vmatprep.mubr.f32.mxu0 0.0
      %1491 = vmatmul.mubr.f32.gmra.mrb[0].mxu0 %v1300
      %v1492 = vpop.f32.mrb[0].mxu0
      %v1493 = vadd.f32 0.0, %v1492
      %v1494 = vpop.f32.mrb[0].mxu0
      %1495 = vmatprep.mubr.f32.mxu0 0.0
      %1496 = vmatmul.mubr.f32.gmra.mrb[0].mxu0 %v1303
      %v1497 = vpop.f32.mrb[0].mxu0
      %v1498 = vadd.f32 0.0, %v1497
      %v1499 = vpop.f32.mrb[0].mxu0
      %1500 = vmatprep.mubr.f32.mxu0 0.0
      %1501 = vmatmul.mubr.f32.gmra.mrb[0].mxu0 %v1306
      %v1502 = vpop.f32.mrb[0].mxu0
      %v1503 = vadd.f32 0.0, %v1502
      %v1504 = vpop.f32.mrb[0].mxu0
      %1505 = vmatprep.mubr.f32.mxu0 0.0
      %1506 = vmatmul.mubr.f32.gmra.mrb[0].mxu0 %v1309
      %v1507 = vpop.f32.mrb[0].mxu0
      %v1508 = vadd.f32 0.0, %v1507
      %v1509 = vpop.f32.mrb[0].mxu0
      %1510 = vmatprep.mubr.f32.mxu0 0.0
      %1511 = vmatmul.mubr.f32.gmra.mrb[0].mxu0 %v1312
      %v1512 = vpop.f32.mrb[0].mxu0
      %v1513 = vadd.f32 0.0, %v1512
      %v1514 = vpop.f32.mrb[0].mxu0
      %1515 = vmatprep.mubr.f32.mxu0 0.0
      %1516 = vmatmul.mubr.f32.gmra.mrb[0].mxu0 %v1315
      %v1517 = vpop.f32.mrb[0].mxu0
      %v1518 = vadd.f32 0.0, %v1517
      %v1519 = vpop.f32.mrb[0].mxu0
      %1520 = vmatprep.mubr.f32.mxu0 0.0
      %1521 = vmatmul.mubr.f32.gmra.mrb[0].mxu0 %v1318
      %v1522 = vpop.f32.mrb[0].mxu0
      %v1523 = vadd.f32 0.0, %v1522
      %v1524 = vpop.f32.mrb[0].mxu0
      %1525 = vmatprep.mubr.f32.mxu0 0.0
      %1526 = vmatmul.mubr.f32.gmra.mrb[0].mxu0 %v1321
      %v1527 = vpop.f32.mrb[0].mxu0
      %v1528 = vadd.f32 0.0, %v1527
      %v1529 = vpop.f32.mrb[0].mxu0
      %1530 = vmatprep.mubr.f32.mxu0 0.0
      %1531 = vmatmul.mubr.f32.gmra.mrb[0].mxu0 %v1324
      %v1532 = vpop.f32.mrb[0].mxu0
      %v1533 = vadd.f32 0.0, %v1532
      %v1534 = vpop.f32.mrb[0].mxu0
      %1535 = vmatprep.mubr.f32.mxu0 0.0
      %1536 = vmatmul.mubr.f32.gmra.mrb[0].mxu0 %v1327
      %v1537 = vpop.f32.mrb[0].mxu0
      %v1538 = vadd.f32 0.0, %v1537
      %v1539 = vpop.f32.mrb[0].mxu0
      %1540 = vmatprep.mubr.f32.mxu0 0.0
      %1541 = vmatmul.mubr.f32.gmra.mrb[0].mxu0 %v1330
      %v1542 = vpop.f32.mrb[0].mxu0
      %v1543 = vadd.f32 0.0, %v1542
      %v1544 = vpop.f32.mrb[0].mxu0
      %1545 = vmatprep.mubr.f32.mxu0 0.0
      %1546 = vmatmul.mubr.f32.gmra.mrb[0].mxu0 %v1333
      %v1547 = vpop.f32.mrb[0].mxu0
      %v1548 = vadd.f32 0.0, %v1547
      %v1549 = vpop.f32.mrb[0].mxu0
      %1550 = vmatprep.mubr.f32.mxu0 0.0
      %1551 = vmatmul.mubr.f32.gmra.mrb[0].mxu0 %v1336
      %v1552 = vpop.f32.mrb[0].mxu0
      %v1553 = vadd.f32 0.0, %v1552
      %v1554 = vpop.f32.mrb[0].mxu0
      %1555 = vmatprep.mubr.f32.mxu0 0.0
      %1556 = vmatmul.mubr.f32.gmra.mrb[0].mxu0 %v1339
      %v1557 = vpop.f32.mrb[0].mxu0
      %v1558 = vadd.f32 0.0, %v1557
      %v1559 = vpop.f32.mrb[0].mxu0
      %1560 = vmatprep.mubr.f32.mxu0 0.0
      %1561 = vmatmul.mubr.f32.gmra.mrb[0].mxu0 %v1342
      %v1562 = vpop.f32.mrb[0].mxu0
      %v1563 = vadd.f32 0.0, %v1562
      %v1564 = vpop.f32.mrb[0].mxu0
      %1565 = vmatprep.mubr.f32.mxu0 0.0
      %1566 = vmatmul.mubr.f32.gmra.mrb[0].mxu0 %v1345
      %v1567 = vpop.f32.mrb[0].mxu0
      %v1568 = vadd.f32 0.0, %v1567
      %v1569 = vpop.f32.mrb[0].mxu0
      %1570 = vmatprep.mubr.f32.mxu0 0.0
      %1571 = vmatmul.mubr.f32.gmra.mrb[0].mxu0 %v1348
      %v1572 = vpop.f32.mrb[0].mxu0
      %v1573 = vadd.f32 0.0, %v1572
      %v1574 = vpop.f32.mrb[0].mxu0
      %1575 = vmatprep.mubr.f32.mxu0 0.0
      %1576 = vmatmul.mubr.f32.gmra.mrb[0].mxu0 %v1351
      %v1577 = vpop.f32.mrb[0].mxu0
      %v1578 = vadd.f32 0.0, %v1577
      %v1579 = vpop.f32.mrb[0].mxu0
      %1580 = vmatprep.mubr.f32.mxu0 0.0
      %1581 = vmatmul.mubr.f32.gmra.mrb[0].mxu0 %v1354
      %v1582 = vpop.f32.mrb[0].mxu0
      %v1583 = vadd.f32 0.0, %v1582
      %v1584 = vpop.f32.mrb[0].mxu0
      %1585 = vmatprep.mubr.f32.mxu0 0.0
      %1586 = vmatmul.mubr.f32.gmra.mrb[0].mxu0 %v1357
      %v1587 = vpop.f32.mrb[0].mxu0
      %v1588 = vadd.f32 0.0, %v1587
      %v1589 = vpop.f32.mrb[0].mxu0
      %1590 = vmatprep.mubr.f32.mxu0 0.0
      %1591 = vmatmul.mubr.f32.gmra.mrb[0].mxu0 %v1360
      %v1592 = vpop.f32.mrb[0].mxu0
      %v1593 = vadd.f32 0.0, %v1592
      %v1594 = vpop.f32.mrb[0].mxu0
      %1595 = vmatprep.mubr.f32.mxu0 0.0
      %1596 = vmatmul.mubr.f32.gmra.mrb[0].mxu0 %v1363
      %v1597 = vpop.f32.mrb[0].mxu0
      %v1598 = vadd.f32 0.0, %v1597
      %v1599 = vpop.f32.mrb[0].mxu0
      %1600 = vmatprep.mubr.f32.mxu0 0.0
      %1601 = vmatmul.mubr.f32.gmra.mrb[0].mxu0 %v1366
      %v1602 = vpop.f32.mrb[0].mxu0
      %v1603 = vadd.f32 0.0, %v1602
      %v1604 = vpop.f32.mrb[0].mxu0
      %1605 = vmatprep.mubr.f32.mxu0 0.0
      %1606 = vmatmul.mubr.f32.gmra.mrb[0].mxu0 %v1369
      %v1607 = vpop.f32.mrb[0].mxu0
      %v1608 = vadd.f32 0.0, %v1607
      %v1609 = vpop.f32.mrb[0].mxu0
      %1610 = vmatprep.mubr.f32.mxu0 0.0
      %1611 = vmatmul.mubr.f32.gmra.mrb[0].mxu0 %v1372
      %v1612 = vpop.f32.mrb[0].mxu0
      %v1613 = vadd.f32 0.0, %v1612
      %v1614 = vpop.f32.mrb[0].mxu0
      %1615 = vmatprep.mubr.f32.mxu0 0.0
      %1616 = vmatmul.mubr.f32.gmra.mrb[0].mxu0 %v1375
      %v1617 = vpop.f32.mrb[0].mxu0
      %v1618 = vadd.f32 0.0, %v1617
      %v1619 = vpop.f32.mrb[0].mxu0
      %1620 = vmatprep.mubr.f32.mxu0 0.0
      %1621 = vmatmul.mubr.f32.gmra.mrb[0].mxu0 %v1378
      %v1622 = vpop.f32.mrb[0].mxu0
      %v1623 = vadd.f32 0.0, %v1622
      %v1624 = vpop.f32.mrb[0].mxu0
      %1625 = vmatprep.mubr.f32.mxu0 0.0
      %1626 = vmatmul.mubr.f32.gmra.mrb[0].mxu0 %v1381
      %v1627 = vpop.f32.mrb[0].mxu0
      %v1628 = vadd.f32 0.0, %v1627
      %v1629 = vpop.f32.mrb[0].mxu0
      %1630 = vmatprep.mubr.f32.mxu0 0.0
      %1631 = vmatmul.mubr.f32.gmra.mrb[0].mxu0 %v1384
      %v1632 = vpop.f32.mrb[0].mxu0
      %v1633 = vadd.f32 0.0, %v1632
      %v1634 = vpop.f32.mrb[0].mxu0
      %1635 = vmatprep.mubr.f32.mxu0 0.0
      %1636 = vmatmul.mubr.f32.gmra.mrb[0].mxu0 %v1387
      %v1637 = vpop.f32.mrb[0].mxu0
      %v1638 = vadd.f32 0.0, %v1637
      %v1639 = vpop.f32.mrb[0].mxu0
      %1640 = vmatprep.mubr.f32.mxu0 0.0
      %1641 = vmatmul.mubr.f32.gmra.mrb[0].mxu0 %v1390
      %v1642 = vpop.f32.mrb[0].mxu0
      %v1643 = vadd.f32 0.0, %v1642
      %v1644 = vpop.f32.mrb[0].mxu0
      %1645 = vmatprep.mubr.f32.mxu0 0.0
      %1646 = vmatmul.mubr.f32.gmra.mrb[0].mxu0 %v1393
      %v1647 = vpop.f32.mrb[0].mxu0
      %v1648 = vadd.f32 0.0, %v1647
      %v1649 = vpop.f32.mrb[0].mxu0
      %1650 = vmatprep.mubr.f32.mxu0 0.0
      %1651 = vmatmul.mubr.f32.gmra.mrb[0].mxu0 %v1396
      %v1652 = vpop.f32.mrb[0].mxu0
      %v1653 = vadd.f32 0.0, %v1652
      %v1654 = vpop.f32.mrb[0].mxu0
      %1655 = vmatprep.mubr.f32.mxu0 0.0
      %1656 = vmatmul.mubr.f32.gmra.mrb[0].mxu0 %v1399
      %v1657 = vpop.f32.mrb[0].mxu0
      %v1658 = vadd.f32 0.0, %v1657
      %v1659 = vpop.f32.mrb[0].mxu0
      %1660 = vmatprep.mubr.f32.mxu0 0.0
      %1661 = vmatmul.mubr.f32.gmra.mrb[0].mxu0 %v1402
      %v1662 = vpop.f32.mrb[0].mxu0
      %v1663 = vadd.f32 0.0, %v1662
      %v1664 = vpop.f32.mrb[0].mxu0
      %1665 = vmatprep.mubr.f32.mxu0 0.0
      %1666 = vmatmul.mubr.f32.gmra.mrb[0].mxu0 %v1405
      %v1667 = vpop.f32.mrb[0].mxu0
      %v1668 = vadd.f32 0.0, %v1667
      %v1669 = vpop.f32.mrb[0].mxu0
      %1670 = vmatprep.mubr.f32.mxu0 0.0
      %1671 = vmatmul.mubr.f32.gmra.mrb[0].mxu0 %v1408
      %v1672 = vpop.f32.mrb[0].mxu0
      %v1673 = vadd.f32 0.0, %v1672
      %v1674 = vpop.f32.mrb[0].mxu0
      %1675 = vmatprep.mubr.f32.mxu0 0.0
      %1676 = vmatmul.mubr.f32.gmra.mrb[0].mxu0 %v1411
      %v1677 = vpop.f32.mrb[0].mxu0
      %v1678 = vadd.f32 0.0, %v1677
      %v1679 = vpop.f32.mrb[0].mxu0
      %1680 = vmatprep.mubr.f32.mxu0 0.0
      %1681 = vmatmul.mubr.f32.gmra.mrb[0].mxu0 %v1414
      %v1682 = vpop.f32.mrb[0].mxu0
      %v1683 = vadd.f32 0.0, %v1682
      %v1684 = vpop.f32.mrb[0].mxu0
      %1685 = vdwg.mxu0
      %s1686 = scalar_lea.vmem %s2, 512
      %v1687 = vld [vmem:[%s1686] sm:$0xff]
      %v1688 = vld [vmem:[%s1686 + $0x8] sm:$0xff]
      %v1689 = vld [vmem:[%s1686 + $0x10] sm:$0xff]
      %v1690 = vld [vmem:[%s1686 + $0x18] sm:$0xff]
      %v1691 = vld [vmem:[%s1686 + $0x20] sm:$0xff]
      %v1692 = vld [vmem:[%s1686 + $0x28] sm:$0xff]
      %v1693 = vld [vmem:[%s1686 + $0x30] sm:$0xff]
      %v1694 = vld [vmem:[%s1686 + $0x38] sm:$0xff]
      %v1695 = vld [vmem:[%s1686 + $0x40] sm:$0xff]
      %v1696 = vld [vmem:[%s1686 + $0x48] sm:$0xff]
      %v1697 = vld [vmem:[%s1686 + $0x50] sm:$0xff]
      %v1698 = vld [vmem:[%s1686 + $0x58] sm:$0xff]
      %v1699 = vld [vmem:[%s1686 + $0x60] sm:$0xff]
      %v1700 = vld [vmem:[%s1686 + $0x68] sm:$0xff]
      %v1701 = vld [vmem:[%s1686 + $0x70] sm:$0xff]
      %v1702 = vld [vmem:[%s1686 + $0x78] sm:$0xff]
      %v1703 = vld [vmem:[%s1686 + $0x80] sm:$0xff]
      %v1704 = vld [vmem:[%s1686 + $0x88] sm:$0xff]
      %v1705 = vld [vmem:[%s1686 + $0x90] sm:$0xff]
      %v1706 = vld [vmem:[%s1686 + $0x98] sm:$0xff]
      %v1707 = vld [vmem:[%s1686 + $0xa0] sm:$0xff]
      %v1708 = vld [vmem:[%s1686 + $0xa8] sm:$0xff]
      %v1709 = vld [vmem:[%s1686 + $0xb0] sm:$0xff]
      %v1710 = vld [vmem:[%s1686 + $0xb8] sm:$0xff]
      %v1711 = vld [vmem:[%s1686 + $0xc0] sm:$0xff]
      %v1712 = vld [vmem:[%s1686 + $0xc8] sm:$0xff]
      %v1713 = vld [vmem:[%s1686 + $0xd0] sm:$0xff]
      %v1714 = vld [vmem:[%s1686 + $0xd8] sm:$0xff]
      %v1715 = vld [vmem:[%s1686 + $0xe0] sm:$0xff]
      %v1716 = vld [vmem:[%s1686 + $0xe8] sm:$0xff]
      %v1717 = vld [vmem:[%s1686 + $0xf0] sm:$0xff]
      %v1718 = vld [vmem:[%s1686 + $0xf8] sm:$0xff]
      %s1719 = scalar_lea.vmem %s3, 2
      %v1720 = vld [vmem:[%s1719] sm:$0x1]
      %v1722 = vlaneseq
      %v1723 = vshrl.u32 %v1722, 7
      %v1724 = vsub.s32 0, %v1723
      %v1725 = vrot.slane %v1720, %v1724
      %1727 = vmatprep.subr.mxu0 0.0
      %1728 = vmatpush1.msra.mxu0 %v1687
      %1729 = vmatprep.subr.mxu0 0.0
      %1730 = vmatpush1.msra.mxu0 %v1688
      %1731 = vmatprep.subr.mxu0 0.0
      %1732 = vmatpush1.msra.mxu0 %v1689
      %1733 = vmatprep.subr.mxu0 0.0
      %1734 = vmatpush1.msra.mxu0 %v1690
      %1735 = vmatprep.subr.mxu0 0.0
      %1736 = vmatpush1.msra.mxu0 %v1691
      %1737 = vmatprep.subr.mxu0 0.0
      %1738 = vmatpush1.msra.mxu0 %v1692
      %1739 = vmatprep.subr.mxu0 0.0
      %1740 = vmatpush1.msra.mxu0 %v1693
      %1741 = vmatprep.subr.mxu0 0.0
      %1742 = vmatpush1.msra.mxu0 %v1694
      %1743 = vmatprep.subr.mxu0 0.0
      %1744 = vmatpush1.msra.mxu0 %v1695
      %1745 = vmatprep.subr.mxu0 0.0
      %1746 = vmatpush1.msra.mxu0 %v1696
      %1747 = vmatprep.subr.mxu0 0.0
      %1748 = vmatpush1.msra.mxu0 %v1697
      %1749 = vmatprep.subr.mxu0 0.0
      %1750 = vmatpush1.msra.mxu0 %v1698
      %1751 = vmatprep.subr.mxu0 0.0
      %1752 = vmatpush1.msra.mxu0 %v1699
      %1753 = vmatprep.subr.mxu0 0.0
      %1754 = vmatpush1.msra.mxu0 %v1700
      %1755 = vmatprep.subr.mxu0 0.0
      %1756 = vmatpush1.msra.mxu0 %v1701
      %1757 = vmatprep.subr.mxu0 0.0
      %1758 = vmatpush1.msra.mxu0 %v1702
      %1759 = vmatprep.subr.mxu0 0.0
      %1760 = vmatpush1.msra.mxu0 %v1703
      %1761 = vmatprep.subr.mxu0 0.0
      %1762 = vmatpush1.msra.mxu0 %v1704
      %1763 = vmatprep.subr.mxu0 0.0
      %1764 = vmatpush1.msra.mxu0 %v1705
      %1765 = vmatprep.subr.mxu0 0.0
      %1766 = vmatpush1.msra.mxu0 %v1706
      %1767 = vmatprep.subr.mxu0 0.0
      %1768 = vmatpush1.msra.mxu0 %v1707
      %1769 = vmatprep.subr.mxu0 0.0
      %1770 = vmatpush1.msra.mxu0 %v1708
      %1771 = vmatprep.subr.mxu0 0.0
      %1772 = vmatpush1.msra.mxu0 %v1709
      %1773 = vmatprep.subr.mxu0 0.0
      %1774 = vmatpush1.msra.mxu0 %v1710
      %1775 = vmatprep.subr.mxu0 0.0
      %1776 = vmatpush1.msra.mxu0 %v1711
      %1777 = vmatprep.subr.mxu0 0.0
      %1778 = vmatpush1.msra.mxu0 %v1712
      %1779 = vmatprep.subr.mxu0 0.0
      %1780 = vmatpush1.msra.mxu0 %v1713
      %1781 = vmatprep.subr.mxu0 0.0
      %1782 = vmatpush1.msra.mxu0 %v1714
      %1783 = vmatprep.subr.mxu0 0.0
      %1784 = vmatpush1.msra.mxu0 %v1715
      %1785 = vmatprep.subr.mxu0 0.0
      %1786 = vmatpush1.msra.mxu0 %v1716
      %1787 = vmatprep.subr.mxu0 0.0
      %1788 = vmatpush1.msra.mxu0 %v1717
      %1789 = vmatprep.subr.mxu0 0.0
      %1790 = vmatpush1.msra.mxu0 %v1718
      %1791 = vmatprep.mubr.f32.mxu0 %v490
      %1792 = vmatmul.mubr.f32.gmra.mrb[0].mxu0 %v488
      %v1793 = vpop.f32.mrb[0].mxu0
      %v1794 = vadd.f32 %v1725, %v1793
      %v1795 = vpop.f32.mrb[0].mxu0
      %1796 = vmatprep.mubr.f32.mxu0 %v496
      %1797 = vmatmul.mubr.f32.gmra.mrb[0].mxu0 %v494
      %v1798 = vpop.f32.mrb[0].mxu0
      %v1799 = vadd.f32 %v1725, %v1798
      %v1800 = vpop.f32.mrb[0].mxu0
      %1801 = vmatprep.mubr.f32.mxu0 %v502
      %1802 = vmatmul.mubr.f32.gmra.mrb[0].mxu0 %v500
      %v1803 = vpop.f32.mrb[0].mxu0
      %v1804 = vadd.f32 %v1725, %v1803
      %v1805 = vpop.f32.mrb[0].mxu0
      %1806 = vmatprep.mubr.f32.mxu0 %v508
      %1807 = vmatmul.mubr.f32.gmra.mrb[0].mxu0 %v506
      %v1808 = vpop.f32.mrb[0].mxu0
      %v1809 = vadd.f32 %v1725, %v1808
      %v1810 = vpop.f32.mrb[0].mxu0
      %1811 = vmatprep.mubr.f32.mxu0 %v514
      %1812 = vmatmul.mubr.f32.gmra.mrb[0].mxu0 %v512
      %v1813 = vpop.f32.mrb[0].mxu0
      %v1814 = vadd.f32 %v1725, %v1813
      %v1815 = vpop.f32.mrb[0].mxu0
      %1816 = vdwg.mxu0
      %v1817 = vmax.f32 %v1794, 0.0
      %v1818 = vmax.f32 %v1799, 0.0
      %v1819 = vmax.f32 %v1804, 0.0
      %v1820 = vmax.f32 %v1809, 0.0
      %v1821 = vmax.f32 %v1814, 0.0
      %s1822 = scalar_lea.vmem %s4, 656
      %v1823 = vld [vmem:[%s1822] sm:$0xff]
      %v1824 = vld [vmem:[%s1822 + $0x8] sm:$0xff]
      %v1825 = vld [vmem:[%s1822 + $0x10] sm:$0xff]
      %v1826 = vld [vmem:[%s1822 + $0x18] sm:$0xff]
      %v1827 = vld [vmem:[%s1822 + $0x20] sm:$0xff]
      %v1828 = vld [vmem:[%s1822 + $0x28] sm:$0xff]
      %v1829 = vld [vmem:[%s1822 + $0x30] sm:$0xff]
      %v1830 = vld [vmem:[%s1822 + $0x38] sm:$0xff]
      %v1831 = vld [vmem:[%s1822 + $0x40] sm:$0xff]
      %v1832 = vld [vmem:[%s1822 + $0x48] sm:$0xff]
      %v1833 = vld [vmem:[%s1822 + $0x50] sm:$0xff]
      %v1834 = vld [vmem:[%s1822 + $0x58] sm:$0xff]
      %v1835 = vld [vmem:[%s1822 + $0x60] sm:$0xff]
      %v1836 = vld [vmem:[%s1822 + $0x68] sm:$0xff]
      %v1837 = vld [vmem:[%s1822 + $0x70] sm:$0xff]
      %v1838 = vld [vmem:[%s1822 + $0x78] sm:$0xff]
      %v1839 = vld [vmem:[%s1822 + $0x80] sm:$0xff]
      %v1840 = vld [vmem:[%s1822 + $0x88] sm:$0xff]
      %v1841 = vld [vmem:[%s1822 + $0x90] sm:$0xff]
      %v1842 = vld [vmem:[%s1822 + $0x98] sm:$0xff]
      %v1843 = vld [vmem:[%s1822 + $0xa0] sm:$0xff]
      %v1844 = vld [vmem:[%s1822 + $0xa8] sm:$0xff]
      %v1845 = vld [vmem:[%s1822 + $0xb0] sm:$0xff]
      %v1846 = vld [vmem:[%s1822 + $0xb8] sm:$0xff]
      %v1847 = vld [vmem:[%s1822 + $0xc0] sm:$0xff]
      %v1848 = vld [vmem:[%s1822 + $0xc8] sm:$0xff]
      %v1849 = vld [vmem:[%s1822 + $0xd0] sm:$0xff]
      %v1850 = vld [vmem:[%s1822 + $0xd8] sm:$0xff]
      %v1851 = vld [vmem:[%s1822 + $0xe0] sm:$0xff]
      %v1852 = vld [vmem:[%s1822 + $0xe8] sm:$0xff]
      %v1853 = vld [vmem:[%s1822 + $0xf0] sm:$0xff]
      %v1854 = vld [vmem:[%s1822 + $0xf8] sm:$0xff]
      %v1855 = vld [vmem:[%s1822 + $0x100] sm:$0xff]
      %v1856 = vld [vmem:[%s1822 + $0x108] sm:$0xff]
      %v1857 = vld [vmem:[%s1822 + $0x110] sm:$0xff]
      %v1858 = vld [vmem:[%s1822 + $0x118] sm:$0xff]
      %v1859 = vld [vmem:[%s1822 + $0x120] sm:$0xff]
      %v1860 = vld [vmem:[%s1822 + $0x128] sm:$0xff]
      %v1861 = vld [vmem:[%s1822 + $0x130] sm:$0xff]
      %v1862 = vld [vmem:[%s1822 + $0x138] sm:$0xff]
      %v1863 = vld [vmem:[%s1822 + $0x140] sm:$0xf]
      %v1865 = vsel %vm721, %v1823, 0
      %v1868 = vsel %vm721, %v1824, 0
      %v1871 = vsel %vm721, %v1825, 0
      %v1874 = vsel %vm721, %v1826, 0
      %v1877 = vsel %vm721, %v1827, 0
      %v1880 = vsel %vm721, %v1828, 0
      %v1883 = vsel %vm721, %v1829, 0
      %v1886 = vsel %vm721, %v1830, 0
      %v1889 = vsel %vm721, %v1831, 0
      %v1892 = vsel %vm721, %v1832, 0
      %v1895 = vsel %vm721, %v1833, 0
      %v1898 = vsel %vm721, %v1834, 0
      %v1901 = vsel %vm721, %v1835, 0
      %v1904 = vsel %vm721, %v1836, 0
      %v1907 = vsel %vm721, %v1837, 0
      %v1910 = vsel %vm721, %v1838, 0
      %v1913 = vsel %vm721, %v1839, 0
      %v1916 = vsel %vm721, %v1840, 0
      %v1919 = vsel %vm721, %v1841, 0
      %v1922 = vsel %vm721, %v1842, 0
      %v1925 = vsel %vm721, %v1843, 0
      %v1928 = vsel %vm721, %v1844, 0
      %v1931 = vsel %vm721, %v1845, 0
      %v1934 = vsel %vm721, %v1846, 0
      %v1937 = vsel %vm721, %v1847, 0
      %v1940 = vsel %vm721, %v1848, 0
      %v1943 = vsel %vm721, %v1849, 0
      %v1946 = vsel %vm721, %v1850, 0
      %v1949 = vsel %vm721, %v1851, 0
      %v1952 = vsel %vm721, %v1852, 0
      %v1955 = vsel %vm721, %v1853, 0
      %v1958 = vsel %vm721, %v1854, 0
      %v1961 = vsel %vm721, %v1855, 0
      %v1964 = vsel %vm721, %v1856, 0
      %v1967 = vsel %vm721, %v1857, 0
      %v1970 = vsel %vm721, %v1858, 0
      %v1973 = vsel %vm721, %v1859, 0
      %v1976 = vsel %vm721, %v1860, 0
      %v1979 = vsel %vm721, %v1861, 0
      %v1982 = vsel %vm721, %v1862, 0
      %v1985 = vsel %vm721, %v1863, 0
      %1987 = vmatprep.subr.mxu0 0.0
      %1988 = vmatpush1.msra.mxu0 %v1817
      %1989 = vmatprep.subr.mxu0 0.0
      %1990 = vmatpush1.msra.mxu0 %v1818
      %1991 = vmatprep.subr.mxu0 0.0
      %1992 = vmatpush1.msra.mxu0 %v1819
      %1993 = vmatprep.subr.mxu0 0.0
      %1994 = vmatpush1.msra.mxu0 %v1820
      %1995 = vmatprep.subr.mxu0 0.0
      %1996 = vmatpush1.msra.mxu0 %v1821
      %1997 = vmatprep.subr.mxu0 0.0
      %1998 = vmatpush1.msra.mxu0 0.0
      %1999 = vmatprep.subr.mxu0 0.0
      %2000 = vmatpush1.msra.mxu0 0.0
      %2001 = vmatprep.subr.mxu0 0.0
      %2002 = vmatpush1.msra.mxu0 0.0
      %2003 = vmatprep.subr.mxu0 0.0
      %2004 = vmatpush1.msra.mxu0 0.0
      %2005 = vmatprep.subr.mxu0 0.0
      %2006 = vmatpush1.msra.mxu0 0.0
      %2007 = vmatprep.subr.mxu0 0.0
      %2008 = vmatpush1.msra.mxu0 0.0
      %2009 = vmatprep.subr.mxu0 0.0
      %2010 = vmatpush1.msra.mxu0 0.0
      %2011 = vmatprep.subr.mxu0 0.0
      %2012 = vmatpush1.msra.mxu0 0.0
      %2013 = vmatprep.subr.mxu0 0.0
      %2014 = vmatpush1.msra.mxu0 0.0
      %2015 = vmatprep.subr.mxu0 0.0
      %2016 = vmatpush1.msra.mxu0 0.0
      %2017 = vmatprep.subr.mxu0 0.0
      %2018 = vmatpush1.msra.mxu0 0.0
      %2019 = vmatprep.subr.mxu0 0.0
      %2020 = vmatpush1.msra.mxu0 0.0
      %2021 = vmatprep.subr.mxu0 0.0
      %2022 = vmatpush1.msra.mxu0 0.0
      %2023 = vmatprep.subr.mxu0 0.0
      %2024 = vmatpush1.msra.mxu0 0.0
      %2025 = vmatprep.subr.mxu0 0.0
      %2026 = vmatpush1.msra.mxu0 0.0
      %2027 = vmatprep.subr.mxu0 0.0
      %2028 = vmatpush1.msra.mxu0 0.0
      %2029 = vmatprep.subr.mxu0 0.0
      %2030 = vmatpush1.msra.mxu0 0.0
      %2031 = vmatprep.subr.mxu0 0.0
      %2032 = vmatpush1.msra.mxu0 0.0
      %2033 = vmatprep.subr.mxu0 0.0
      %2034 = vmatpush1.msra.mxu0 0.0
      %2035 = vmatprep.subr.mxu0 0.0
      %2036 = vmatpush1.msra.mxu0 0.0
      %2037 = vmatprep.subr.mxu0 0.0
      %2038 = vmatpush1.msra.mxu0 0.0
      %2039 = vmatprep.subr.mxu0 0.0
      %2040 = vmatpush1.msra.mxu0 0.0
      %2041 = vmatprep.subr.mxu0 0.0
      %2042 = vmatpush1.msra.mxu0 0.0
      %2043 = vmatprep.subr.mxu0 0.0
      %2044 = vmatpush1.msra.mxu0 0.0
      %2045 = vmatprep.subr.mxu0 0.0
      %2046 = vmatpush1.msra.mxu0 0.0
      %2047 = vmatprep.subr.mxu0 0.0
      %2048 = vmatpush1.msra.mxu0 0.0
      %2049 = vmatprep.subr.mxu0 0.0
      %2050 = vmatpush1.msra.mxu0 0.0
      %2051 = vmatprep.mubr.f32.mxu0 0.0
      %2052 = vmatmul.mubr.f32.gmra.mrb[0].mxu0 %v1865
      %v2053 = vpop.f32.mrb[0].mxu0
      %v2054 = vadd.f32 0.0, %v2053
      %v2055 = vpop.f32.mrb[0].mxu0
      %2056 = vmatprep.mubr.f32.mxu0 0.0
      %2057 = vmatmul.mubr.f32.gmra.mrb[0].mxu0 %v1868
      %v2058 = vpop.f32.mrb[0].mxu0
      %v2059 = vadd.f32 0.0, %v2058
      %v2060 = vpop.f32.mrb[0].mxu0
      %2061 = vmatprep.mubr.f32.mxu0 0.0
      %2062 = vmatmul.mubr.f32.gmra.mrb[0].mxu0 %v1871
      %v2063 = vpop.f32.mrb[0].mxu0
      %v2064 = vadd.f32 0.0, %v2063
      %v2065 = vpop.f32.mrb[0].mxu0
      %2066 = vmatprep.mubr.f32.mxu0 0.0
      %2067 = vmatmul.mubr.f32.gmra.mrb[0].mxu0 %v1874
      %v2068 = vpop.f32.mrb[0].mxu0
      %v2069 = vadd.f32 0.0, %v2068
      %v2070 = vpop.f32.mrb[0].mxu0
      %2071 = vmatprep.mubr.f32.mxu0 0.0
      %2072 = vmatmul.mubr.f32.gmra.mrb[0].mxu0 %v1877
      %v2073 = vpop.f32.mrb[0].mxu0
      %v2074 = vadd.f32 0.0, %v2073
      %v2075 = vpop.f32.mrb[0].mxu0
      %2076 = vmatprep.mubr.f32.mxu0 0.0
      %2077 = vmatmul.mubr.f32.gmra.mrb[0].mxu0 %v1880
      %v2078 = vpop.f32.mrb[0].mxu0
      %v2079 = vadd.f32 0.0, %v2078
      %v2080 = vpop.f32.mrb[0].mxu0
      %2081 = vmatprep.mubr.f32.mxu0 0.0
      %2082 = vmatmul.mubr.f32.gmra.mrb[0].mxu0 %v1883
      %v2083 = vpop.f32.mrb[0].mxu0
      %v2084 = vadd.f32 0.0, %v2083
      %v2085 = vpop.f32.mrb[0].mxu0
      %2086 = vmatprep.mubr.f32.mxu0 0.0
      %2087 = vmatmul.mubr.f32.gmra.mrb[0].mxu0 %v1886
      %v2088 = vpop.f32.mrb[0].mxu0
      %v2089 = vadd.f32 0.0, %v2088
      %v2090 = vpop.f32.mrb[0].mxu0
      %2091 = vmatprep.mubr.f32.mxu0 0.0
      %2092 = vmatmul.mubr.f32.gmra.mrb[0].mxu0 %v1889
      %v2093 = vpop.f32.mrb[0].mxu0
      %v2094 = vadd.f32 0.0, %v2093
      %v2095 = vpop.f32.mrb[0].mxu0
      %2096 = vmatprep.mubr.f32.mxu0 0.0
      %2097 = vmatmul.mubr.f32.gmra.mrb[0].mxu0 %v1892
      %v2098 = vpop.f32.mrb[0].mxu0
      %v2099 = vadd.f32 0.0, %v2098
      %v2100 = vpop.f32.mrb[0].mxu0
      %2101 = vmatprep.mubr.f32.mxu0 0.0
      %2102 = vmatmul.mubr.f32.gmra.mrb[0].mxu0 %v1895
      %v2103 = vpop.f32.mrb[0].mxu0
      %v2104 = vadd.f32 0.0, %v2103
      %v2105 = vpop.f32.mrb[0].mxu0
      %2106 = vmatprep.mubr.f32.mxu0 0.0
      %2107 = vmatmul.mubr.f32.gmra.mrb[0].mxu0 %v1898
      %v2108 = vpop.f32.mrb[0].mxu0
      %v2109 = vadd.f32 0.0, %v2108
      %v2110 = vpop.f32.mrb[0].mxu0
      %2111 = vmatprep.mubr.f32.mxu0 0.0
      %2112 = vmatmul.mubr.f32.gmra.mrb[0].mxu0 %v1901
      %v2113 = vpop.f32.mrb[0].mxu0
      %v2114 = vadd.f32 0.0, %v2113
      %v2115 = vpop.f32.mrb[0].mxu0
      %2116 = vmatprep.mubr.f32.mxu0 0.0
      %2117 = vmatmul.mubr.f32.gmra.mrb[0].mxu0 %v1904
      %v2118 = vpop.f32.mrb[0].mxu0
      %v2119 = vadd.f32 0.0, %v2118
      %v2120 = vpop.f32.mrb[0].mxu0
      %2121 = vmatprep.mubr.f32.mxu0 0.0
      %2122 = vmatmul.mubr.f32.gmra.mrb[0].mxu0 %v1907
      %v2123 = vpop.f32.mrb[0].mxu0
      %v2124 = vadd.f32 0.0, %v2123
      %v2125 = vpop.f32.mrb[0].mxu0
      %2126 = vmatprep.mubr.f32.mxu0 0.0
      %2127 = vmatmul.mubr.f32.gmra.mrb[0].mxu0 %v1910
      %v2128 = vpop.f32.mrb[0].mxu0
      %v2129 = vadd.f32 0.0, %v2128
      %v2130 = vpop.f32.mrb[0].mxu0
      %2131 = vmatprep.mubr.f32.mxu0 0.0
      %2132 = vmatmul.mubr.f32.gmra.mrb[0].mxu0 %v1913
      %v2133 = vpop.f32.mrb[0].mxu0
      %v2134 = vadd.f32 0.0, %v2133
      %v2135 = vpop.f32.mrb[0].mxu0
      %2136 = vmatprep.mubr.f32.mxu0 0.0
      %2137 = vmatmul.mubr.f32.gmra.mrb[0].mxu0 %v1916
      %v2138 = vpop.f32.mrb[0].mxu0
      %v2139 = vadd.f32 0.0, %v2138
      %v2140 = vpop.f32.mrb[0].mxu0
      %2141 = vmatprep.mubr.f32.mxu0 0.0
      %2142 = vmatmul.mubr.f32.gmra.mrb[0].mxu0 %v1919
      %v2143 = vpop.f32.mrb[0].mxu0
      %v2144 = vadd.f32 0.0, %v2143
      %v2145 = vpop.f32.mrb[0].mxu0
      %2146 = vmatprep.mubr.f32.mxu0 0.0
      %2147 = vmatmul.mubr.f32.gmra.mrb[0].mxu0 %v1922
      %v2148 = vpop.f32.mrb[0].mxu0
      %v2149 = vadd.f32 0.0, %v2148
      %v2150 = vpop.f32.mrb[0].mxu0
      %2151 = vmatprep.mubr.f32.mxu0 0.0
      %2152 = vmatmul.mubr.f32.gmra.mrb[0].mxu0 %v1925
      %v2153 = vpop.f32.mrb[0].mxu0
      %v2154 = vadd.f32 0.0, %v2153
      %v2155 = vpop.f32.mrb[0].mxu0
      %2156 = vmatprep.mubr.f32.mxu0 0.0
      %2157 = vmatmul.mubr.f32.gmra.mrb[0].mxu0 %v1928
      %v2158 = vpop.f32.mrb[0].mxu0
      %v2159 = vadd.f32 0.0, %v2158
      %v2160 = vpop.f32.mrb[0].mxu0
      %2161 = vmatprep.mubr.f32.mxu0 0.0
      %2162 = vmatmul.mubr.f32.gmra.mrb[0].mxu0 %v1931
      %v2163 = vpop.f32.mrb[0].mxu0
      %v2164 = vadd.f32 0.0, %v2163
      %v2165 = vpop.f32.mrb[0].mxu0
      %2166 = vmatprep.mubr.f32.mxu0 0.0
      %2167 = vmatmul.mubr.f32.gmra.mrb[0].mxu0 %v1934
      %v2168 = vpop.f32.mrb[0].mxu0
      %v2169 = vadd.f32 0.0, %v2168
      %v2170 = vpop.f32.mrb[0].mxu0
      %2171 = vmatprep.mubr.f32.mxu0 0.0
      %2172 = vmatmul.mubr.f32.gmra.mrb[0].mxu0 %v1937
      %v2173 = vpop.f32.mrb[0].mxu0
      %v2174 = vadd.f32 0.0, %v2173
      %v2175 = vpop.f32.mrb[0].mxu0
      %2176 = vmatprep.mubr.f32.mxu0 0.0
      %2177 = vmatmul.mubr.f32.gmra.mrb[0].mxu0 %v1940
      %v2178 = vpop.f32.mrb[0].mxu0
      %v2179 = vadd.f32 0.0, %v2178
      %v2180 = vpop.f32.mrb[0].mxu0
      %2181 = vmatprep.mubr.f32.mxu0 0.0
      %2182 = vmatmul.mubr.f32.gmra.mrb[0].mxu0 %v1943
      %v2183 = vpop.f32.mrb[0].mxu0
      %v2184 = vadd.f32 0.0, %v2183
      %v2185 = vpop.f32.mrb[0].mxu0
      %2186 = vmatprep.mubr.f32.mxu0 0.0
      %2187 = vmatmul.mubr.f32.gmra.mrb[0].mxu0 %v1946
      %v2188 = vpop.f32.mrb[0].mxu0
      %v2189 = vadd.f32 0.0, %v2188
      %v2190 = vpop.f32.mrb[0].mxu0
      %2191 = vmatprep.mubr.f32.mxu0 0.0
      %2192 = vmatmul.mubr.f32.gmra.mrb[0].mxu0 %v1949
      %v2193 = vpop.f32.mrb[0].mxu0
      %v2194 = vadd.f32 0.0, %v2193
      %v2195 = vpop.f32.mrb[0].mxu0
      %2196 = vmatprep.mubr.f32.mxu0 0.0
      %2197 = vmatmul.mubr.f32.gmra.mrb[0].mxu0 %v1952
      %v2198 = vpop.f32.mrb[0].mxu0
      %v2199 = vadd.f32 0.0, %v2198
      %v2200 = vpop.f32.mrb[0].mxu0
      %2201 = vmatprep.mubr.f32.mxu0 0.0
      %2202 = vmatmul.mubr.f32.gmra.mrb[0].mxu0 %v1955
      %v2203 = vpop.f32.mrb[0].mxu0
      %v2204 = vadd.f32 0.0, %v2203
      %v2205 = vpop.f32.mrb[0].mxu0
      %2206 = vmatprep.mubr.f32.mxu0 0.0
      %2207 = vmatmul.mubr.f32.gmra.mrb[0].mxu0 %v1958
      %v2208 = vpop.f32.mrb[0].mxu0
      %v2209 = vadd.f32 0.0, %v2208
      %v2210 = vpop.f32.mrb[0].mxu0
      %2211 = vmatprep.mubr.f32.mxu0 0.0
      %2212 = vmatmul.mubr.f32.gmra.mrb[0].mxu0 %v1961
      %v2213 = vpop.f32.mrb[0].mxu0
      %v2214 = vadd.f32 0.0, %v2213
      %v2215 = vpop.f32.mrb[0].mxu0
      %2216 = vmatprep.mubr.f32.mxu0 0.0
      %2217 = vmatmul.mubr.f32.gmra.mrb[0].mxu0 %v1964
      %v2218 = vpop.f32.mrb[0].mxu0
      %v2219 = vadd.f32 0.0, %v2218
      %v2220 = vpop.f32.mrb[0].mxu0
      %2221 = vmatprep.mubr.f32.mxu0 0.0
      %2222 = vmatmul.mubr.f32.gmra.mrb[0].mxu0 %v1967
      %v2223 = vpop.f32.mrb[0].mxu0
      %v2224 = vadd.f32 0.0, %v2223
      %v2225 = vpop.f32.mrb[0].mxu0
      %2226 = vmatprep.mubr.f32.mxu0 0.0
      %2227 = vmatmul.mubr.f32.gmra.mrb[0].mxu0 %v1970
      %v2228 = vpop.f32.mrb[0].mxu0
      %v2229 = vadd.f32 0.0, %v2228
      %v2230 = vpop.f32.mrb[0].mxu0
      %2231 = vmatprep.mubr.f32.mxu0 0.0
      %2232 = vmatmul.mubr.f32.gmra.mrb[0].mxu0 %v1973
      %v2233 = vpop.f32.mrb[0].mxu0
      %v2234 = vadd.f32 0.0, %v2233
      %v2235 = vpop.f32.mrb[0].mxu0
      %2236 = vmatprep.mubr.f32.mxu0 0.0
      %2237 = vmatmul.mubr.f32.gmra.mrb[0].mxu0 %v1976
      %v2238 = vpop.f32.mrb[0].mxu0
      %v2239 = vadd.f32 0.0, %v2238
      %v2240 = vpop.f32.mrb[0].mxu0
      %2241 = vmatprep.mubr.f32.mxu0 0.0
      %2242 = vmatmul.mubr.f32.gmra.mrb[0].mxu0 %v1979
      %v2243 = vpop.f32.mrb[0].mxu0
      %v2244 = vadd.f32 0.0, %v2243
      %v2245 = vpop.f32.mrb[0].mxu0
      %2246 = vmatprep.mubr.f32.mxu0 0.0
      %2247 = vmatmul.mubr.f32.gmra.mrb[0].mxu0 %v1982
      %v2248 = vpop.f32.mrb[0].mxu0
      %v2249 = vadd.f32 0.0, %v2248
      %v2250 = vpop.f32.mrb[0].mxu0
      %2251 = vmatprep.mubr.f32.mxu0 0.0
      %2252 = vmatmul.mubr.f32.gmra.mrb[0].mxu0 %v1985
      %v2253 = vpop.f32.mrb[0].mxu0
      %v2254 = vadd.f32 0.0, %v2253
      %v2255 = vpop.f32.mrb[0].mxu0
      %2256 = vdwg.mxu0
      %s2257 = scalar_lea.vmem %s2, 768
      %v2258 = vld [vmem:[%s2257] sm:$0xff]
      %v2259 = vld [vmem:[%s2257 + $0x8] sm:$0xff]
      %v2260 = vld [vmem:[%s2257 + $0x10] sm:$0xff]
      %v2261 = vld [vmem:[%s2257 + $0x18] sm:$0xff]
      %v2262 = vld [vmem:[%s2257 + $0x20] sm:$0xff]
      %v2263 = vld [vmem:[%s2257 + $0x28] sm:$0xff]
      %v2264 = vld [vmem:[%s2257 + $0x30] sm:$0xff]
      %v2265 = vld [vmem:[%s2257 + $0x38] sm:$0xff]
      %v2266 = vld [vmem:[%s2257 + $0x40] sm:$0xff]
      %v2267 = vld [vmem:[%s2257 + $0x48] sm:$0xff]
      %v2268 = vld [vmem:[%s2257 + $0x50] sm:$0xff]
      %v2269 = vld [vmem:[%s2257 + $0x58] sm:$0xff]
      %v2270 = vld [vmem:[%s2257 + $0x60] sm:$0xff]
      %v2271 = vld [vmem:[%s2257 + $0x68] sm:$0xff]
      %v2272 = vld [vmem:[%s2257 + $0x70] sm:$0xff]
      %v2273 = vld [vmem:[%s2257 + $0x78] sm:$0xff]
      %v2274 = vld [vmem:[%s2257 + $0x80] sm:$0xff]
      %v2275 = vld [vmem:[%s2257 + $0x88] sm:$0xff]
      %v2276 = vld [vmem:[%s2257 + $0x90] sm:$0xff]
      %v2277 = vld [vmem:[%s2257 + $0x98] sm:$0xff]
      %v2278 = vld [vmem:[%s2257 + $0xa0] sm:$0xff]
      %v2279 = vld [vmem:[%s2257 + $0xa8] sm:$0xff]
      %v2280 = vld [vmem:[%s2257 + $0xb0] sm:$0xff]
      %v2281 = vld [vmem:[%s2257 + $0xb8] sm:$0xff]
      %v2282 = vld [vmem:[%s2257 + $0xc0] sm:$0xff]
      %v2283 = vld [vmem:[%s2257 + $0xc8] sm:$0xff]
      %v2284 = vld [vmem:[%s2257 + $0xd0] sm:$0xff]
      %v2285 = vld [vmem:[%s2257 + $0xd8] sm:$0xff]
      %v2286 = vld [vmem:[%s2257 + $0xe0] sm:$0xff]
      %v2287 = vld [vmem:[%s2257 + $0xe8] sm:$0xff]
      %v2288 = vld [vmem:[%s2257 + $0xf0] sm:$0xff]
      %v2289 = vld [vmem:[%s2257 + $0xf8] sm:$0xff]
      %s2290 = scalar_lea.vmem %s3, 3
      %v2291 = vld [vmem:[%s2290] sm:$0x1]
      %v2293 = vlaneseq
      %v2294 = vshrl.u32 %v2293, 7
      %v2295 = vsub.s32 0, %v2294
      %v2296 = vrot.slane %v2291, %v2295
      %2298 = vmatprep.subr.mxu0 0.0
      %2299 = vmatpush1.msra.mxu0 %v2258
      %2300 = vmatprep.subr.mxu0 0.0
      %2301 = vmatpush1.msra.mxu0 %v2259
      %2302 = vmatprep.subr.mxu0 0.0
      %2303 = vmatpush1.msra.mxu0 %v2260
      %2304 = vmatprep.subr.mxu0 0.0
      %2305 = vmatpush1.msra.mxu0 %v2261
      %2306 = vmatprep.subr.mxu0 0.0
      %2307 = vmatpush1.msra.mxu0 %v2262
      %2308 = vmatprep.subr.mxu0 0.0
      %2309 = vmatpush1.msra.mxu0 %v2263
      %2310 = vmatprep.subr.mxu0 0.0
      %2311 = vmatpush1.msra.mxu0 %v2264
      %2312 = vmatprep.subr.mxu0 0.0
      %2313 = vmatpush1.msra.mxu0 %v2265
      %2314 = vmatprep.subr.mxu0 0.0
      %2315 = vmatpush1.msra.mxu0 %v2266
      %2316 = vmatprep.subr.mxu0 0.0
      %2317 = vmatpush1.msra.mxu0 %v2267
      %2318 = vmatprep.subr.mxu0 0.0
      %2319 = vmatpush1.msra.mxu0 %v2268
      %2320 = vmatprep.subr.mxu0 0.0
      %2321 = vmatpush1.msra.mxu0 %v2269
      %2322 = vmatprep.subr.mxu0 0.0
      %2323 = vmatpush1.msra.mxu0 %v2270
      %2324 = vmatprep.subr.mxu0 0.0
      %2325 = vmatpush1.msra.mxu0 %v2271
      %2326 = vmatprep.subr.mxu0 0.0
      %2327 = vmatpush1.msra.mxu0 %v2272
      %2328 = vmatprep.subr.mxu0 0.0
      %2329 = vmatpush1.msra.mxu0 %v2273
      %2330 = vmatprep.subr.mxu0 0.0
      %2331 = vmatpush1.msra.mxu0 %v2274
      %2332 = vmatprep.subr.mxu0 0.0
      %2333 = vmatpush1.msra.mxu0 %v2275
      %2334 = vmatprep.subr.mxu0 0.0
      %2335 = vmatpush1.msra.mxu0 %v2276
      %2336 = vmatprep.subr.mxu0 0.0
      %2337 = vmatpush1.msra.mxu0 %v2277
      %2338 = vmatprep.subr.mxu0 0.0
      %2339 = vmatpush1.msra.mxu0 %v2278
      %2340 = vmatprep.subr.mxu0 0.0
      %2341 = vmatpush1.msra.mxu0 %v2279
      %2342 = vmatprep.subr.mxu0 0.0
      %2343 = vmatpush1.msra.mxu0 %v2280
      %2344 = vmatprep.subr.mxu0 0.0
      %2345 = vmatpush1.msra.mxu0 %v2281
      %2346 = vmatprep.subr.mxu0 0.0
      %2347 = vmatpush1.msra.mxu0 %v2282
      %2348 = vmatprep.subr.mxu0 0.0
      %2349 = vmatpush1.msra.mxu0 %v2283
      %2350 = vmatprep.subr.mxu0 0.0
      %2351 = vmatpush1.msra.mxu0 %v2284
      %2352 = vmatprep.subr.mxu0 0.0
      %2353 = vmatpush1.msra.mxu0 %v2285
      %2354 = vmatprep.subr.mxu0 0.0
      %2355 = vmatpush1.msra.mxu0 %v2286
      %2356 = vmatprep.subr.mxu0 0.0
      %2357 = vmatpush1.msra.mxu0 %v2287
      %2358 = vmatprep.subr.mxu0 0.0
      %2359 = vmatpush1.msra.mxu0 %v2288
      %2360 = vmatprep.subr.mxu0 0.0
      %2361 = vmatpush1.msra.mxu0 %v2289
      %2362 = vmatprep.mubr.f32.mxu0 %v520
      %2363 = vmatmul.mubr.f32.gmra.mrb[0].mxu0 %v518
      %v2364 = vpop.f32.mrb[0].mxu0
      %v2365 = vadd.f32 %v2296, %v2364
      %v2366 = vpop.f32.mrb[0].mxu0
      %2367 = vmatprep.mubr.f32.mxu0 %v526
      %2368 = vmatmul.mubr.f32.gmra.mrb[0].mxu0 %v524
      %v2369 = vpop.f32.mrb[0].mxu0
      %v2370 = vadd.f32 %v2296, %v2369
      %v2371 = vpop.f32.mrb[0].mxu0
      %2372 = vmatprep.mubr.f32.mxu0 %v532
      %2373 = vmatmul.mubr.f32.gmra.mrb[0].mxu0 %v530
      %v2374 = vpop.f32.mrb[0].mxu0
      %v2375 = vadd.f32 %v2296, %v2374
      %v2376 = vpop.f32.mrb[0].mxu0
      %2377 = vmatprep.mubr.f32.mxu0 %v538
      %2378 = vmatmul.mubr.f32.gmra.mrb[0].mxu0 %v536
      %v2379 = vpop.f32.mrb[0].mxu0
      %v2380 = vadd.f32 %v2296, %v2379
      %v2381 = vpop.f32.mrb[0].mxu0
      %2382 = vmatprep.mubr.f32.mxu0 %v544
      %2383 = vmatmul.mubr.f32.gmra.mrb[0].mxu0 %v542
      %v2384 = vpop.f32.mrb[0].mxu0
      %v2385 = vadd.f32 %v2296, %v2384
      %v2386 = vpop.f32.mrb[0].mxu0
      %2387 = vdwg.mxu0
      %v2388 = vmax.f32 %v2365, 0.0
      %v2389 = vmax.f32 %v2370, 0.0
      %v2390 = vmax.f32 %v2375, 0.0
      %v2391 = vmax.f32 %v2380, 0.0
      %v2392 = vmax.f32 %v2385, 0.0
      %s2393 = scalar_lea.vmem %s4, 984
      %v2394 = vld [vmem:[%s2393] sm:$0xff]
      %v2395 = vld [vmem:[%s2393 + $0x8] sm:$0xff]
      %v2396 = vld [vmem:[%s2393 + $0x10] sm:$0xff]
      %v2397 = vld [vmem:[%s2393 + $0x18] sm:$0xff]
      %v2398 = vld [vmem:[%s2393 + $0x20] sm:$0xff]
      %v2399 = vld [vmem:[%s2393 + $0x28] sm:$0xff]
      %v2400 = vld [vmem:[%s2393 + $0x30] sm:$0xff]
      %v2401 = vld [vmem:[%s2393 + $0x38] sm:$0xff]
      %v2402 = vld [vmem:[%s2393 + $0x40] sm:$0xff]
      %v2403 = vld [vmem:[%s2393 + $0x48] sm:$0xff]
      %v2404 = vld [vmem:[%s2393 + $0x50] sm:$0xff]
      %v2405 = vld [vmem:[%s2393 + $0x58] sm:$0xff]
      %v2406 = vld [vmem:[%s2393 + $0x60] sm:$0xff]
      %v2407 = vld [vmem:[%s2393 + $0x68] sm:$0xff]
      %v2408 = vld [vmem:[%s2393 + $0x70] sm:$0xff]
      %v2409 = vld [vmem:[%s2393 + $0x78] sm:$0xff]
      %v2410 = vld [vmem:[%s2393 + $0x80] sm:$0xff]
      %v2411 = vld [vmem:[%s2393 + $0x88] sm:$0xff]
      %v2412 = vld [vmem:[%s2393 + $0x90] sm:$0xff]
      %v2413 = vld [vmem:[%s2393 + $0x98] sm:$0xff]
      %v2414 = vld [vmem:[%s2393 + $0xa0] sm:$0xff]
      %v2415 = vld [vmem:[%s2393 + $0xa8] sm:$0xff]
      %v2416 = vld [vmem:[%s2393 + $0xb0] sm:$0xff]
      %v2417 = vld [vmem:[%s2393 + $0xb8] sm:$0xff]
      %v2418 = vld [vmem:[%s2393 + $0xc0] sm:$0xff]
      %v2419 = vld [vmem:[%s2393 + $0xc8] sm:$0xff]
      %v2420 = vld [vmem:[%s2393 + $0xd0] sm:$0xff]
      %v2421 = vld [vmem:[%s2393 + $0xd8] sm:$0xff]
      %v2422 = vld [vmem:[%s2393 + $0xe0] sm:$0xff]
      %v2423 = vld [vmem:[%s2393 + $0xe8] sm:$0xff]
      %v2424 = vld [vmem:[%s2393 + $0xf0] sm:$0xff]
      %v2425 = vld [vmem:[%s2393 + $0xf8] sm:$0xff]
      %v2426 = vld [vmem:[%s2393 + $0x100] sm:$0xff]
      %v2427 = vld [vmem:[%s2393 + $0x108] sm:$0xff]
      %v2428 = vld [vmem:[%s2393 + $0x110] sm:$0xff]
      %v2429 = vld [vmem:[%s2393 + $0x118] sm:$0xff]
      %v2430 = vld [vmem:[%s2393 + $0x120] sm:$0xff]
      %v2431 = vld [vmem:[%s2393 + $0x128] sm:$0xff]
      %v2432 = vld [vmem:[%s2393 + $0x130] sm:$0xff]
      %v2433 = vld [vmem:[%s2393 + $0x138] sm:$0xff]
      %v2434 = vld [vmem:[%s2393 + $0x140] sm:$0xf]
      %v2436 = vsel %vm721, %v2394, 0
      %v2439 = vsel %vm721, %v2395, 0
      %v2442 = vsel %vm721, %v2396, 0
      %v2445 = vsel %vm721, %v2397, 0
      %v2448 = vsel %vm721, %v2398, 0
      %v2451 = vsel %vm721, %v2399, 0
      %v2454 = vsel %vm721, %v2400, 0
      %v2457 = vsel %vm721, %v2401, 0
      %v2460 = vsel %vm721, %v2402, 0
      %v2463 = vsel %vm721, %v2403, 0
      %v2466 = vsel %vm721, %v2404, 0
      %v2469 = vsel %vm721, %v2405, 0
      %v2472 = vsel %vm721, %v2406, 0
      %v2475 = vsel %vm721, %v2407, 0
      %v2478 = vsel %vm721, %v2408, 0
      %v2481 = vsel %vm721, %v2409, 0
      %v2484 = vsel %vm721, %v2410, 0
      %v2487 = vsel %vm721, %v2411, 0
      %v2490 = vsel %vm721, %v2412, 0
      %v2493 = vsel %vm721, %v2413, 0
      %v2496 = vsel %vm721, %v2414, 0
      %v2499 = vsel %vm721, %v2415, 0
      %v2502 = vsel %vm721, %v2416, 0
      %v2505 = vsel %vm721, %v2417, 0
      %v2508 = vsel %vm721, %v2418, 0
      %v2511 = vsel %vm721, %v2419, 0
      %v2514 = vsel %vm721, %v2420, 0
      %v2517 = vsel %vm721, %v2421, 0
      %v2520 = vsel %vm721, %v2422, 0
      %v2523 = vsel %vm721, %v2423, 0
      %v2526 = vsel %vm721, %v2424, 0
      %v2529 = vsel %vm721, %v2425, 0
      %v2532 = vsel %vm721, %v2426, 0
      %v2535 = vsel %vm721, %v2427, 0
      %v2538 = vsel %vm721, %v2428, 0
      %v2541 = vsel %vm721, %v2429, 0
      %v2544 = vsel %vm721, %v2430, 0
      %v2547 = vsel %vm721, %v2431, 0
      %v2550 = vsel %vm721, %v2432, 0
      %v2553 = vsel %vm721, %v2433, 0
      %v2556 = vsel %vm721, %v2434, 0
      %2558 = vmatprep.subr.mxu0 0.0
      %2559 = vmatpush1.msra.mxu0 %v2388
      %2560 = vmatprep.subr.mxu0 0.0
      %2561 = vmatpush1.msra.mxu0 %v2389
      %2562 = vmatprep.subr.mxu0 0.0
      %2563 = vmatpush1.msra.mxu0 %v2390
      %2564 = vmatprep.subr.mxu0 0.0
      %2565 = vmatpush1.msra.mxu0 %v2391
      %2566 = vmatprep.subr.mxu0 0.0
      %2567 = vmatpush1.msra.mxu0 %v2392
      %2568 = vmatprep.subr.mxu0 0.0
      %2569 = vmatpush1.msra.mxu0 0.0
      %2570 = vmatprep.subr.mxu0 0.0
      %2571 = vmatpush1.msra.mxu0 0.0
      %2572 = vmatprep.subr.mxu0 0.0
      %2573 = vmatpush1.msra.mxu0 0.0
      %2574 = vmatprep.subr.mxu0 0.0
      %2575 = vmatpush1.msra.mxu0 0.0
      %2576 = vmatprep.subr.mxu0 0.0
      %2577 = vmatpush1.msra.mxu0 0.0
      %2578 = vmatprep.subr.mxu0 0.0
      %2579 = vmatpush1.msra.mxu0 0.0
      %2580 = vmatprep.subr.mxu0 0.0
      %2581 = vmatpush1.msra.mxu0 0.0
      %2582 = vmatprep.subr.mxu0 0.0
      %2583 = vmatpush1.msra.mxu0 0.0
      %2584 = vmatprep.subr.mxu0 0.0
      %2585 = vmatpush1.msra.mxu0 0.0
      %2586 = vmatprep.subr.mxu0 0.0
      %2587 = vmatpush1.msra.mxu0 0.0
      %2588 = vmatprep.subr.mxu0 0.0
      %2589 = vmatpush1.msra.mxu0 0.0
      %2590 = vmatprep.subr.mxu0 0.0
      %2591 = vmatpush1.msra.mxu0 0.0
      %2592 = vmatprep.subr.mxu0 0.0
      %2593 = vmatpush1.msra.mxu0 0.0
      %2594 = vmatprep.subr.mxu0 0.0
      %2595 = vmatpush1.msra.mxu0 0.0
      %2596 = vmatprep.subr.mxu0 0.0
      %2597 = vmatpush1.msra.mxu0 0.0
      %2598 = vmatprep.subr.mxu0 0.0
      %2599 = vmatpush1.msra.mxu0 0.0
      %2600 = vmatprep.subr.mxu0 0.0
      %2601 = vmatpush1.msra.mxu0 0.0
      %2602 = vmatprep.subr.mxu0 0.0
      %2603 = vmatpush1.msra.mxu0 0.0
      %2604 = vmatprep.subr.mxu0 0.0
      %2605 = vmatpush1.msra.mxu0 0.0
      %2606 = vmatprep.subr.mxu0 0.0
      %2607 = vmatpush1.msra.mxu0 0.0
      %2608 = vmatprep.subr.mxu0 0.0
      %2609 = vmatpush1.msra.mxu0 0.0
      %2610 = vmatprep.subr.mxu0 0.0
      %2611 = vmatpush1.msra.mxu0 0.0
      %2612 = vmatprep.subr.mxu0 0.0
      %2613 = vmatpush1.msra.mxu0 0.0
      %2614 = vmatprep.subr.mxu0 0.0
      %2615 = vmatpush1.msra.mxu0 0.0
      %2616 = vmatprep.subr.mxu0 0.0
      %2617 = vmatpush1.msra.mxu0 0.0
      %2618 = vmatprep.subr.mxu0 0.0
      %2619 = vmatpush1.msra.mxu0 0.0
      %2620 = vmatprep.subr.mxu0 0.0
      %2621 = vmatpush1.msra.mxu0 0.0
      %2622 = vmatprep.mubr.f32.mxu0 0.0
      %2623 = vmatmul.mubr.f32.gmra.mrb[0].mxu0 %v2436
      %v2624 = vpop.f32.mrb[0].mxu0
      %v2625 = vadd.f32 0.0, %v2624
      %v2626 = vpop.f32.mrb[0].mxu0
      %2627 = vmatprep.mubr.f32.mxu0 0.0
      %2628 = vmatmul.mubr.f32.gmra.mrb[0].mxu0 %v2439
      %v2629 = vpop.f32.mrb[0].mxu0
      %v2630 = vadd.f32 0.0, %v2629
      %v2631 = vpop.f32.mrb[0].mxu0
      %2632 = vmatprep.mubr.f32.mxu0 0.0
      %2633 = vmatmul.mubr.f32.gmra.mrb[0].mxu0 %v2442
      %v2634 = vpop.f32.mrb[0].mxu0
      %v2635 = vadd.f32 0.0, %v2634
      %v2636 = vpop.f32.mrb[0].mxu0
      %2637 = vmatprep.mubr.f32.mxu0 0.0
      %2638 = vmatmul.mubr.f32.gmra.mrb[0].mxu0 %v2445
      %v2639 = vpop.f32.mrb[0].mxu0
      %v2640 = vadd.f32 0.0, %v2639
      %v2641 = vpop.f32.mrb[0].mxu0
      %2642 = vmatprep.mubr.f32.mxu0 0.0
      %2643 = vmatmul.mubr.f32.gmra.mrb[0].mxu0 %v2448
      %v2644 = vpop.f32.mrb[0].mxu0
      %v2645 = vadd.f32 0.0, %v2644
      %v2646 = vpop.f32.mrb[0].mxu0
      %2647 = vmatprep.mubr.f32.mxu0 0.0
      %2648 = vmatmul.mubr.f32.gmra.mrb[0].mxu0 %v2451
      %v2649 = vpop.f32.mrb[0].mxu0
      %v2650 = vadd.f32 0.0, %v2649
      %v2651 = vpop.f32.mrb[0].mxu0
      %2652 = vmatprep.mubr.f32.mxu0 0.0
      %2653 = vmatmul.mubr.f32.gmra.mrb[0].mxu0 %v2454
      %v2654 = vpop.f32.mrb[0].mxu0
      %v2655 = vadd.f32 0.0, %v2654
      %v2656 = vpop.f32.mrb[0].mxu0
      %2657 = vmatprep.mubr.f32.mxu0 0.0
      %2658 = vmatmul.mubr.f32.gmra.mrb[0].mxu0 %v2457
      %v2659 = vpop.f32.mrb[0].mxu0
      %v2660 = vadd.f32 0.0, %v2659
      %v2661 = vpop.f32.mrb[0].mxu0
      %2662 = vmatprep.mubr.f32.mxu0 0.0
      %2663 = vmatmul.mubr.f32.gmra.mrb[0].mxu0 %v2460
      %v2664 = vpop.f32.mrb[0].mxu0
      %v2665 = vadd.f32 0.0, %v2664
      %v2666 = vpop.f32.mrb[0].mxu0
      %2667 = vmatprep.mubr.f32.mxu0 0.0
      %2668 = vmatmul.mubr.f32.gmra.mrb[0].mxu0 %v2463
      %v2669 = vpop.f32.mrb[0].mxu0
      %v2670 = vadd.f32 0.0, %v2669
      %v2671 = vpop.f32.mrb[0].mxu0
      %2672 = vmatprep.mubr.f32.mxu0 0.0
      %2673 = vmatmul.mubr.f32.gmra.mrb[0].mxu0 %v2466
      %v2674 = vpop.f32.mrb[0].mxu0
      %v2675 = vadd.f32 0.0, %v2674
      %v2676 = vpop.f32.mrb[0].mxu0
      %2677 = vmatprep.mubr.f32.mxu0 0.0
      %2678 = vmatmul.mubr.f32.gmra.mrb[0].mxu0 %v2469
      %v2679 = vpop.f32.mrb[0].mxu0
      %v2680 = vadd.f32 0.0, %v2679
      %v2681 = vpop.f32.mrb[0].mxu0
      %2682 = vmatprep.mubr.f32.mxu0 0.0
      %2683 = vmatmul.mubr.f32.gmra.mrb[0].mxu0 %v2472
      %v2684 = vpop.f32.mrb[0].mxu0
      %v2685 = vadd.f32 0.0, %v2684
      %v2686 = vpop.f32.mrb[0].mxu0
      %2687 = vmatprep.mubr.f32.mxu0 0.0
      %2688 = vmatmul.mubr.f32.gmra.mrb[0].mxu0 %v2475
      %v2689 = vpop.f32.mrb[0].mxu0
      %v2690 = vadd.f32 0.0, %v2689
      %v2691 = vpop.f32.mrb[0].mxu0
      %2692 = vmatprep.mubr.f32.mxu0 0.0
      %2693 = vmatmul.mubr.f32.gmra.mrb[0].mxu0 %v2478
      %v2694 = vpop.f32.mrb[0].mxu0
      %v2695 = vadd.f32 0.0, %v2694
      %v2696 = vpop.f32.mrb[0].mxu0
      %2697 = vmatprep.mubr.f32.mxu0 0.0
      %2698 = vmatmul.mubr.f32.gmra.mrb[0].mxu0 %v2481
      %v2699 = vpop.f32.mrb[0].mxu0
      %v2700 = vadd.f32 0.0, %v2699
      %v2701 = vpop.f32.mrb[0].mxu0
      %2702 = vmatprep.mubr.f32.mxu0 0.0
      %2703 = vmatmul.mubr.f32.gmra.mrb[0].mxu0 %v2484
      %v2704 = vpop.f32.mrb[0].mxu0
      %v2705 = vadd.f32 0.0, %v2704
      %v2706 = vpop.f32.mrb[0].mxu0
      %2707 = vmatprep.mubr.f32.mxu0 0.0
      %2708 = vmatmul.mubr.f32.gmra.mrb[0].mxu0 %v2487
      %v2709 = vpop.f32.mrb[0].mxu0
      %v2710 = vadd.f32 0.0, %v2709
      %v2711 = vpop.f32.mrb[0].mxu0
      %2712 = vmatprep.mubr.f32.mxu0 0.0
      %2713 = vmatmul.mubr.f32.gmra.mrb[0].mxu0 %v2490
      %v2714 = vpop.f32.mrb[0].mxu0
      %v2715 = vadd.f32 0.0, %v2714
      %v2716 = vpop.f32.mrb[0].mxu0
      %2717 = vmatprep.mubr.f32.mxu0 0.0
      %2718 = vmatmul.mubr.f32.gmra.mrb[0].mxu0 %v2493
      %v2719 = vpop.f32.mrb[0].mxu0
      %v2720 = vadd.f32 0.0, %v2719
      %v2721 = vpop.f32.mrb[0].mxu0
      %2722 = vmatprep.mubr.f32.mxu0 0.0
      %2723 = vmatmul.mubr.f32.gmra.mrb[0].mxu0 %v2496
      %v2724 = vpop.f32.mrb[0].mxu0
      %v2725 = vadd.f32 0.0, %v2724
      %v2726 = vpop.f32.mrb[0].mxu0
      %2727 = vmatprep.mubr.f32.mxu0 0.0
      %2728 = vmatmul.mubr.f32.gmra.mrb[0].mxu0 %v2499
      %v2729 = vpop.f32.mrb[0].mxu0
      %v2730 = vadd.f32 0.0, %v2729
      %v2731 = vpop.f32.mrb[0].mxu0
      %2732 = vmatprep.mubr.f32.mxu0 0.0
      %2733 = vmatmul.mubr.f32.gmra.mrb[0].mxu0 %v2502
      %v2734 = vpop.f32.mrb[0].mxu0
      %v2735 = vadd.f32 0.0, %v2734
      %v2736 = vpop.f32.mrb[0].mxu0
      %2737 = vmatprep.mubr.f32.mxu0 0.0
      %2738 = vmatmul.mubr.f32.gmra.mrb[0].mxu0 %v2505
      %v2739 = vpop.f32.mrb[0].mxu0
      %v2740 = vadd.f32 0.0, %v2739
      %v2741 = vpop.f32.mrb[0].mxu0
      %2742 = vmatprep.mubr.f32.mxu0 0.0
      %2743 = vmatmul.mubr.f32.gmra.mrb[0].mxu0 %v2508
      %v2744 = vpop.f32.mrb[0].mxu0
      %v2745 = vadd.f32 0.0, %v2744
      %v2746 = vpop.f32.mrb[0].mxu0
      %2747 = vmatprep.mubr.f32.mxu0 0.0
      %2748 = vmatmul.mubr.f32.gmra.mrb[0].mxu0 %v2511
      %v2749 = vpop.f32.mrb[0].mxu0
      %v2750 = vadd.f32 0.0, %v2749
      %v2751 = vpop.f32.mrb[0].mxu0
      %2752 = vmatprep.mubr.f32.mxu0 0.0
      %2753 = vmatmul.mubr.f32.gmra.mrb[0].mxu0 %v2514
      %v2754 = vpop.f32.mrb[0].mxu0
      %v2755 = vadd.f32 0.0, %v2754
      %v2756 = vpop.f32.mrb[0].mxu0
      %2757 = vmatprep.mubr.f32.mxu0 0.0
      %2758 = vmatmul.mubr.f32.gmra.mrb[0].mxu0 %v2517
      %v2759 = vpop.f32.mrb[0].mxu0
      %v2760 = vadd.f32 0.0, %v2759
      %v2761 = vpop.f32.mrb[0].mxu0
      %2762 = vmatprep.mubr.f32.mxu0 0.0
      %2763 = vmatmul.mubr.f32.gmra.mrb[0].mxu0 %v2520
      %v2764 = vpop.f32.mrb[0].mxu0
      %v2765 = vadd.f32 0.0, %v2764
      %v2766 = vpop.f32.mrb[0].mxu0
      %2767 = vmatprep.mubr.f32.mxu0 0.0
      %2768 = vmatmul.mubr.f32.gmra.mrb[0].mxu0 %v2523
      %v2769 = vpop.f32.mrb[0].mxu0
      %v2770 = vadd.f32 0.0, %v2769
      %v2771 = vpop.f32.mrb[0].mxu0
      %2772 = vmatprep.mubr.f32.mxu0 0.0
      %2773 = vmatmul.mubr.f32.gmra.mrb[0].mxu0 %v2526
      %v2774 = vpop.f32.mrb[0].mxu0
      %v2775 = vadd.f32 0.0, %v2774
      %v2776 = vpop.f32.mrb[0].mxu0
      %2777 = vmatprep.mubr.f32.mxu0 0.0
      %2778 = vmatmul.mubr.f32.gmra.mrb[0].mxu0 %v2529
      %v2779 = vpop.f32.mrb[0].mxu0
      %v2780 = vadd.f32 0.0, %v2779
      %v2781 = vpop.f32.mrb[0].mxu0
      %2782 = vmatprep.mubr.f32.mxu0 0.0
      %2783 = vmatmul.mubr.f32.gmra.mrb[0].mxu0 %v2532
      %v2784 = vpop.f32.mrb[0].mxu0
      %v2785 = vadd.f32 0.0, %v2784
      %v2786 = vpop.f32.mrb[0].mxu0
      %2787 = vmatprep.mubr.f32.mxu0 0.0
      %2788 = vmatmul.mubr.f32.gmra.mrb[0].mxu0 %v2535
      %v2789 = vpop.f32.mrb[0].mxu0
      %v2790 = vadd.f32 0.0, %v2789
      %v2791 = vpop.f32.mrb[0].mxu0
      %2792 = vmatprep.mubr.f32.mxu0 0.0
      %2793 = vmatmul.mubr.f32.gmra.mrb[0].mxu0 %v2538
      %v2794 = vpop.f32.mrb[0].mxu0
      %v2795 = vadd.f32 0.0, %v2794
      %v2796 = vpop.f32.mrb[0].mxu0
      %2797 = vmatprep.mubr.f32.mxu0 0.0
      %2798 = vmatmul.mubr.f32.gmra.mrb[0].mxu0 %v2541
      %v2799 = vpop.f32.mrb[0].mxu0
      %v2800 = vadd.f32 0.0, %v2799
      %v2801 = vpop.f32.mrb[0].mxu0
      %2802 = vmatprep.mubr.f32.mxu0 0.0
      %2803 = vmatmul.mubr.f32.gmra.mrb[0].mxu0 %v2544
      %v2804 = vpop.f32.mrb[0].mxu0
      %v2805 = vadd.f32 0.0, %v2804
      %v2806 = vpop.f32.mrb[0].mxu0
      %2807 = vmatprep.mubr.f32.mxu0 0.0
      %2808 = vmatmul.mubr.f32.gmra.mrb[0].mxu0 %v2547
      %v2809 = vpop.f32.mrb[0].mxu0
      %v2810 = vadd.f32 0.0, %v2809
      %v2811 = vpop.f32.mrb[0].mxu0
      %2812 = vmatprep.mubr.f32.mxu0 0.0
      %2813 = vmatmul.mubr.f32.gmra.mrb[0].mxu0 %v2550
      %v2814 = vpop.f32.mrb[0].mxu0
      %v2815 = vadd.f32 0.0, %v2814
      %v2816 = vpop.f32.mrb[0].mxu0
      %2817 = vmatprep.mubr.f32.mxu0 0.0
      %2818 = vmatmul.mubr.f32.gmra.mrb[0].mxu0 %v2553
      %v2819 = vpop.f32.mrb[0].mxu0
      %v2820 = vadd.f32 0.0, %v2819
      %v2821 = vpop.f32.mrb[0].mxu0
      %2822 = vmatprep.mubr.f32.mxu0 0.0
      %2823 = vmatmul.mubr.f32.gmra.mrb[0].mxu0 %v2556
      %v2824 = vpop.f32.mrb[0].mxu0
      %v2825 = vadd.f32 0.0, %v2824
      %v2826 = vpop.f32.mrb[0].mxu0
      %2827 = vdwg.mxu0
      %2869 = vrot.lane.b32.xlu0 %v1483, 64
      %v2870 = vpop.permute.xlu0 %2869
      %2871 = vrot.lane.b32.xlu0 %v1488, 64
      %v2872 = vpop.permute.xlu0 %2871
      %2873 = vrot.lane.b32.xlu0 %v1493, 64
      %v2874 = vpop.permute.xlu0 %2873
      %2875 = vrot.lane.b32.xlu0 %v1498, 64
      %v2876 = vpop.permute.xlu0 %2875
      %2877 = vrot.lane.b32.xlu0 %v1503, 64
      %v2878 = vpop.permute.xlu0 %2877
      %2879 = vrot.lane.b32.xlu0 %v1508, 64
      %v2880 = vpop.permute.xlu0 %2879
      %2881 = vrot.lane.b32.xlu0 %v1513, 64
      %v2882 = vpop.permute.xlu0 %2881
      %2883 = vrot.lane.b32.xlu0 %v1518, 64
      %v2884 = vpop.permute.xlu0 %2883
      %2885 = vrot.lane.b32.xlu0 %v1523, 64
      %v2886 = vpop.permute.xlu0 %2885
      %2887 = vrot.lane.b32.xlu0 %v1528, 64
      %v2888 = vpop.permute.xlu0 %2887
      %2889 = vrot.lane.b32.xlu0 %v1533, 64
      %v2890 = vpop.permute.xlu0 %2889
      %2891 = vrot.lane.b32.xlu0 %v1538, 64
      %v2892 = vpop.permute.xlu0 %2891
      %2893 = vrot.lane.b32.xlu0 %v1543, 64
      %v2894 = vpop.permute.xlu0 %2893
      %2895 = vrot.lane.b32.xlu0 %v1548, 64
      %v2896 = vpop.permute.xlu0 %2895
      %2897 = vrot.lane.b32.xlu0 %v1553, 64
      %v2898 = vpop.permute.xlu0 %2897
      %2899 = vrot.lane.b32.xlu0 %v1558, 64
      %v2900 = vpop.permute.xlu0 %2899
      %2901 = vrot.lane.b32.xlu0 %v1563, 64
      %v2902 = vpop.permute.xlu0 %2901
      %2903 = vrot.lane.b32.xlu0 %v1568, 64
      %v2904 = vpop.permute.xlu0 %2903
      %2905 = vrot.lane.b32.xlu0 %v1573, 64
      %v2906 = vpop.permute.xlu0 %2905
      %2907 = vrot.lane.b32.xlu0 %v1578, 64
      %v2908 = vpop.permute.xlu0 %2907
      %2909 = vrot.lane.b32.xlu0 %v1583, 64
      %v2910 = vpop.permute.xlu0 %2909
      %2911 = vrot.lane.b32.xlu0 %v1588, 64
      %v2912 = vpop.permute.xlu0 %2911
      %2913 = vrot.lane.b32.xlu0 %v1593, 64
      %v2914 = vpop.permute.xlu0 %2913
      %2915 = vrot.lane.b32.xlu0 %v1598, 64
      %v2916 = vpop.permute.xlu0 %2915
      %2917 = vrot.lane.b32.xlu0 %v1603, 64
      %v2918 = vpop.permute.xlu0 %2917
      %2919 = vrot.lane.b32.xlu0 %v1608, 64
      %v2920 = vpop.permute.xlu0 %2919
      %2921 = vrot.lane.b32.xlu0 %v1613, 64
      %v2922 = vpop.permute.xlu0 %2921
      %2923 = vrot.lane.b32.xlu0 %v1618, 64
      %v2924 = vpop.permute.xlu0 %2923
      %2925 = vrot.lane.b32.xlu0 %v1623, 64
      %v2926 = vpop.permute.xlu0 %2925
      %2927 = vrot.lane.b32.xlu0 %v1628, 64
      %v2928 = vpop.permute.xlu0 %2927
      %2929 = vrot.lane.b32.xlu0 %v1633, 64
      %v2930 = vpop.permute.xlu0 %2929
      %2931 = vrot.lane.b32.xlu0 %v1638, 64
      %v2932 = vpop.permute.xlu0 %2931
      %2933 = vrot.lane.b32.xlu0 %v1643, 64
      %v2934 = vpop.permute.xlu0 %2933
      %2935 = vrot.lane.b32.xlu0 %v1648, 64
      %v2936 = vpop.permute.xlu0 %2935
      %2937 = vrot.lane.b32.xlu0 %v1653, 64
      %v2938 = vpop.permute.xlu0 %2937
      %2939 = vrot.lane.b32.xlu0 %v1658, 64
      %v2940 = vpop.permute.xlu0 %2939
      %2941 = vrot.lane.b32.xlu0 %v1663, 64
      %v2942 = vpop.permute.xlu0 %2941
      %2943 = vrot.lane.b32.xlu0 %v1668, 64
      %v2944 = vpop.permute.xlu0 %2943
      %2945 = vrot.lane.b32.xlu0 %v1673, 64
      %v2946 = vpop.permute.xlu0 %2945
      %2947 = vrot.lane.b32.xlu0 %v1678, 64
      %v2948 = vpop.permute.xlu0 %2947
      %2949 = vrot.lane.b32.xlu0 %v1683, 64
      %v2950 = vpop.permute.xlu0 %2949
      %3033 = vrot.lane.b32.xlu0 %v2625, 64
      %v3034 = vpop.permute.xlu0 %3033
      %3035 = vrot.lane.b32.xlu0 %v2630, 64
      %v3036 = vpop.permute.xlu0 %3035
      %3037 = vrot.lane.b32.xlu0 %v2635, 64
      %v3038 = vpop.permute.xlu0 %3037
      %3039 = vrot.lane.b32.xlu0 %v2640, 64
      %v3040 = vpop.permute.xlu0 %3039
      %3041 = vrot.lane.b32.xlu0 %v2645, 64
      %v3042 = vpop.permute.xlu0 %3041
      %3043 = vrot.lane.b32.xlu0 %v2650, 64
      %v3044 = vpop.permute.xlu0 %3043
      %3045 = vrot.lane.b32.xlu0 %v2655, 64
      %v3046 = vpop.permute.xlu0 %3045
      %3047 = vrot.lane.b32.xlu0 %v2660, 64
      %v3048 = vpop.permute.xlu0 %3047
      %3049 = vrot.lane.b32.xlu0 %v2665, 64
      %v3050 = vpop.permute.xlu0 %3049
      %3051 = vrot.lane.b32.xlu0 %v2670, 64
      %v3052 = vpop.permute.xlu0 %3051
      %3053 = vrot.lane.b32.xlu0 %v2675, 64
      %v3054 = vpop.permute.xlu0 %3053
      %3055 = vrot.lane.b32.xlu0 %v2680, 64
      %v3056 = vpop.permute.xlu0 %3055
      %3057 = vrot.lane.b32.xlu0 %v2685, 64
      %v3058 = vpop.permute.xlu0 %3057
      %3059 = vrot.lane.b32.xlu0 %v2690, 64
      %v3060 = vpop.permute.xlu0 %3059
      %3061 = vrot.lane.b32.xlu0 %v2695, 64
      %v3062 = vpop.permute.xlu0 %3061
      %3063 = vrot.lane.b32.xlu0 %v2700, 64
      %v3064 = vpop.permute.xlu0 %3063
      %3065 = vrot.lane.b32.xlu0 %v2705, 64
      %v3066 = vpop.permute.xlu0 %3065
      %3067 = vrot.lane.b32.xlu0 %v2710, 64
      %v3068 = vpop.permute.xlu0 %3067
      %3069 = vrot.lane.b32.xlu0 %v2715, 64
      %v3070 = vpop.permute.xlu0 %3069
      %3071 = vrot.lane.b32.xlu0 %v2720, 64
      %v3072 = vpop.permute.xlu0 %3071
      %3073 = vrot.lane.b32.xlu0 %v2725, 64
      %v3074 = vpop.permute.xlu0 %3073
      %3075 = vrot.lane.b32.xlu0 %v2730, 64
      %v3076 = vpop.permute.xlu0 %3075
      %3077 = vrot.lane.b32.xlu0 %v2735, 64
      %v3078 = vpop.permute.xlu0 %3077
      %3079 = vrot.lane.b32.xlu0 %v2740, 64
      %v3080 = vpop.permute.xlu0 %3079
      %3081 = vrot.lane.b32.xlu0 %v2745, 64
      %v3082 = vpop.permute.xlu0 %3081
      %3083 = vrot.lane.b32.xlu0 %v2750, 64
      %v3084 = vpop.permute.xlu0 %3083
      %3085 = vrot.lane.b32.xlu0 %v2755, 64
      %v3086 = vpop.permute.xlu0 %3085
      %3087 = vrot.lane.b32.xlu0 %v2760, 64
      %v3088 = vpop.permute.xlu0 %3087
      %3089 = vrot.lane.b32.xlu0 %v2765, 64
      %v3090 = vpop.permute.xlu0 %3089
      %3091 = vrot.lane.b32.xlu0 %v2770, 64
      %v3092 = vpop.permute.xlu0 %3091
      %3093 = vrot.lane.b32.xlu0 %v2775, 64
      %v3094 = vpop.permute.xlu0 %3093
      %3095 = vrot.lane.b32.xlu0 %v2780, 64
      %v3096 = vpop.permute.xlu0 %3095
      %3097 = vrot.lane.b32.xlu0 %v2785, 64
      %v3098 = vpop.permute.xlu0 %3097
      %3099 = vrot.lane.b32.xlu0 %v2790, 64
      %v3100 = vpop.permute.xlu0 %3099
      %3101 = vrot.lane.b32.xlu0 %v2795, 64
      %v3102 = vpop.permute.xlu0 %3101
      %3103 = vrot.lane.b32.xlu0 %v2800, 64
      %v3104 = vpop.permute.xlu0 %3103
      %3105 = vrot.lane.b32.xlu0 %v2805, 64
      %v3106 = vpop.permute.xlu0 %3105
      %3107 = vrot.lane.b32.xlu0 %v2810, 64
      %v3108 = vpop.permute.xlu0 %3107
      %3109 = vrot.lane.b32.xlu0 %v2815, 64
      %v3110 = vpop.permute.xlu0 %3109
      %3111 = vrot.lane.b32.xlu0 %v2820, 64
      %v3112 = vpop.permute.xlu0 %3111
      %3113 = vrot.lane.b32.xlu0 %v2825, 64
      %v3114 = vpop.permute.xlu0 %3113
      %vm3156 = vcmask 523264
      %v3157 = vsel %vm3156, %v912, %v2870
      %v3158 = vsel %vm3156, %v917, %v2872
      %v3159 = vsel %vm3156, %v922, %v2874
      %v3160 = vsel %vm3156, %v927, %v2876
      %v3161 = vsel %vm3156, %v932, %v2878
      %v3162 = vsel %vm3156, %v937, %v2880
      %v3163 = vsel %vm3156, %v942, %v2882
      %v3164 = vsel %vm3156, %v947, %v2884
      %v3165 = vsel %vm3156, %v952, %v2886
      %v3166 = vsel %vm3156, %v957, %v2888
      %v3167 = vsel %vm3156, %v962, %v2890
      %v3168 = vsel %vm3156, %v967, %v2892
      %v3169 = vsel %vm3156, %v972, %v2894
      %v3170 = vsel %vm3156, %v977, %v2896
      %v3171 = vsel %vm3156, %v982, %v2898
      %v3172 = vsel %vm3156, %v987, %v2900
      %v3173 = vsel %vm3156, %v992, %v2902
      %v3174 = vsel %vm3156, %v997, %v2904
      %v3175 = vsel %vm3156, %v1002, %v2906
      %v3176 = vsel %vm3156, %v1007, %v2908
      %v3177 = vsel %vm3156, %v1012, %v2910
      %v3178 = vsel %vm3156, %v1017, %v2912
      %v3179 = vsel %vm3156, %v1022, %v2914
      %v3180 = vsel %vm3156, %v1027, %v2916
      %v3181 = vsel %vm3156, %v1032, %v2918
      %v3182 = vsel %vm3156, %v1037, %v2920
      %v3183 = vsel %vm3156, %v1042, %v2922
      %v3184 = vsel %vm3156, %v1047, %v2924
      %v3185 = vsel %vm3156, %v1052, %v2926
      %v3186 = vsel %vm3156, %v1057, %v2928
      %v3187 = vsel %vm3156, %v1062, %v2930
      %v3188 = vsel %vm3156, %v1067, %v2932
      %v3189 = vsel %vm3156, %v1072, %v2934
      %v3190 = vsel %vm3156, %v1077, %v2936
      %v3191 = vsel %vm3156, %v1082, %v2938
      %v3192 = vsel %vm3156, %v1087, %v2940
      %v3193 = vsel %vm3156, %v1092, %v2942
      %v3194 = vsel %vm3156, %v1097, %v2944
      %v3195 = vsel %vm3156, %v1102, %v2946
      %v3196 = vsel %vm3156, %v1107, %v2948
      %v3197 = vsel %vm3156, %v1112, %v2950
      %v3198 = vsel %vm3156, %v2054, %v3034
      %v3199 = vsel %vm3156, %v2059, %v3036
      %v3200 = vsel %vm3156, %v2064, %v3038
      %v3201 = vsel %vm3156, %v2069, %v3040
      %v3202 = vsel %vm3156, %v2074, %v3042
      %v3203 = vsel %vm3156, %v2079, %v3044
      %v3204 = vsel %vm3156, %v2084, %v3046
      %v3205 = vsel %vm3156, %v2089, %v3048
      %v3206 = vsel %vm3156, %v2094, %v3050
      %v3207 = vsel %vm3156, %v2099, %v3052
      %v3208 = vsel %vm3156, %v2104, %v3054
      %v3209 = vsel %vm3156, %v2109, %v3056
      %v3210 = vsel %vm3156, %v2114, %v3058
      %v3211 = vsel %vm3156, %v2119, %v3060
      %v3212 = vsel %vm3156, %v2124, %v3062
      %v3213 = vsel %vm3156, %v2129, %v3064
      %v3214 = vsel %vm3156, %v2134, %v3066
      %v3215 = vsel %vm3156, %v2139, %v3068
      %v3216 = vsel %vm3156, %v2144, %v3070
      %v3217 = vsel %vm3156, %v2149, %v3072
      %v3218 = vsel %vm3156, %v2154, %v3074
      %v3219 = vsel %vm3156, %v2159, %v3076
      %v3220 = vsel %vm3156, %v2164, %v3078
      %v3221 = vsel %vm3156, %v2169, %v3080
      %v3222 = vsel %vm3156, %v2174, %v3082
      %v3223 = vsel %vm3156, %v2179, %v3084
      %v3224 = vsel %vm3156, %v2184, %v3086
      %v3225 = vsel %vm3156, %v2189, %v3088
      %v3226 = vsel %vm3156, %v2194, %v3090
      %v3227 = vsel %vm3156, %v2199, %v3092
      %v3228 = vsel %vm3156, %v2204, %v3094
      %v3229 = vsel %vm3156, %v2209, %v3096
      %v3230 = vsel %vm3156, %v2214, %v3098
      %v3231 = vsel %vm3156, %v2219, %v3100
      %v3232 = vsel %vm3156, %v2224, %v3102
      %v3233 = vsel %vm3156, %v2229, %v3104
      %v3234 = vsel %vm3156, %v2234, %v3106
      %v3235 = vsel %vm3156, %v2239, %v3108
      %v3236 = vsel %vm3156, %v2244, %v3110
      %v3237 = vsel %vm3156, %v2249, %v3112
      %v3238 = vsel %vm3156, %v2254, %v3114
      %v3239 = vpack.c.bf16 %v3158, %v3157
      %v3240 = vpack.c.bf16 %v3199, %v3198
      %v3241 = vpack.c.bf16 %v3160, %v3159
      %v3242 = vpack.c.bf16 %v3201, %v3200
      %v3243 = vpack.c.bf16 %v3162, %v3161
      %v3244 = vpack.c.bf16 %v3203, %v3202
      %v3245 = vpack.c.bf16 %v3164, %v3163
      %v3246 = vpack.c.bf16 %v3205, %v3204
      %v3247 = vpack.c.bf16 %v3166, %v3165
      %v3248 = vpack.c.bf16 %v3207, %v3206
      %v3249 = vpack.c.bf16 %v3168, %v3167
      %v3250 = vpack.c.bf16 %v3209, %v3208
      %v3251 = vpack.c.bf16 %v3170, %v3169
      %v3252 = vpack.c.bf16 %v3211, %v3210
      %v3253 = vpack.c.bf16 %v3172, %v3171
      %v3254 = vpack.c.bf16 %v3213, %v3212
      %v3255 = vpack.c.bf16 %v3174, %v3173
      %v3256 = vpack.c.bf16 %v3215, %v3214
      %v3257 = vpack.c.bf16 %v3176, %v3175
      %v3258 = vpack.c.bf16 %v3217, %v3216
      %v3259 = vpack.c.bf16 %v3178, %v3177
      %v3260 = vpack.c.bf16 %v3219, %v3218
      %v3261 = vpack.c.bf16 %v3180, %v3179
      %v3262 = vpack.c.bf16 %v3221, %v3220
      %v3263 = vpack.c.bf16 %v3182, %v3181
      %v3264 = vpack.c.bf16 %v3223, %v3222
      %v3265 = vpack.c.bf16 %v3184, %v3183
      %v3266 = vpack.c.bf16 %v3225, %v3224
      %v3267 = vpack.c.bf16 %v3186, %v3185
      %v3268 = vpack.c.bf16 %v3227, %v3226
      %v3269 = vpack.c.bf16 %v3188, %v3187
      %v3270 = vpack.c.bf16 %v3229, %v3228
      %v3271 = vpack.c.bf16 %v3190, %v3189
      %v3272 = vpack.c.bf16 %v3231, %v3230
      %v3273 = vpack.c.bf16 %v3192, %v3191
      %v3274 = vpack.c.bf16 %v3233, %v3232
      %v3275 = vpack.c.bf16 %v3194, %v3193
      %v3276 = vpack.c.bf16 %v3235, %v3234
      %v3277 = vpack.c.bf16 %v3196, %v3195
      %v3278 = vpack.c.bf16 %v3237, %v3236
      %v3279 = vpack.c.bf16 %v3197, %v3197
      %v3280 = vpack.c.bf16 %v3238, %v3238
      %v3323 = vunpack.c.l.b16 %v3239
      %v3324 = vunpack.c.l.b16 %v3240
      %v3325 = vunpack.c.h.b16 %v3239
      %v3326 = vunpack.c.h.b16 %v3240
      %v3327 = vunpack.c.l.b16 %v3241
      %v3328 = vunpack.c.l.b16 %v3242
      %v3329 = vunpack.c.h.b16 %v3241
      %v3330 = vunpack.c.h.b16 %v3242
      %v3331 = vunpack.c.l.b16 %v3243
      %v3332 = vunpack.c.l.b16 %v3244
      %v3333 = vunpack.c.h.b16 %v3243
      %v3334 = vunpack.c.h.b16 %v3244
      %v3335 = vunpack.c.l.b16 %v3245
      %v3336 = vunpack.c.l.b16 %v3246
      %v3337 = vunpack.c.h.b16 %v3245
      %v3338 = vunpack.c.h.b16 %v3246
      %v3339 = vunpack.c.l.b16 %v3247
      %v3340 = vunpack.c.l.b16 %v3248
      %v3341 = vunpack.c.h.b16 %v3247
      %v3342 = vunpack.c.h.b16 %v3248
      %v3343 = vunpack.c.l.b16 %v3249
      %v3344 = vunpack.c.l.b16 %v3250
      %v3345 = vunpack.c.h.b16 %v3249
      %v3346 = vunpack.c.h.b16 %v3250
      %v3347 = vunpack.c.l.b16 %v3251
      %v3348 = vunpack.c.l.b16 %v3252
      %v3349 = vunpack.c.h.b16 %v3251
      %v3350 = vunpack.c.h.b16 %v3252
      %v3351 = vunpack.c.l.b16 %v3253
      %v3352 = vunpack.c.l.b16 %v3254
      %v3353 = vunpack.c.h.b16 %v3253
      %v3354 = vunpack.c.h.b16 %v3254
      %v3355 = vunpack.c.l.b16 %v3255
      %v3356 = vunpack.c.l.b16 %v3256
      %v3357 = vunpack.c.h.b16 %v3255
      %v3358 = vunpack.c.h.b16 %v3256
      %v3359 = vunpack.c.l.b16 %v3257
      %v3360 = vunpack.c.l.b16 %v3258
      %v3361 = vunpack.c.h.b16 %v3257
      %v3362 = vunpack.c.h.b16 %v3258
      %v3363 = vunpack.c.l.b16 %v3259
      %v3364 = vunpack.c.l.b16 %v3260
      %v3365 = vunpack.c.h.b16 %v3259
      %v3366 = vunpack.c.h.b16 %v3260
      %v3367 = vunpack.c.l.b16 %v3261
      %v3368 = vunpack.c.l.b16 %v3262
      %v3369 = vunpack.c.h.b16 %v3261
      %v3370 = vunpack.c.h.b16 %v3262
      %v3371 = vunpack.c.l.b16 %v3263
      %v3372 = vunpack.c.l.b16 %v3264
      %v3373 = vunpack.c.h.b16 %v3263
      %v3374 = vunpack.c.h.b16 %v3264
      %v3375 = vunpack.c.l.b16 %v3265
      %v3376 = vunpack.c.l.b16 %v3266
      %v3377 = vunpack.c.h.b16 %v3265
      %v3378 = vunpack.c.h.b16 %v3266
      %v3379 = vunpack.c.l.b16 %v3267
      %v3380 = vunpack.c.l.b16 %v3268
      %v3381 = vunpack.c.h.b16 %v3267
      %v3382 = vunpack.c.h.b16 %v3268
      %v3383 = vunpack.c.l.b16 %v3269
      %v3384 = vunpack.c.l.b16 %v3270
      %v3385 = vunpack.c.h.b16 %v3269
      %v3386 = vunpack.c.h.b16 %v3270
      %v3387 = vunpack.c.l.b16 %v3271
      %v3388 = vunpack.c.l.b16 %v3272
      %v3389 = vunpack.c.h.b16 %v3271
      %v3390 = vunpack.c.h.b16 %v3272
      %v3391 = vunpack.c.l.b16 %v3273
      %v3392 = vunpack.c.l.b16 %v3274
      %v3393 = vunpack.c.h.b16 %v3273
      %v3394 = vunpack.c.h.b16 %v3274
      %v3395 = vunpack.c.l.b16 %v3275
      %v3396 = vunpack.c.l.b16 %v3276
      %v3397 = vunpack.c.h.b16 %v3275
      %v3398 = vunpack.c.h.b16 %v3276
      %v3399 = vunpack.c.l.b16 %v3277
      %v3400 = vunpack.c.l.b16 %v3278
      %v3401 = vunpack.c.h.b16 %v3277
      %v3402 = vunpack.c.h.b16 %v3278
      %v3403 = vunpack.c.l.b16 %v3279
      %v3404 = vunpack.c.l.b16 %v3280
      %v3405 = vpack.c.b16 %v3324, %v3323
      %v3406 = vpack.c.b16 %v3326, %v3325
      %v3407 = vpack.c.b16 %v3328, %v3327
      %v3408 = vpack.c.b16 %v3330, %v3329
      %v3409 = vpack.c.b16 %v3332, %v3331
      %v3410 = vpack.c.b16 %v3334, %v3333
      %v3411 = vpack.c.b16 %v3336, %v3335
      %v3412 = vpack.c.b16 %v3338, %v3337
      %v3413 = vpack.c.b16 %v3340, %v3339
      %v3414 = vpack.c.b16 %v3342, %v3341
      %v3415 = vpack.c.b16 %v3344, %v3343
      %v3416 = vpack.c.b16 %v3346, %v3345
      %v3417 = vpack.c.b16 %v3348, %v3347
      %v3418 = vpack.c.b16 %v3350, %v3349
      %v3419 = vpack.c.b16 %v3352, %v3351
      %v3420 = vpack.c.b16 %v3354, %v3353
      %v3421 = vpack.c.b16 %v3356, %v3355
      %v3422 = vpack.c.b16 %v3358, %v3357
      %v3423 = vpack.c.b16 %v3360, %v3359
      %v3424 = vpack.c.b16 %v3362, %v3361
      %v3425 = vpack.c.b16 %v3364, %v3363
      %v3426 = vpack.c.b16 %v3366, %v3365
      %v3427 = vpack.c.b16 %v3368, %v3367
      %v3428 = vpack.c.b16 %v3370, %v3369
      %v3429 = vpack.c.b16 %v3372, %v3371
      %v3430 = vpack.c.b16 %v3374, %v3373
      %v3431 = vpack.c.b16 %v3376, %v3375
      %v3432 = vpack.c.b16 %v3378, %v3377
      %v3433 = vpack.c.b16 %v3380, %v3379
      %v3434 = vpack.c.b16 %v3382, %v3381
      %v3435 = vpack.c.b16 %v3384, %v3383
      %v3436 = vpack.c.b16 %v3386, %v3385
      %v3437 = vpack.c.b16 %v3388, %v3387
      %v3438 = vpack.c.b16 %v3390, %v3389
      %v3439 = vpack.c.b16 %v3392, %v3391
      %v3440 = vpack.c.b16 %v3394, %v3393
      %v3441 = vpack.c.b16 %v3396, %v3395
      %v3442 = vpack.c.b16 %v3398, %v3397
      %v3443 = vpack.c.b16 %v3400, %v3399
      %v3444 = vpack.c.b16 %v3402, %v3401
      %v3445 = vpack.c.b16 %v3404, %v3403
      %3487 = vst [vmem:[%s224] sm:$0xff] %v3405
      %3488 = vst [vmem:[%s224 + $0x8] sm:$0xff] %v3406
      %3489 = vst [vmem:[%s224 + $0x10] sm:$0xff] %v3407
      %3490 = vst [vmem:[%s224 + $0x18] sm:$0xff] %v3408
      %3491 = vst [vmem:[%s224 + $0x20] sm:$0xff] %v3409
      %3492 = vst [vmem:[%s224 + $0x28] sm:$0xff] %v3410
      %3493 = vst [vmem:[%s224 + $0x30] sm:$0xff] %v3411
      %3494 = vst [vmem:[%s224 + $0x38] sm:$0xff] %v3412
      %3495 = vst [vmem:[%s224 + $0x40] sm:$0xff] %v3413
      %3496 = vst [vmem:[%s224 + $0x48] sm:$0xff] %v3414
      %3497 = vst [vmem:[%s224 + $0x50] sm:$0xff] %v3415
      %3498 = vst [vmem:[%s224 + $0x58] sm:$0xff] %v3416
      %3499 = vst [vmem:[%s224 + $0x60] sm:$0xff] %v3417
      %3500 = vst [vmem:[%s224 + $0x68] sm:$0xff] %v3418
      %3501 = vst [vmem:[%s224 + $0x70] sm:$0xff] %v3419
      %3502 = vst [vmem:[%s224 + $0x78] sm:$0xff] %v3420
      %3503 = vst [vmem:[%s224 + $0x80] sm:$0xff] %v3421
      %3504 = vst [vmem:[%s224 + $0x88] sm:$0xff] %v3422
      %3505 = vst [vmem:[%s224 + $0x90] sm:$0xff] %v3423
      %3506 = vst [vmem:[%s224 + $0x98] sm:$0xff] %v3424
      %3507 = vst [vmem:[%s224 + $0xa0] sm:$0xff] %v3425
      %3508 = vst [vmem:[%s224 + $0xa8] sm:$0xff] %v3426
      %3509 = vst [vmem:[%s224 + $0xb0] sm:$0xff] %v3427
      %3510 = vst [vmem:[%s224 + $0xb8] sm:$0xff] %v3428
      %3511 = vst [vmem:[%s224 + $0xc0] sm:$0xff] %v3429
      %3512 = vst [vmem:[%s224 + $0xc8] sm:$0xff] %v3430
      %3513 = vst [vmem:[%s224 + $0xd0] sm:$0xff] %v3431
      %3514 = vst [vmem:[%s224 + $0xd8] sm:$0xff] %v3432
      %3515 = vst [vmem:[%s224 + $0xe0] sm:$0xff] %v3433
      %3516 = vst [vmem:[%s224 + $0xe8] sm:$0xff] %v3434
      %3517 = vst [vmem:[%s224 + $0xf0] sm:$0xff] %v3435
      %3518 = vst [vmem:[%s224 + $0xf8] sm:$0xff] %v3436
      %3519 = vst [vmem:[%s224 + $0x100] sm:$0xff] %v3437
      %3520 = vst [vmem:[%s224 + $0x108] sm:$0xff] %v3438
      %3521 = vst [vmem:[%s224 + $0x110] sm:$0xff] %v3439
      %3522 = vst [vmem:[%s224 + $0x118] sm:$0xff] %v3440
      %3523 = vst [vmem:[%s224 + $0x120] sm:$0xff] %v3441
      %3524 = vst [vmem:[%s224 + $0x128] sm:$0xff] %v3442
      %3525 = vst [vmem:[%s224 + $0x130] sm:$0xff] %v3443
      %3526 = vst [vmem:[%s224 + $0x138] sm:$0xff] %v3444
      %3527 = vst [vmem:[%s224 + $0x140] sm:$0x33] %v3445
      %p3528 = scmp.lt.s32.totalorder %s16, 1
      %s3529 = scalar_select %p3528, %s16, 1
      %s3530 = smul.addr %s3529, 82
      %s3531 = smul.addr %s3530, 4
      %s3532 = scalar_lea.vmem %s5, %s3531
      // Predicated region
      $region41: #{tpu_custom_call.1} parent=39 // pred_check
        %p3533 = pneg %p144
      $region42: #{tpu_custom_call.1} parent=39 // pred_check_branch
        %3535 = sbr.rel (%p3533) target = $region44
      $region43: #{tpu_custom_call.1} parent=39 // pred_region
        _
      $region44: #{tpu_custom_call.1} parent=39 // pred_fallthru
        _
    $region40: #{tpu_custom_call.1} parent=5 // pred_fallthru
      _
    %p3536 = scmp.le.s32.totalorder 2, %s11
    // Predicated region
    $region45: #{tpu_custom_call.1} parent=5 // pred_check
      %p3537 = pneg %p3536
    $region46: #{tpu_custom_call.1} parent=5 // pred_check_branch
      %3539 = sbr.rel (%p3537) target = $region48
    $region47: #{tpu_custom_call.1} parent=5 // pred_region
      %s3540 = ssub.s32 %s11, 2
      // Predicated region
      $region49: #{tpu_custom_call.1} parent=47 // pred_check
        %p3541 = pneg %p150
      $region50: #{tpu_custom_call.1} parent=47 // pred_check_branch
        %3543 = sbr.rel (%p3541) target = $region52
      $region51: #{tpu_custom_call.1} parent=47 // pred_region
        %p3544 = scmp.lt.s32.totalorder %s17, 1
        %s3545 = scalar_select %p3544, %s17, 1
        %s3546 = smul.addr %s3545, 82
        %s3547 = smul.addr %s3546, 4
        %s3548 = scalar_lea.vmem %s5, %s3547
      $region52: #{tpu_custom_call.1} parent=47 // pred_fallthru
        _
    $region48: #{tpu_custom_call.1} parent=5 // pred_fallthru
      _
  $region6: #{tpu_custom_call.1} parent=0 // loop_footer
    %s15 = sadd.s32 1, %s11
  $region7: #{tpu_custom_call.1} parent=0 // loop_footer_branch
    %10 = sbr.rel target = $region3
  $region8: #{tpu_custom_call.1} parent=0 // loop_exit
    _

</llo_original>
